<compile_context>
chip_gen: v7x
topology: tpu7x:2x2x1
jax: 0.10.0
libtpu: 0.0.40
codegen_flags: <defaults>
</compile_context>

<pallas_src>
import jax
import jax.numpy as jnp
from jax import lax
from jax.experimental import pallas as pl
from jax.experimental.pallas import tpu as pltpu

_LANE = 128


def _residual_block_kernel(xpad_ref, w1_ref, b1_ref, w2_ref, b2_ref, o_ref, ypad_ref):
    # xpad_ref: (H+2, W+2, Cp)  spatially zero-padded, channel-padded input (one image)
    # w*_ref  : (9*Cp, Cp)      flattened HWIO conv weights, row = (ky*3+kx)*Cp + ci
    # b*_ref  : (1, Cp)         conv biases (channel-padded)
    # o_ref   : (H*W, Cp)       lane-dense output block
    # ypad_ref: (H+2, W+2, Cp)  VMEM scratch holding the zero-padded intermediate
    Hp, Wp, Cp = xpad_ref.shape
    H, W = Hp - 2, Wp - 2

    # ---- conv1: one fat im2col matmul (H*W, 9*Cp) x (9*Cp, Cp) on the MXU ----
    patches1 = [
        xpad_ref[ky:ky + H, kx:kx + W, :].reshape(H * W, Cp)
        for ky in range(3) for kx in range(3)
    ]
    shortcut = patches1[4]                       # centre tap == the unpadded input
    acc1 = jnp.dot(jnp.concatenate(patches1, axis=1), w1_ref[...],
                   preferred_element_type=jnp.float32)
    y1 = jnp.maximum(acc1 + b1_ref[...], 0.0)    # ReLU, (H*W, Cp)

    # ---- stage the intermediate into the padded scratch for conv2 ----
    # Zero only the 1-pixel halo (the interior is fully overwritten right after).
    zrow = jnp.zeros((1, Wp, Cp), jnp.float32)
    ypad_ref[0:1, :, :] = zrow
    ypad_ref[Hp - 1:Hp, :, :] = zrow
    zcol = jnp.zeros((Hp, 1, Cp), jnp.float32)
    ypad_ref[:, 0:1, :] = zcol
    ypad_ref[:, Wp - 1:Wp, :] = zcol
    ypad_ref[1:H + 1, 1:W + 1, :] = y1.reshape(H, W, Cp)

    # ---- conv2: same single im2col matmul on the scratch ----
    patches2 = [
        ypad_ref[ky:ky + H, kx:kx + W, :].reshape(H * W, Cp)
        for ky in range(3) for kx in range(3)
    ]
    acc2 = jnp.dot(jnp.concatenate(patches2, axis=1), w2_ref[...],
                   preferred_element_type=jnp.float32)

    # ---- residual add + ReLU, unmasked lane-dense store ----
    out = jnp.maximum(acc2 + b2_ref[...] + shortcut, 0.0)
    o_ref[...] = out.astype(o_ref.dtype)


def residual_block(x_nchw, w1, b1, w2, b2):
    """x_nchw: (B, C, H, W); w1/w2: HWIO (3,3,C,C); b1/b2: (C,). Returns NCHW."""
    B, C, H, W = x_nchw.shape
    Cp = ((C + _LANE - 1) // _LANE) * _LANE      # channel pad to a multiple of 128

    x = jnp.transpose(x_nchw, (0, 2, 3, 1)).astype(jnp.float32)       # NHWC
    # Spatial halo + channel pad fused into a single pad pass.
    xpad = jnp.pad(x, ((0, 0), (1, 1), (1, 1), (0, Cp - C)))          # (B, H+2, W+2, Cp)

    def prep_w(w):
        wp = jnp.pad(w.astype(jnp.float32),
                     ((0, 0), (0, 0), (0, Cp - C), (0, Cp - C)))      # (3,3,Cp,Cp)
        return wp.reshape(9 * Cp, Cp)            # row index = (ky*3+kx)*Cp + ci

    def prep_b(b):
        return jnp.pad(b.astype(jnp.float32), (0, Cp - C)).reshape(1, Cp)

    w1p, w2p = prep_w(w1), prep_w(w2)
    b1p, b2p = prep_b(b1), prep_b(b2)

    # Grid over the batch only (one full image per step).  For production-scale
    # H (e.g. 256x256x256) add a halo'd row-band grid axis so per-step VMEM fits
    # v7x's 64 MiB and both TensorCores get work even at B=1.
    out_flat = pl.pallas_call(
        _residual_block_kernel,
        out_shape=jax.ShapeDtypeStruct((B, H * W, Cp), jnp.float32),
        grid_spec=pltpu.PrefetchScalarGridSpec(
            num_scalar_prefetch=0,
            grid=(B,),
            in_specs=[
                pl.BlockSpec((None, H + 2, W + 2, Cp), lambda b: (b, 0, 0, 0)),
                pl.BlockSpec((9 * Cp, Cp), lambda b: (0, 0)),
                pl.BlockSpec((1, Cp), lambda b: (0, 0)),
                pl.BlockSpec((9 * Cp, Cp), lambda b: (0, 0)),
                pl.BlockSpec((1, Cp), lambda b: (0, 0)),
            ],
            out_specs=pl.BlockSpec((None, H * W, Cp), lambda b: (b, 0, 0)),
            scratch_shapes=[pltpu.VMEM((H + 2, W + 2, Cp), jnp.float32)],
        ),
        compiler_params=pltpu.CompilerParams(
            dimension_semantics=("parallel",)),
    )(xpad, w1p, b1p, w2p, b2p)

    out = out_flat.reshape(B, H, W, Cp)[..., :C]                      # drop channel pad
    return jnp.transpose(out, (0, 3, 1, 2))                           # back to NCHW


def _reference(x_nchw, w1, b1, w2, b2):
    # Pure-JAX reference (same NHWC / HWIO conventions).
    x = jnp.transpose(x_nchw, (0, 2, 3, 1))
    dn = ('NHWC', 'HWIO', 'NHWC')
    y = lax.conv_general_dilated(x, w1, (1, 1), 'SAME', dimension_numbers=dn) + b1
    y = jnp.maximum(y, 0.0)
    y = lax.conv_general_dilated(y, w2, (1, 1), 'SAME', dimension_numbers=dn) + b2
    y = jnp.maximum(y + x, 0.0)
    return jnp.transpose(y, (0, 3, 1, 2))


if __name__ == "__main__":
    B, C, H, W = 2, 4, 16, 16

    key = jax.random.PRNGKey(0)
    kx, kw1, kb1, kw2, kb2 = jax.random.split(key, 5)

    # Deterministic "PyTorch-like" init: uniform(-bound, bound), bound = 1/sqrt(fan_in)
    fan_in = C * 3 * 3
    bound = 1.0 / jnp.sqrt(jnp.float32(fan_in))
    x = jax.random.normal(kx, (B, C, H, W), dtype=jnp.float32)
    w1 = jax.random.uniform(kw1, (3, 3, C, C), jnp.float32, -bound, bound)   # HWIO
    b1 = jax.random.uniform(kb1, (C,), jnp.float32, -bound, bound)
    w2 = jax.random.uniform(kw2, (3, 3, C, C), jnp.float32, -bound, bound)
    b2 = jax.random.uniform(kb2, (C,), jnp.float32, -bound, bound)

    out = jax.block_until_ready(residual_block(x, w1, b1, w2, b2))
    ref = jax.block_until_ready(_reference(x, w1, b1, w2, b2))

    assert out.shape == (B, C, H, W), out.shape
    assert jnp.allclose(out, ref, atol=1e-4, rtol=1e-4), float(jnp.max(jnp.abs(out - ref)))

    print("KERNEL_OK")
</pallas_src>

<mosaic_0001>
module attributes {stable_mosaic.version = 11 : i64} {
  func.func @_residual_block_kernel(%arg0: i32, %arg1: memref<1x18x18x128xf32, #tpu.memory_space<vmem>>, %arg2: memref<1152x128xf32, #tpu.memory_space<vmem>>, %arg3: memref<1x128xf32, #tpu.memory_space<vmem>>, %arg4: memref<1152x128xf32, #tpu.memory_space<vmem>>, %arg5: memref<1x128xf32, #tpu.memory_space<vmem>>, %arg6: memref<1x256x128xf32, #tpu.memory_space<vmem>>, %arg7: memref<18x18x128xf32, #tpu.memory_space<vmem>>) attributes {dimension_semantics = [#tpu.dimension_semantics<parallel>], iteration_bounds = array<i64: 2>, scalar_prefetch = 0 : i64, scratch_operands = 1 : i64, tpu.core_type = #tpu.core_type<tc>, window_params = [{transform_indices = @transform_0, window_bounds = array<i64: 1, 18, 18, 128>}, {pipeline_mode = #tpu.pipeline_mode<synchronous>, transform_indices = @transform_1, window_bounds = array<i64: 1152, 128>}, {pipeline_mode = #tpu.pipeline_mode<synchronous>, transform_indices = @transform_2, window_bounds = array<i64: 1, 128>}, {pipeline_mode = #tpu.pipeline_mode<synchronous>, transform_indices = @transform_3, window_bounds = array<i64: 1152, 128>}, {pipeline_mode = #tpu.pipeline_mode<synchronous>, transform_indices = @transform_4, window_bounds = array<i64: 1, 128>}, {transform_indices = @transform_5, window_bounds = array<i64: 1, 256, 128>}]} {
    %c0 = arith.constant 0 : index
    %c0_0 = arith.constant 0 : index
    %c0_1 = arith.constant 0 : index
    %c0_2 = arith.constant 0 : index
    %0 = vector.load %arg1[%c0, %c0_0, %c0_1, %c0_2] : memref<1x18x18x128xf32, #tpu.memory_space<vmem>>, vector<1x16x16x128xf32>
    %1 = vector.shape_cast %0 : vector<1x16x16x128xf32> to vector<16x16x128xf32>
    %2 = vector.shape_cast %1 : vector<16x16x128xf32> to vector<256x128xf32>
    %c0_3 = arith.constant 0 : index
    %c0_4 = arith.constant 0 : index
    %c1 = arith.constant 1 : index
    %c0_5 = arith.constant 0 : index
    %3 = vector.load %arg1[%c0_3, %c0_4, %c1, %c0_5] : memref<1x18x18x128xf32, #tpu.memory_space<vmem>>, vector<1x16x16x128xf32>
    %4 = vector.shape_cast %3 : vector<1x16x16x128xf32> to vector<16x16x128xf32>
    %5 = vector.shape_cast %4 : vector<16x16x128xf32> to vector<256x128xf32>
    %c0_6 = arith.constant 0 : index
    %c0_7 = arith.constant 0 : index
    %c2 = arith.constant 2 : index
    %c0_8 = arith.constant 0 : index
    %6 = vector.load %arg1[%c0_6, %c0_7, %c2, %c0_8] : memref<1x18x18x128xf32, #tpu.memory_space<vmem>>, vector<1x16x16x128xf32>
    %7 = vector.shape_cast %6 : vector<1x16x16x128xf32> to vector<16x16x128xf32>
    %8 = vector.shape_cast %7 : vector<16x16x128xf32> to vector<256x128xf32>
    %c0_9 = arith.constant 0 : index
    %c1_10 = arith.constant 1 : index
    %c0_11 = arith.constant 0 : index
    %c0_12 = arith.constant 0 : index
    %9 = vector.load %arg1[%c0_9, %c1_10, %c0_11, %c0_12] : memref<1x18x18x128xf32, #tpu.memory_space<vmem>>, vector<1x16x16x128xf32>
    %10 = vector.shape_cast %9 : vector<1x16x16x128xf32> to vector<16x16x128xf32>
    %11 = vector.shape_cast %10 : vector<16x16x128xf32> to vector<256x128xf32>
    %c0_13 = arith.constant 0 : index
    %c1_14 = arith.constant 1 : index
    %c1_15 = arith.constant 1 : index
    %c0_16 = arith.constant 0 : index
    %12 = vector.load %arg1[%c0_13, %c1_14, %c1_15, %c0_16] : memref<1x18x18x128xf32, #tpu.memory_space<vmem>>, vector<1x16x16x128xf32>
    %13 = vector.shape_cast %12 : vector<1x16x16x128xf32> to vector<16x16x128xf32>
    %14 = vector.shape_cast %13 : vector<16x16x128xf32> to vector<256x128xf32>
    %c0_17 = arith.constant 0 : index
    %c1_18 = arith.constant 1 : index
    %c2_19 = arith.constant 2 : index
    %c0_20 = arith.constant 0 : index
    %15 = vector.load %arg1[%c0_17, %c1_18, %c2_19, %c0_20] : memref<1x18x18x128xf32, #tpu.memory_space<vmem>>, vector<1x16x16x128xf32>
    %16 = vector.shape_cast %15 : vector<1x16x16x128xf32> to vector<16x16x128xf32>
    %17 = vector.shape_cast %16 : vector<16x16x128xf32> to vector<256x128xf32>
    %c0_21 = arith.constant 0 : index
    %c2_22 = arith.constant 2 : index
    %c0_23 = arith.constant 0 : index
    %c0_24 = arith.constant 0 : index
    %18 = vector.load %arg1[%c0_21, %c2_22, %c0_23, %c0_24] : memref<1x18x18x128xf32, #tpu.memory_space<vmem>>, vector<1x16x16x128xf32>
    %19 = vector.shape_cast %18 : vector<1x16x16x128xf32> to vector<16x16x128xf32>
    %20 = vector.shape_cast %19 : vector<16x16x128xf32> to vector<256x128xf32>
    %c0_25 = arith.constant 0 : index
    %c2_26 = arith.constant 2 : index
    %c1_27 = arith.constant 1 : index
    %c0_28 = arith.constant 0 : index
    %21 = vector.load %arg1[%c0_25, %c2_26, %c1_27, %c0_28] : memref<1x18x18x128xf32, #tpu.memory_space<vmem>>, vector<1x16x16x128xf32>
    %22 = vector.shape_cast %21 : vector<1x16x16x128xf32> to vector<16x16x128xf32>
    %23 = vector.shape_cast %22 : vector<16x16x128xf32> to vector<256x128xf32>
    %c0_29 = arith.constant 0 : index
    %c2_30 = arith.constant 2 : index
    %c2_31 = arith.constant 2 : index
    %c0_32 = arith.constant 0 : index
    %24 = vector.load %arg1[%c0_29, %c2_30, %c2_31, %c0_32] : memref<1x18x18x128xf32, #tpu.memory_space<vmem>>, vector<1x16x16x128xf32>
    %25 = vector.shape_cast %24 : vector<1x16x16x128xf32> to vector<16x16x128xf32>
    %26 = vector.shape_cast %25 : vector<16x16x128xf32> to vector<256x128xf32>
    %27 = tpu.concatenate %2, %5, %8, %11, %14, %17, %20, %23, %26 in 1 : vector<256x128xf32>, vector<256x128xf32>, vector<256x128xf32>, vector<256x128xf32>, vector<256x128xf32>, vector<256x128xf32>, vector<256x128xf32>, vector<256x128xf32>, vector<256x128xf32> -> vector<256x1152xf32>
    %c0_33 = arith.constant 0 : index
    %c0_34 = arith.constant 0 : index
    %28 = vector.load %arg2[%c0_33, %c0_34] : memref<1152x128xf32, #tpu.memory_space<vmem>>, vector<1152x128xf32>
    %cst = arith.constant dense<0.000000e+00> : vector<256x128xf32>
    %29 = tpu.matmul %27, %28, %cst {dimension_numbers = #tpu.dot_dimension_numbers<[1], [0], [0], [1], [0, 0, 1, 1], [], []>} : vector<256x1152xf32>, vector<1152x128xf32>, vector<256x128xf32> -> vector<256x128xf32>
    %c0_35 = arith.constant 0 : index
    %c0_36 = arith.constant 0 : index
    %30 = vector.load %arg3[%c0_35, %c0_36] : memref<1x128xf32, #tpu.memory_space<vmem>>, vector<1x128xf32>
    %31 = vector.broadcast %30 : vector<1x128xf32> to vector<256x128xf32>
    %32 = arith.addf %29, %31 : vector<256x128xf32>
    %cst_37 = arith.constant 0.000000e+00 : f32
    %33 = vector.broadcast %cst_37 : f32 to vector<256x128xf32>
    %34 = arith.maximumf %32, %33 : vector<256x128xf32>
    %cst_38 = arith.constant 0.000000e+00 : f32
    %35 = vector.broadcast %cst_38 : f32 to vector<1x18x128xf32>
    %c0_39 = arith.constant 0 : index
    %c0_40 = arith.constant 0 : index
    %c0_41 = arith.constant 0 : index
    %36 = vector.load %arg7[%c0_39, %c0_40, %c0_41] : memref<18x18x128xf32, #tpu.memory_space<vmem>>, vector<1x18x128xf32>
    tpu.vector_store %arg7[%c0_39, %c0_40, %c0_41], %35 {strides = array<i32>} : memref<18x18x128xf32, #tpu.memory_space<vmem>>, vector<1x18x128xf32>,
    %c17 = arith.constant 17 : index
    %c0_42 = arith.constant 0 : index
    %c0_43 = arith.constant 0 : index
    %37 = vector.load %arg7[%c17, %c0_42, %c0_43] : memref<18x18x128xf32, #tpu.memory_space<vmem>>, vector<1x18x128xf32>
    tpu.vector_store %arg7[%c17, %c0_42, %c0_43], %35 {strides = array<i32>} : memref<18x18x128xf32, #tpu.memory_space<vmem>>, vector<1x18x128xf32>,
    %cst_44 = arith.constant 0.000000e+00 : f32
    %38 = vector.broadcast %cst_44 : f32 to vector<18x1x128xf32>
    %c0_45 = arith.constant 0 : index
    %c0_46 = arith.constant 0 : index
    %c0_47 = arith.constant 0 : index
    %39 = vector.load %arg7[%c0_45, %c0_46, %c0_47] : memref<18x18x128xf32, #tpu.memory_space<vmem>>, vector<18x1x128xf32>
    tpu.vector_store %arg7[%c0_45, %c0_46, %c0_47], %38 {strides = array<i32>} : memref<18x18x128xf32, #tpu.memory_space<vmem>>, vector<18x1x128xf32>,
    %c0_48 = arith.constant 0 : index
    %c17_49 = arith.constant 17 : index
    %c0_50 = arith.constant 0 : index
    %40 = vector.load %arg7[%c0_48, %c17_49, %c0_50] : memref<18x18x128xf32, #tpu.memory_space<vmem>>, vector<18x1x128xf32>
    tpu.vector_store %arg7[%c0_48, %c17_49, %c0_50], %38 {strides = array<i32>} : memref<18x18x128xf32, #tpu.memory_space<vmem>>, vector<18x1x128xf32>,
    %41 = vector.shape_cast %34 : vector<256x128xf32> to vector<16x16x128xf32>
    %c1_51 = arith.constant 1 : index
    %c1_52 = arith.constant 1 : index
    %c0_53 = arith.constant 0 : index
    %42 = vector.load %arg7[%c1_51, %c1_52, %c0_53] : memref<18x18x128xf32, #tpu.memory_space<vmem>>, vector<16x16x128xf32>
    tpu.vector_store %arg7[%c1_51, %c1_52, %c0_53], %41 {strides = array<i32>} : memref<18x18x128xf32, #tpu.memory_space<vmem>>, vector<16x16x128xf32>,
    %c0_54 = arith.constant 0 : index
    %c0_55 = arith.constant 0 : index
    %c0_56 = arith.constant 0 : index
    %43 = vector.load %arg7[%c0_54, %c0_55, %c0_56] : memref<18x18x128xf32, #tpu.memory_space<vmem>>, vector<16x16x128xf32>
    %44 = vector.shape_cast %43 : vector<16x16x128xf32> to vector<256x128xf32>
    %c0_57 = arith.constant 0 : index
    %c1_58 = arith.constant 1 : index
    %c0_59 = arith.constant 0 : index
    %45 = vector.load %arg7[%c0_57, %c1_58, %c0_59] : memref<18x18x128xf32, #tpu.memory_space<vmem>>, vector<16x16x128xf32>
    %46 = vector.shape_cast %45 : vector<16x16x128xf32> to vector<256x128xf32>
    %c0_60 = arith.constant 0 : index
    %c2_61 = arith.constant 2 : index
    %c0_62 = arith.constant 0 : index
    %47 = vector.load %arg7[%c0_60, %c2_61, %c0_62] : memref<18x18x128xf32, #tpu.memory_space<vmem>>, vector<16x16x128xf32>
    %48 = vector.shape_cast %47 : vector<16x16x128xf32> to vector<256x128xf32>
    %c1_63 = arith.constant 1 : index
    %c0_64 = arith.constant 0 : index
    %c0_65 = arith.constant 0 : index
    %49 = vector.load %arg7[%c1_63, %c0_64, %c0_65] : memref<18x18x128xf32, #tpu.memory_space<vmem>>, vector<16x16x128xf32>
    %50 = vector.shape_cast %49 : vector<16x16x128xf32> to vector<256x128xf32>
    %c1_66 = arith.constant 1 : index
    %c1_67 = arith.constant 1 : index
    %c0_68 = arith.constant 0 : index
    %51 = vector.load %arg7[%c1_66, %c1_67, %c0_68] : memref<18x18x128xf32, #tpu.memory_space<vmem>>, vector<16x16x128xf32>
    %52 = vector.shape_cast %51 : vector<16x16x128xf32> to vector<256x128xf32>
    %c1_69 = arith.constant 1 : index
    %c2_70 = arith.constant 2 : index
    %c0_71 = arith.constant 0 : index
    %53 = vector.load %arg7[%c1_69, %c2_70, %c0_71] : memref<18x18x128xf32, #tpu.memory_space<vmem>>, vector<16x16x128xf32>
    %54 = vector.shape_cast %53 : vector<16x16x128xf32> to vector<256x128xf32>
    %c2_72 = arith.constant 2 : index
    %c0_73 = arith.constant 0 : index
    %c0_74 = arith.constant 0 : index
    %55 = vector.load %arg7[%c2_72, %c0_73, %c0_74] : memref<18x18x128xf32, #tpu.memory_space<vmem>>, vector<16x16x128xf32>
    %56 = vector.shape_cast %55 : vector<16x16x128xf32> to vector<256x128xf32>
    %c2_75 = arith.constant 2 : index
    %c1_76 = arith.constant 1 : index
    %c0_77 = arith.constant 0 : index
    %57 = vector.load %arg7[%c2_75, %c1_76, %c0_77] : memref<18x18x128xf32, #tpu.memory_space<vmem>>, vector<16x16x128xf32>
    %58 = vector.shape_cast %57 : vector<16x16x128xf32> to vector<256x128xf32>
    %c2_78 = arith.constant 2 : index
    %c2_79 = arith.constant 2 : index
    %c0_80 = arith.constant 0 : index
    %59 = vector.load %arg7[%c2_78, %c2_79, %c0_80] : memref<18x18x128xf32, #tpu.memory_space<vmem>>, vector<16x16x128xf32>
    %60 = vector.shape_cast %59 : vector<16x16x128xf32> to vector<256x128xf32>
    %61 = tpu.concatenate %44, %46, %48, %50, %52, %54, %56, %58, %60 in 1 : vector<256x128xf32>, vector<256x128xf32>, vector<256x128xf32>, vector<256x128xf32>, vector<256x128xf32>, vector<256x128xf32>, vector<256x128xf32>, vector<256x128xf32>, vector<256x128xf32> -> vector<256x1152xf32>
    %c0_81 = arith.constant 0 : index
    %c0_82 = arith.constant 0 : index
    %62 = vector.load %arg4[%c0_81, %c0_82] : memref<1152x128xf32, #tpu.memory_space<vmem>>, vector<1152x128xf32>
    %cst_83 = arith.constant dense<0.000000e+00> : vector<256x128xf32>
    %63 = tpu.matmul %61, %62, %cst_83 {dimension_numbers = #tpu.dot_dimension_numbers<[1], [0], [0], [1], [0, 0, 1, 1], [], []>} : vector<256x1152xf32>, vector<1152x128xf32>, vector<256x128xf32> -> vector<256x128xf32>
    %c0_84 = arith.constant 0 : index
    %c0_85 = arith.constant 0 : index
    %64 = vector.load %arg5[%c0_84, %c0_85] : memref<1x128xf32, #tpu.memory_space<vmem>>, vector<1x128xf32>
    %65 = vector.broadcast %64 : vector<1x128xf32> to vector<256x128xf32>
    %66 = arith.addf %63, %65 : vector<256x128xf32>
    %67 = arith.addf %66, %14 : vector<256x128xf32>
    %cst_86 = arith.constant 0.000000e+00 : f32
    %68 = vector.broadcast %cst_86 : f32 to vector<256x128xf32>
    %69 = arith.maximumf %67, %68 : vector<256x128xf32>
    %c0_87 = arith.constant 0 : index
    %c0_88 = arith.constant 0 : index
    %c0_89 = arith.constant 0 : index
    %70 = vector.load %arg6[%c0_87, %c0_88, %c0_89] : memref<1x256x128xf32, #tpu.memory_space<vmem>>, vector<1x256x128xf32>
    %71 = vector.shape_cast %70 : vector<1x256x128xf32> to vector<256x128xf32>
    %72 = vector.shape_cast %69 : vector<256x128xf32> to vector<1x256x128xf32>
    tpu.vector_store %arg6[%c0_87, %c0_88, %c0_89], %72 {strides = array<i32>} : memref<1x256x128xf32, #tpu.memory_space<vmem>>, vector<1x256x128xf32>,
    return
  }
  func.func @transform_0(%arg0: i32) -> (i32, i32, i32, i32) {
    %c0_i32 = arith.constant 0 : i32
    %c0_i32_0 = arith.constant 0 : i32
    %c0_i32_1 = arith.constant 0 : i32
    %c0_i32_2 = arith.constant 0 : i32
    return %arg0, %c0_i32, %c0_i32_0, %c0_i32_1 : i32, i32, i32, i32
  }
  func.func @transform_1(%arg0: i32) -> (i32, i32) {
    %c0_i32 = arith.constant 0 : i32
    %c0_i32_0 = arith.constant 0 : i32
    %c0_i32_1 = arith.constant 0 : i32
    return %c0_i32, %c0_i32_0 : i32, i32
  }
  func.func @transform_2(%arg0: i32) -> (i32, i32) {
    %c0_i32 = arith.constant 0 : i32
    %c0_i32_0 = arith.constant 0 : i32
    %c0_i32_1 = arith.constant 0 : i32
    return %c0_i32, %c0_i32_0 : i32, i32
  }
  func.func @transform_3(%arg0: i32) -> (i32, i32) {
    %c0_i32 = arith.constant 0 : i32
    %c0_i32_0 = arith.constant 0 : i32
    %c0_i32_1 = arith.constant 0 : i32
    return %c0_i32, %c0_i32_0 : i32, i32
  }
  func.func @transform_4(%arg0: i32) -> (i32, i32) {
    %c0_i32 = arith.constant 0 : i32
    %c0_i32_0 = arith.constant 0 : i32
    %c0_i32_1 = arith.constant 0 : i32
    return %c0_i32, %c0_i32_0 : i32, i32
  }
  func.func @transform_5(%arg0: i32) -> (i32, i32, i32) {
    %c0_i32 = arith.constant 0 : i32
    %c0_i32_0 = arith.constant 0 : i32
    %c0_i32_1 = arith.constant 0 : i32
    return %arg0, %c0_i32, %c0_i32_0 : i32, i32, i32
  }
}

</mosaic_0001>

<llo_original>
// kernel: tpu_custom_call.1
$region0: #{tpu_custom_call.1}
  #allocation0 [shape = 'u32[]', space=smem, size = 0x4, offset = 0x4, fixed_abs, tag = 'smem constant byte address 0x4 - core index']
  #allocation1 [shape = 'u32[144,128]{1,0:T(1,128)}', space=vmem, size = 0x12000, scoped, tag = 'internal scratch']
  #allocation2 [shape = 'f32[18,18,128]{2,1,0:T(8,128)}', space=vmem, size = 0x36000, scoped, tag = 'scratch operand']
  %s0 = inlined_call_operand.vmem [shape: f32[2,18,18,128], index: 0, kind: input, shape index: {}]
  %s1 = inlined_call_operand.vmem [shape: f32[1152,128], index: 1, kind: input, shape index: {}]
  %s2 = inlined_call_operand.vmem [shape: f32[1,128], index: 2, kind: input, shape index: {}]
  %s3 = inlined_call_operand.hbm [shape: f32[1152,128], index: 3, kind: input, shape index: {}]
  %s4 = inlined_call_operand.vmem [shape: f32[1,128], index: 4, kind: input, shape index: {}]
  %s5 = inlined_call_operand.hbm [shape: f32[2,256,128], index: 5, kind: output, shape index: {}]
  %s6 = sld [smem:[#allocation0]]
  $region57: #{tpu_custom_call.1} parent=0
    _
  %s8 = ssub.s32 1, %s6
  %s9 = scalar_select 0, %s8, %s6
  $region1: #{tpu_custom_call.1} parent=0
    #allocation3 [shape = 'u8[589824]{0}', space=vmem, size = 0x90000, scoped, tag = 'input window, operand 3, single buffered']
    #allocation4 [shape = 's32[2]{0}', space=sflag, size = 0x8, scoped, tag = 'scoped memory for tpu_custom_call.1']
    #allocation5 [shape = 's32[2]{0}', space=sflag, size = 0x8, scoped, tag = 'scoped memory for tpu_custom_call.1']
    #allocation6 [shape = 'u8[262144]{0}', space=vmem, size = 0x40000, scoped, tag = 'output window, operand 0']
    %10 = vsyncpa [#allocation4], 0
    %11 = vsyncpa [#allocation5], 0
    %s12 = scalar_lea.sflag [#allocation5], 1
    %13 = vsyncpa %s12, 0
    loop: start=0, step=1, limit=4
    $region2: #{tpu_custom_call.1} parent=1 // loop_pre_header
      _
    $region3: #{tpu_custom_call.1} parent=1 // loop_header
      %s15 = sphi 0, %s19
      %p16 = scmp.ge.s32.totalorder %s15, 4
      %s25 = sphi 0, %s27
      %s28 = sphi 0, %s25
      %s29 = sphi 0, %s28
      %s45 = sphi 0, %s29
      %s49 = sphi 0, %s49
      %s51 = sphi 0, %s49
      %s52 = sphi 0, %s51
      %s66 = sphi 0, %s52
      %s70 = sphi 0, %s70
      %s72 = sphi 0, %s70
      %s73 = sphi 0, %s72
      %s87 = sphi 0, %s73
      %s91 = sphi 0, %s91
      %s93 = sphi 0, %s91
      %s94 = sphi 0, %s93
      %s108 = sphi 0, %s94
      %s112 = sphi 0, %s112
      %s114 = sphi 0, %s112
      %s115 = sphi 0, %s114
      %s129 = sphi 0, %s115
      %s135 = sphi 0, %s137
      %s138 = sphi 0, %s135
      %s139 = sphi 0, %s138
      %s155 = sphi 0, %s139
    $region4: #{tpu_custom_call.1} parent=1 // loop_header_branch
      %18 = sbr.rel (%p16) target = $region8
    $region5: #{tpu_custom_call.1} parent=1 // loop_body
      %s20 = ssub.s32 %s15, 1
      %s21 = ssub.s32 %s15, 2
      %s22 = sadd.s32 %s15, 1
      %s23 = ssub.s32 %s15, %s22
      %p24 = scmp.eq.s32.totalorder %s23, 0
      %s26 = sadd.s32 %s25, 1
      %s27 = scalar_select %p24, %s25, %s26
      %p30 = pneg %p24
      %p31 = scmp.eq.s32.totalorder %s15, 1
      %p32 = por %p30, %p31
      %p33 = scmp.ne.s32.totalorder %s25, %s28
      %p34 = scmp.eq.s32.totalorder %s15, 0
      %p35 = por %p33, %p34
      %p36 = scmp.ne.s32.totalorder %s25, %s28
      %p37 = scmp.eq.s32.totalorder %s20, 1
      %p38 = por %p36, %p37
      %p39 = scmp.ne.s32.totalorder %s28, %s29
      %p40 = scmp.eq.s32.totalorder %s20, 0
      %p41 = por %p39, %p40
      %p42 = scmp.ne.s32.totalorder %s28, %s29
      %p43 = scmp.eq.s32.totalorder %s21, 1
      %p44 = por %p42, %p43
      %p46 = scmp.ne.s32.totalorder %s29, %s45
      %p47 = scmp.eq.s32.totalorder %s21, 0
      %p48 = por %p46, %p47
      %s50 = sadd.s32 %s49, 1
      %p53 = scmp.eq.s32.totalorder %s15, 1
      %p54 = scmp.ne.s32.totalorder %s49, %s51
      %p55 = scmp.eq.s32.totalorder %s15, 0
      %p56 = por %p54, %p55
      %p57 = scmp.ne.s32.totalorder %s49, %s51
      %p58 = scmp.eq.s32.totalorder %s20, 1
      %p59 = por %p57, %p58
      %p60 = scmp.ne.s32.totalorder %s51, %s52
      %p61 = scmp.eq.s32.totalorder %s20, 0
      %p62 = por %p60, %p61
      %p63 = scmp.ne.s32.totalorder %s51, %s52
      %p64 = scmp.eq.s32.totalorder %s21, 1
      %p65 = por %p63, %p64
      %p67 = scmp.ne.s32.totalorder %s52, %s66
      %p68 = scmp.eq.s32.totalorder %s21, 0
      %p69 = por %p67, %p68
      %s71 = sadd.s32 %s70, 1
      %p74 = scmp.eq.s32.totalorder %s15, 1
      %p75 = scmp.ne.s32.totalorder %s70, %s72
      %p76 = scmp.eq.s32.totalorder %s15, 0
      %p77 = por %p75, %p76
      %p78 = scmp.ne.s32.totalorder %s70, %s72
      %p79 = scmp.eq.s32.totalorder %s20, 1
      %p80 = por %p78, %p79
      %p81 = scmp.ne.s32.totalorder %s72, %s73
      %p82 = scmp.eq.s32.totalorder %s20, 0
      %p83 = por %p81, %p82
      %p84 = scmp.ne.s32.totalorder %s72, %s73
      %p85 = scmp.eq.s32.totalorder %s21, 1
      %p86 = por %p84, %p85
      %p88 = scmp.ne.s32.totalorder %s73, %s87
      %p89 = scmp.eq.s32.totalorder %s21, 0
      %p90 = por %p88, %p89
      %s92 = sadd.s32 %s91, 1
      %p95 = scmp.eq.s32.totalorder %s15, 1
      %p96 = scmp.ne.s32.totalorder %s91, %s93
      %p97 = scmp.eq.s32.totalorder %s15, 0
      %p98 = por %p96, %p97
      %p99 = scmp.ne.s32.totalorder %s91, %s93
      %p100 = scmp.eq.s32.totalorder %s20, 1
      %p101 = por %p99, %p100
      %p102 = scmp.ne.s32.totalorder %s93, %s94
      %p103 = scmp.eq.s32.totalorder %s20, 0
      %p104 = por %p102, %p103
      %p105 = scmp.ne.s32.totalorder %s93, %s94
      %p106 = scmp.eq.s32.totalorder %s21, 1
      %p107 = por %p105, %p106
      %p109 = scmp.ne.s32.totalorder %s94, %s108
      %p110 = scmp.eq.s32.totalorder %s21, 0
      %p111 = por %p109, %p110
      %s113 = sadd.s32 %s112, 1
      %p116 = scmp.eq.s32.totalorder %s15, 1
      %p117 = scmp.ne.s32.totalorder %s112, %s114
      %p118 = scmp.eq.s32.totalorder %s15, 0
      %p119 = por %p117, %p118
      %p120 = scmp.ne.s32.totalorder %s112, %s114
      %p121 = scmp.eq.s32.totalorder %s20, 1
      %p122 = por %p120, %p121
      %p123 = scmp.ne.s32.totalorder %s114, %s115
      %p124 = scmp.eq.s32.totalorder %s20, 0
      %p125 = por %p123, %p124
      %p126 = scmp.ne.s32.totalorder %s114, %s115
      %p127 = scmp.eq.s32.totalorder %s21, 1
      %p128 = por %p126, %p127
      %p130 = scmp.ne.s32.totalorder %s115, %s129
      %p131 = scmp.eq.s32.totalorder %s21, 0
      %p132 = por %p130, %p131
      %s133 = ssub.s32 %s15, %s22
      %p134 = scmp.eq.s32.totalorder %s133, 0
      %s136 = sadd.s32 %s135, 1
      %s137 = scalar_select %p134, %s135, %s136
      %p140 = pneg %p134
      %p141 = scmp.eq.s32.totalorder %s15, 1
      %p142 = por %p140, %p141
      %p143 = scmp.ne.s32.totalorder %s135, %s138
      %p144 = scmp.eq.s32.totalorder %s15, 0
      %p145 = por %p143, %p144
      %p146 = scmp.ne.s32.totalorder %s135, %s138
      %p147 = scmp.eq.s32.totalorder %s20, 1
      %p148 = por %p146, %p147
      %p149 = scmp.ne.s32.totalorder %s138, %s139
      %p150 = scmp.eq.s32.totalorder %s20, 0
      %p151 = por %p149, %p150
      %p152 = scmp.ne.s32.totalorder %s138, %s139
      %p153 = scmp.eq.s32.totalorder %s21, 1
      %p154 = por %p152, %p153
      %p156 = scmp.ne.s32.totalorder %s139, %s155
      %p157 = scmp.eq.s32.totalorder %s21, 0
      %p158 = por %p156, %p157
      %p159 = scmp.le.s32.totalorder 1, %s15
      %p160 = scmp.lt.s32.totalorder %s15, 3
      %p161 = pnand %p159, %p160
      %p162 = pneg %p161
      // Predicated region
      $region9: #{tpu_custom_call.1} parent=5 // pred_check
        _
      $region10: #{tpu_custom_call.1} parent=5 // pred_check_branch
        %164 = sbr.rel (%p161) target = $region12
      $region11: #{tpu_custom_call.1} parent=5 // pred_region
        %s165 = ssub.s32 %s15, 1
        // Predicated region
        $region13: #{tpu_custom_call.1} parent=11 // pred_check
          %p166 = pneg %p62
        $region14: #{tpu_custom_call.1} parent=11 // pred_check_branch
          %168 = sbr.rel (%p166) target = $region16
        $region15: #{tpu_custom_call.1} parent=11 // pred_region
          _
        $region16: #{tpu_custom_call.1} parent=11 // pred_fallthru
          _
        // Predicated region
        $region17: #{tpu_custom_call.1} parent=11 // pred_check
          %p169 = pneg %p83
        $region18: #{tpu_custom_call.1} parent=11 // pred_check_branch
          %171 = sbr.rel (%p169) target = $region20
        $region19: #{tpu_custom_call.1} parent=11 // pred_region
          _
        $region20: #{tpu_custom_call.1} parent=11 // pred_fallthru
          _
        // Predicated region
        $region21: #{tpu_custom_call.1} parent=11 // pred_check
          %p172 = pneg %p104
        $region22: #{tpu_custom_call.1} parent=11 // pred_check_branch
          %174 = sbr.rel (%p172) target = $region24
        $region23: #{tpu_custom_call.1} parent=11 // pred_region
          %s176 = ssub.s32 18432, 18432
          %177 = vsyncadd [#allocation4], %s176
          %s178 = sshll.u32 [#allocation3], 4
          %s179 = int_to_ptr.vmem [resolvable:$true] %s178
          %184 = dma.hbm_to_vmem [thread:$0]  %s3, 18432, %s179, [#allocation4], 128, 128, 8
        $region24: #{tpu_custom_call.1} parent=11 // pred_fallthru
          _
        // Predicated region
        $region25: #{tpu_custom_call.1} parent=11 // pred_check
          %p185 = pneg %p125
        $region26: #{tpu_custom_call.1} parent=11 // pred_check_branch
          %187 = sbr.rel (%p185) target = $region28
        $region27: #{tpu_custom_call.1} parent=11 // pred_region
          _
        $region28: #{tpu_custom_call.1} parent=11 // pred_fallthru
          _
      $region12: #{tpu_custom_call.1} parent=5 // pred_fallthru
        _
      %p188 = scmp.lt.s32.totalorder %s15, 2
      // Predicated region
      $region29: #{tpu_custom_call.1} parent=5 // pred_check
        %p189 = pneg %p188
      $region30: #{tpu_custom_call.1} parent=5 // pred_check_branch
        %191 = sbr.rel (%p189) target = $region32
      $region31: #{tpu_custom_call.1} parent=5 // pred_region
        // Predicated region
        $region33: #{tpu_custom_call.1} parent=31 // pred_check
          %p192 = pneg %p35
        $region34: #{tpu_custom_call.1} parent=31 // pred_check_branch
          %194 = sbr.rel (%p192) target = $region36
        $region35: #{tpu_custom_call.1} parent=31 // pred_region
          %p195 = scmp.lt.s32.totalorder %s15, 1
          %s196 = scalar_select %p195, %s15, 1
          %s197 = smul.addr %s196, 54
          %s198 = smul.addr %s197, 8
          %s199 = scalar_lea.vmem %s0, %s198
        $region36: #{tpu_custom_call.1} parent=31 // pred_fallthru
          _
      $region32: #{tpu_custom_call.1} parent=5 // pred_fallthru
        _
      %p200 = scmp.le.s32.totalorder 1, %s15
      %p201 = scmp.lt.s32.totalorder %s15, 3
      %p202 = pnand %p200, %p201
      %p203 = pneg %p202
      // Predicated region
      $region37: #{tpu_custom_call.1} parent=5 // pred_check
        _
      $region38: #{tpu_custom_call.1} parent=5 // pred_check_branch
        %205 = sbr.rel (%p202) target = $region40
      $region39: #{tpu_custom_call.1} parent=5 // pred_region
        %s206 = ssub.s32 %s15, 1
        // Predicated region
        $region41: #{tpu_custom_call.1} parent=39 // pred_check
          %p207 = pneg %p104
        $region42: #{tpu_custom_call.1} parent=39 // pred_check_branch
          %209 = sbr.rel (%p207) target = $region44
        $region43: #{tpu_custom_call.1} parent=39 // pred_region
          %210 = dma.done [#allocation4], 18432
        $region44: #{tpu_custom_call.1} parent=39 // pred_fallthru
          _
        %p211 = scmp.lt.s32.totalorder %s20, 1
        %s212 = scalar_select %p211, %s20, 1
        %s213 = smul.addr %s212, 54
        %s214 = smul.addr %s213, 8
        %s215 = scalar_lea.vmem %s0, %s214
        %p216 = pneg %p41
        %p217 = pneg %p38
        %p218 = pneg %p62
        %p219 = pneg %p59
        %p220 = pneg %p83
        %p221 = pneg %p80
        %p222 = pneg %p104
        %p223 = pneg %p101
        %p224 = pneg %p125
        %p225 = pneg %p122
        %p226 = pneg %p151
        %p227 = pneg %p148
        %s228 = sand.u32 %s138, 1
        %s229 = scalar_lea.sflag [#allocation5], %s228
        %s230 = sand.u32 %s138, 1
        %s231 = smul.addr %s230, 256
        %s232 = scalar_lea.vmem [#allocation6], %s231
        %p233 = scmp.lt.s32.totalorder %s20, 1
        %s234 = scalar_select %p233, %s20, 1
        %s235 = smul.addr %s234, 54
        %s236 = smul.addr %s235, 8
        %s237 = scalar_lea.vmem %s0, %s236
        %v238 = vld [vmem:[%s237] sm:$0xff]
        %v239 = vld [vmem:[%s237 + $0x8] sm:$0xff]
        %v240 = vld [vmem:[%s237 + $0x18] sm:$0xff]
        %v241 = vld [vmem:[%s237 + $0x20] sm:$0xff]
        %v242 = vld [vmem:[%s237 + $0x30] sm:$0xff]
        %v243 = vld [vmem:[%s237 + $0x38] sm:$0xff]
        %v244 = vld [vmem:[%s237 + $0x48] sm:$0xff]
        %v245 = vld [vmem:[%s237 + $0x50] sm:$0xff]
        %v246 = vld [vmem:[%s237 + $0x60] sm:$0xff]
        %v247 = vld [vmem:[%s237 + $0x68] sm:$0xff]
        %v248 = vld [vmem:[%s237 + $0x78] sm:$0xff]
        %v249 = vld [vmem:[%s237 + $0x80] sm:$0xff]
        %v250 = vld [vmem:[%s237 + $0x90] sm:$0xff]
        %v251 = vld [vmem:[%s237 + $0x98] sm:$0xff]
        %v252 = vld [vmem:[%s237 + $0xa8] sm:$0xff]
        %v253 = vld [vmem:[%s237 + $0xb0] sm:$0xff]
        %v254 = vld [vmem:[%s237 + $0xc0] sm:$0xff]
        %v255 = vld [vmem:[%s237 + $0xc8] sm:$0xff]
        %v256 = vld [vmem:[%s237 + $0xd8] sm:$0xff]
        %v257 = vld [vmem:[%s237 + $0xe0] sm:$0xff]
        %v258 = vld [vmem:[%s237 + $0xf0] sm:$0xff]
        %v259 = vld [vmem:[%s237 + $0xf8] sm:$0xff]
        %v260 = vld [vmem:[%s237 + $0x108] sm:$0xff]
        %v261 = vld [vmem:[%s237 + $0x110] sm:$0xff]
        %v262 = vld [vmem:[%s237 + $0x120] sm:$0xff]
        %v263 = vld [vmem:[%s237 + $0x128] sm:$0xff]
        %v264 = vld [vmem:[%s237 + $0x138] sm:$0xff]
        %v265 = vld [vmem:[%s237 + $0x140] sm:$0xff]
        %v266 = vld [vmem:[%s237 + $0x150] sm:$0xff]
        %v267 = vld [vmem:[%s237 + $0x158] sm:$0xff]
        %v268 = vld [vmem:[%s237 + $0x168] sm:$0xff]
        %v269 = vld [vmem:[%s237 + $0x170] sm:$0xff]
        %v270 = vld [vmem:[%s237 + $0x1] sm:$0xff]
        %v271 = vld [vmem:[%s237 + $0x9] sm:$0xff]
        %v272 = vld [vmem:[%s237 + $0x19] sm:$0xff]
        %v273 = vld [vmem:[%s237 + $0x21] sm:$0xff]
        %v274 = vld [vmem:[%s237 + $0x31] sm:$0xff]
        %v275 = vld [vmem:[%s237 + $0x39] sm:$0xff]
        %v276 = vld [vmem:[%s237 + $0x49] sm:$0xff]
        %v277 = vld [vmem:[%s237 + $0x51] sm:$0xff]
        %v278 = vld [vmem:[%s237 + $0x61] sm:$0xff]
        %v279 = vld [vmem:[%s237 + $0x69] sm:$0xff]
        %v280 = vld [vmem:[%s237 + $0x79] sm:$0xff]
        %v281 = vld [vmem:[%s237 + $0x81] sm:$0xff]
        %v282 = vld [vmem:[%s237 + $0x91] sm:$0xff]
        %v283 = vld [vmem:[%s237 + $0x99] sm:$0xff]
        %v284 = vld [vmem:[%s237 + $0xa9] sm:$0xff]
        %v285 = vld [vmem:[%s237 + $0xb1] sm:$0xff]
        %v286 = vld [vmem:[%s237 + $0xc1] sm:$0xff]
        %v287 = vld [vmem:[%s237 + $0xc9] sm:$0xff]
        %v288 = vld [vmem:[%s237 + $0xd9] sm:$0xff]
        %v289 = vld [vmem:[%s237 + $0xe1] sm:$0xff]
        %v290 = vld [vmem:[%s237 + $0xf1] sm:$0xff]
        %v291 = vld [vmem:[%s237 + $0xf9] sm:$0xff]
        %v292 = vld [vmem:[%s237 + $0x109] sm:$0xff]
        %v293 = vld [vmem:[%s237 + $0x111] sm:$0xff]
        %v294 = vld [vmem:[%s237 + $0x121] sm:$0xff]
        %v295 = vld [vmem:[%s237 + $0x129] sm:$0xff]
        %v296 = vld [vmem:[%s237 + $0x139] sm:$0xff]
        %v297 = vld [vmem:[%s237 + $0x141] sm:$0xff]
        %v298 = vld [vmem:[%s237 + $0x151] sm:$0xff]
        %v299 = vld [vmem:[%s237 + $0x159] sm:$0xff]
        %v300 = vld [vmem:[%s237 + $0x169] sm:$0xff]
        %v301 = vld [vmem:[%s237 + $0x171] sm:$0xff]
        %v302 = vld [vmem:[%s237 + $0x2] sm:$0xff]
        %v303 = vld [vmem:[%s237 + $0xa] sm:$0xff]
        %v304 = vld [vmem:[%s237 + $0x1a] sm:$0xff]
        %v305 = vld [vmem:[%s237 + $0x22] sm:$0xff]
        %v306 = vld [vmem:[%s237 + $0x32] sm:$0xff]
        %v307 = vld [vmem:[%s237 + $0x3a] sm:$0xff]
        %v308 = vld [vmem:[%s237 + $0x4a] sm:$0xff]
        %v309 = vld [vmem:[%s237 + $0x52] sm:$0xff]
        %v310 = vld [vmem:[%s237 + $0x62] sm:$0xff]
        %v311 = vld [vmem:[%s237 + $0x6a] sm:$0xff]
        %v312 = vld [vmem:[%s237 + $0x7a] sm:$0xff]
        %v313 = vld [vmem:[%s237 + $0x82] sm:$0xff]
        %v314 = vld [vmem:[%s237 + $0x92] sm:$0xff]
        %v315 = vld [vmem:[%s237 + $0x9a] sm:$0xff]
        %v316 = vld [vmem:[%s237 + $0xaa] sm:$0xff]
        %v317 = vld [vmem:[%s237 + $0xb2] sm:$0xff]
        %v318 = vld [vmem:[%s237 + $0xc2] sm:$0xff]
        %v319 = vld [vmem:[%s237 + $0xca] sm:$0xff]
        %v320 = vld [vmem:[%s237 + $0xda] sm:$0xff]
        %v321 = vld [vmem:[%s237 + $0xe2] sm:$0xff]
        %v322 = vld [vmem:[%s237 + $0xf2] sm:$0xff]
        %v323 = vld [vmem:[%s237 + $0xfa] sm:$0xff]
        %v324 = vld [vmem:[%s237 + $0x10a] sm:$0xff]
        %v325 = vld [vmem:[%s237 + $0x112] sm:$0xff]
        %v326 = vld [vmem:[%s237 + $0x122] sm:$0xff]
        %v327 = vld [vmem:[%s237 + $0x12a] sm:$0xff]
        %v328 = vld [vmem:[%s237 + $0x13a] sm:$0xff]
        %v329 = vld [vmem:[%s237 + $0x142] sm:$0xff]
        %v330 = vld [vmem:[%s237 + $0x152] sm:$0xff]
        %v331 = vld [vmem:[%s237 + $0x15a] sm:$0xff]
        %v332 = vld [vmem:[%s237 + $0x16a] sm:$0xff]
        %v333 = vld [vmem:[%s237 + $0x172] sm:$0xff]
        %s334 = scalar_lea.vmem %s237, 24
        %v335 = vld [vmem:[%s334] sm:$0xff]
        %v336 = vld [vmem:[%s334 + $0x8] sm:$0xff]
        %v337 = vld [vmem:[%s334 + $0x18] sm:$0xff]
        %v338 = vld [vmem:[%s334 + $0x20] sm:$0xff]
        %v339 = vld [vmem:[%s334 + $0x30] sm:$0xff]
        %v340 = vld [vmem:[%s334 + $0x38] sm:$0xff]
        %v341 = vld [vmem:[%s334 + $0x48] sm:$0xff]
        %v342 = vld [vmem:[%s334 + $0x50] sm:$0xff]
        %v343 = vld [vmem:[%s334 + $0x60] sm:$0xff]
        %v344 = vld [vmem:[%s334 + $0x68] sm:$0xff]
        %v345 = vld [vmem:[%s334 + $0x78] sm:$0xff]
        %v346 = vld [vmem:[%s334 + $0x80] sm:$0xff]
        %v347 = vld [vmem:[%s334 + $0x90] sm:$0xff]
        %v348 = vld [vmem:[%s334 + $0x98] sm:$0xff]
        %v349 = vld [vmem:[%s334 + $0xa8] sm:$0xff]
        %v350 = vld [vmem:[%s334 + $0xb0] sm:$0xff]
        %v351 = vld [vmem:[%s334 + $0xc0] sm:$0xff]
        %v352 = vld [vmem:[%s334 + $0xc8] sm:$0xff]
        %v353 = vld [vmem:[%s334 + $0xd8] sm:$0xff]
        %v354 = vld [vmem:[%s334 + $0xe0] sm:$0xff]
        %v355 = vld [vmem:[%s334 + $0xf0] sm:$0xff]
        %v356 = vld [vmem:[%s334 + $0xf8] sm:$0xff]
        %v357 = vld [vmem:[%s334 + $0x108] sm:$0xff]
        %v358 = vld [vmem:[%s334 + $0x110] sm:$0xff]
        %v359 = vld [vmem:[%s334 + $0x120] sm:$0xff]
        %v360 = vld [vmem:[%s334 + $0x128] sm:$0xff]
        %v361 = vld [vmem:[%s334 + $0x138] sm:$0xff]
        %v362 = vld [vmem:[%s334 + $0x140] sm:$0xff]
        %v363 = vld [vmem:[%s334 + $0x150] sm:$0xff]
        %v364 = vld [vmem:[%s334 + $0x158] sm:$0xff]
        %v365 = vld [vmem:[%s334 + $0x168] sm:$0xff]
        %v366 = vld [vmem:[%s334 + $0x170] sm:$0xff]
        %v367 = vld [vmem:[%s334 + $0x1] sm:$0xff]
        %v368 = vld [vmem:[%s334 + $0x9] sm:$0xff]
        %v369 = vld [vmem:[%s334 + $0x19] sm:$0xff]
        %v370 = vld [vmem:[%s334 + $0x21] sm:$0xff]
        %v371 = vld [vmem:[%s334 + $0x31] sm:$0xff]
        %v372 = vld [vmem:[%s334 + $0x39] sm:$0xff]
        %v373 = vld [vmem:[%s334 + $0x49] sm:$0xff]
        %v374 = vld [vmem:[%s334 + $0x51] sm:$0xff]
        %v375 = vld [vmem:[%s334 + $0x61] sm:$0xff]
        %v376 = vld [vmem:[%s334 + $0x69] sm:$0xff]
        %v377 = vld [vmem:[%s334 + $0x79] sm:$0xff]
        %v378 = vld [vmem:[%s334 + $0x81] sm:$0xff]
        %v379 = vld [vmem:[%s334 + $0x91] sm:$0xff]
        %v380 = vld [vmem:[%s334 + $0x99] sm:$0xff]
        %v381 = vld [vmem:[%s334 + $0xa9] sm:$0xff]
        %v382 = vld [vmem:[%s334 + $0xb1] sm:$0xff]
        %v383 = vld [vmem:[%s334 + $0xc1] sm:$0xff]
        %v384 = vld [vmem:[%s334 + $0xc9] sm:$0xff]
        %v385 = vld [vmem:[%s334 + $0xd9] sm:$0xff]
        %v386 = vld [vmem:[%s334 + $0xe1] sm:$0xff]
        %v387 = vld [vmem:[%s334 + $0xf1] sm:$0xff]
        %v388 = vld [vmem:[%s334 + $0xf9] sm:$0xff]
        %v389 = vld [vmem:[%s334 + $0x109] sm:$0xff]
        %v390 = vld [vmem:[%s334 + $0x111] sm:$0xff]
        %v391 = vld [vmem:[%s334 + $0x121] sm:$0xff]
        %v392 = vld [vmem:[%s334 + $0x129] sm:$0xff]
        %v393 = vld [vmem:[%s334 + $0x139] sm:$0xff]
        %v394 = vld [vmem:[%s334 + $0x141] sm:$0xff]
        %v395 = vld [vmem:[%s334 + $0x151] sm:$0xff]
        %v396 = vld [vmem:[%s334 + $0x159] sm:$0xff]
        %v397 = vld [vmem:[%s334 + $0x169] sm:$0xff]
        %v398 = vld [vmem:[%s334 + $0x171] sm:$0xff]
        %v399 = vld [vmem:[%s334 + $0x2] sm:$0xff]
        %v400 = vld [vmem:[%s334 + $0xa] sm:$0xff]
        %v401 = vld [vmem:[%s334 + $0x1a] sm:$0xff]
        %v402 = vld [vmem:[%s334 + $0x22] sm:$0xff]
        %v403 = vld [vmem:[%s334 + $0x32] sm:$0xff]
        %v404 = vld [vmem:[%s334 + $0x3a] sm:$0xff]
        %v405 = vld [vmem:[%s334 + $0x4a] sm:$0xff]
        %v406 = vld [vmem:[%s334 + $0x52] sm:$0xff]
        %v407 = vld [vmem:[%s334 + $0x62] sm:$0xff]
        %v408 = vld [vmem:[%s334 + $0x6a] sm:$0xff]
        %v409 = vld [vmem:[%s334 + $0x7a] sm:$0xff]
        %v410 = vld [vmem:[%s334 + $0x82] sm:$0xff]
        %v411 = vld [vmem:[%s334 + $0x92] sm:$0xff]
        %v412 = vld [vmem:[%s334 + $0x9a] sm:$0xff]
        %v413 = vld [vmem:[%s334 + $0xaa] sm:$0xff]
        %v414 = vld [vmem:[%s334 + $0xb2] sm:$0xff]
        %v415 = vld [vmem:[%s334 + $0xc2] sm:$0xff]
        %v416 = vld [vmem:[%s334 + $0xca] sm:$0xff]
        %v417 = vld [vmem:[%s334 + $0xda] sm:$0xff]
        %v418 = vld [vmem:[%s334 + $0xe2] sm:$0xff]
        %v419 = vld [vmem:[%s334 + $0xf2] sm:$0xff]
        %v420 = vld [vmem:[%s334 + $0xfa] sm:$0xff]
        %v421 = vld [vmem:[%s334 + $0x10a] sm:$0xff]
        %v422 = vld [vmem:[%s334 + $0x112] sm:$0xff]
        %v423 = vld [vmem:[%s334 + $0x122] sm:$0xff]
        %v424 = vld [vmem:[%s334 + $0x12a] sm:$0xff]
        %v425 = vld [vmem:[%s334 + $0x13a] sm:$0xff]
        %v426 = vld [vmem:[%s334 + $0x142] sm:$0xff]
        %v427 = vld [vmem:[%s334 + $0x152] sm:$0xff]
        %v428 = vld [vmem:[%s334 + $0x15a] sm:$0xff]
        %v429 = vld [vmem:[%s334 + $0x16a] sm:$0xff]
        %v430 = vld [vmem:[%s334 + $0x172] sm:$0xff]
        %s431 = scalar_lea.vmem %s237, 48
        %v432 = vld [vmem:[%s431] sm:$0xff]
        %v433 = vld [vmem:[%s431 + $0x8] sm:$0xff]
        %v434 = vld [vmem:[%s431 + $0x18] sm:$0xff]
        %v435 = vld [vmem:[%s431 + $0x20] sm:$0xff]
        %v436 = vld [vmem:[%s431 + $0x30] sm:$0xff]
        %v437 = vld [vmem:[%s431 + $0x38] sm:$0xff]
        %v438 = vld [vmem:[%s431 + $0x48] sm:$0xff]
        %v439 = vld [vmem:[%s431 + $0x50] sm:$0xff]
        %v440 = vld [vmem:[%s431 + $0x60] sm:$0xff]
        %v441 = vld [vmem:[%s431 + $0x68] sm:$0xff]
        %v442 = vld [vmem:[%s431 + $0x78] sm:$0xff]
        %v443 = vld [vmem:[%s431 + $0x80] sm:$0xff]
        %v444 = vld [vmem:[%s431 + $0x90] sm:$0xff]
        %v445 = vld [vmem:[%s431 + $0x98] sm:$0xff]
        %v446 = vld [vmem:[%s431 + $0xa8] sm:$0xff]
        %v447 = vld [vmem:[%s431 + $0xb0] sm:$0xff]
        %v448 = vld [vmem:[%s431 + $0xc0] sm:$0xff]
        %v449 = vld [vmem:[%s431 + $0xc8] sm:$0xff]
        %v450 = vld [vmem:[%s431 + $0xd8] sm:$0xff]
        %v451 = vld [vmem:[%s431 + $0xe0] sm:$0xff]
        %v452 = vld [vmem:[%s431 + $0xf0] sm:$0xff]
        %v453 = vld [vmem:[%s431 + $0xf8] sm:$0xff]
        %v454 = vld [vmem:[%s431 + $0x108] sm:$0xff]
        %v455 = vld [vmem:[%s431 + $0x110] sm:$0xff]
        %v456 = vld [vmem:[%s431 + $0x120] sm:$0xff]
        %v457 = vld [vmem:[%s431 + $0x128] sm:$0xff]
        %v458 = vld [vmem:[%s431 + $0x138] sm:$0xff]
        %v459 = vld [vmem:[%s431 + $0x140] sm:$0xff]
        %v460 = vld [vmem:[%s431 + $0x150] sm:$0xff]
        %v461 = vld [vmem:[%s431 + $0x158] sm:$0xff]
        %v462 = vld [vmem:[%s431 + $0x168] sm:$0xff]
        %v463 = vld [vmem:[%s431 + $0x170] sm:$0xff]
        %v464 = vld [vmem:[%s431 + $0x1] sm:$0xff]
        %v465 = vld [vmem:[%s431 + $0x9] sm:$0xff]
        %v466 = vld [vmem:[%s431 + $0x19] sm:$0xff]
        %v467 = vld [vmem:[%s431 + $0x21] sm:$0xff]
        %v468 = vld [vmem:[%s431 + $0x31] sm:$0xff]
        %v469 = vld [vmem:[%s431 + $0x39] sm:$0xff]
        %v470 = vld [vmem:[%s431 + $0x49] sm:$0xff]
        %v471 = vld [vmem:[%s431 + $0x51] sm:$0xff]
        %v472 = vld [vmem:[%s431 + $0x61] sm:$0xff]
        %v473 = vld [vmem:[%s431 + $0x69] sm:$0xff]
        %v474 = vld [vmem:[%s431 + $0x79] sm:$0xff]
        %v475 = vld [vmem:[%s431 + $0x81] sm:$0xff]
        %v476 = vld [vmem:[%s431 + $0x91] sm:$0xff]
        %v477 = vld [vmem:[%s431 + $0x99] sm:$0xff]
        %v478 = vld [vmem:[%s431 + $0xa9] sm:$0xff]
        %v479 = vld [vmem:[%s431 + $0xb1] sm:$0xff]
        %v480 = vld [vmem:[%s431 + $0xc1] sm:$0xff]
        %v481 = vld [vmem:[%s431 + $0xc9] sm:$0xff]
        %v482 = vld [vmem:[%s431 + $0xd9] sm:$0xff]
        %v483 = vld [vmem:[%s431 + $0xe1] sm:$0xff]
        %v484 = vld [vmem:[%s431 + $0xf1] sm:$0xff]
        %v485 = vld [vmem:[%s431 + $0xf9] sm:$0xff]
        %v486 = vld [vmem:[%s431 + $0x109] sm:$0xff]
        %v487 = vld [vmem:[%s431 + $0x111] sm:$0xff]
        %v488 = vld [vmem:[%s431 + $0x121] sm:$0xff]
        %v489 = vld [vmem:[%s431 + $0x129] sm:$0xff]
        %v490 = vld [vmem:[%s431 + $0x139] sm:$0xff]
        %v491 = vld [vmem:[%s431 + $0x141] sm:$0xff]
        %v492 = vld [vmem:[%s431 + $0x151] sm:$0xff]
        %v493 = vld [vmem:[%s431 + $0x159] sm:$0xff]
        %v494 = vld [vmem:[%s431 + $0x169] sm:$0xff]
        %v495 = vld [vmem:[%s431 + $0x171] sm:$0xff]
        %v496 = vld [vmem:[%s431 + $0x2] sm:$0xff]
        %v497 = vld [vmem:[%s431 + $0xa] sm:$0xff]
        %v498 = vld [vmem:[%s431 + $0x1a] sm:$0xff]
        %v499 = vld [vmem:[%s431 + $0x22] sm:$0xff]
        %v500 = vld [vmem:[%s431 + $0x32] sm:$0xff]
        %v501 = vld [vmem:[%s431 + $0x3a] sm:$0xff]
        %v502 = vld [vmem:[%s431 + $0x4a] sm:$0xff]
        %v503 = vld [vmem:[%s431 + $0x52] sm:$0xff]
        %v504 = vld [vmem:[%s431 + $0x62] sm:$0xff]
        %v505 = vld [vmem:[%s431 + $0x6a] sm:$0xff]
        %v506 = vld [vmem:[%s431 + $0x7a] sm:$0xff]
        %v507 = vld [vmem:[%s431 + $0x82] sm:$0xff]
        %v508 = vld [vmem:[%s431 + $0x92] sm:$0xff]
        %v509 = vld [vmem:[%s431 + $0x9a] sm:$0xff]
        %v510 = vld [vmem:[%s431 + $0xaa] sm:$0xff]
        %v511 = vld [vmem:[%s431 + $0xb2] sm:$0xff]
        %v512 = vld [vmem:[%s431 + $0xc2] sm:$0xff]
        %v513 = vld [vmem:[%s431 + $0xca] sm:$0xff]
        %v514 = vld [vmem:[%s431 + $0xda] sm:$0xff]
        %v515 = vld [vmem:[%s431 + $0xe2] sm:$0xff]
        %v516 = vld [vmem:[%s431 + $0xf2] sm:$0xff]
        %v517 = vld [vmem:[%s431 + $0xfa] sm:$0xff]
        %v518 = vld [vmem:[%s431 + $0x10a] sm:$0xff]
        %v519 = vld [vmem:[%s431 + $0x112] sm:$0xff]
        %v520 = vld [vmem:[%s431 + $0x122] sm:$0xff]
        %v521 = vld [vmem:[%s431 + $0x12a] sm:$0xff]
        %v522 = vld [vmem:[%s431 + $0x13a] sm:$0xff]
        %v523 = vld [vmem:[%s431 + $0x142] sm:$0xff]
        %v524 = vld [vmem:[%s431 + $0x152] sm:$0xff]
        %v525 = vld [vmem:[%s431 + $0x15a] sm:$0xff]
        %v526 = vld [vmem:[%s431 + $0x16a] sm:$0xff]
        %v527 = vld [vmem:[%s431 + $0x172] sm:$0xff]
        %v528 = vld [vmem:[%s1] sm:$0xff]
        %v529 = vld [vmem:[%s1 + $0x8] sm:$0xff]
        %v530 = vld [vmem:[%s1 + $0x10] sm:$0xff]
        %v531 = vld [vmem:[%s1 + $0x18] sm:$0xff]
        %v532 = vld [vmem:[%s1 + $0x20] sm:$0xff]
        %v533 = vld [vmem:[%s1 + $0x28] sm:$0xff]
        %v534 = vld [vmem:[%s1 + $0x30] sm:$0xff]
        %v535 = vld [vmem:[%s1 + $0x38] sm:$0xff]
        %v536 = vld [vmem:[%s1 + $0x40] sm:$0xff]
        %v537 = vld [vmem:[%s1 + $0x48] sm:$0xff]
        %v538 = vld [vmem:[%s1 + $0x50] sm:$0xff]
        %v539 = vld [vmem:[%s1 + $0x58] sm:$0xff]
        %v540 = vld [vmem:[%s1 + $0x60] sm:$0xff]
        %v541 = vld [vmem:[%s1 + $0x68] sm:$0xff]
        %v542 = vld [vmem:[%s1 + $0x70] sm:$0xff]
        %v543 = vld [vmem:[%s1 + $0x78] sm:$0xff]
        %v544 = vld [vmem:[%s1 + $0x80] sm:$0xff]
        %v545 = vld [vmem:[%s1 + $0x88] sm:$0xff]
        %v546 = vld [vmem:[%s1 + $0x90] sm:$0xff]
        %v547 = vld [vmem:[%s1 + $0x98] sm:$0xff]
        %v548 = vld [vmem:[%s1 + $0xa0] sm:$0xff]
        %v549 = vld [vmem:[%s1 + $0xa8] sm:$0xff]
        %v550 = vld [vmem:[%s1 + $0xb0] sm:$0xff]
        %v551 = vld [vmem:[%s1 + $0xb8] sm:$0xff]
        %v552 = vld [vmem:[%s1 + $0xc0] sm:$0xff]
        %v553 = vld [vmem:[%s1 + $0xc8] sm:$0xff]
        %v554 = vld [vmem:[%s1 + $0xd0] sm:$0xff]
        %v555 = vld [vmem:[%s1 + $0xd8] sm:$0xff]
        %v556 = vld [vmem:[%s1 + $0xe0] sm:$0xff]
        %v557 = vld [vmem:[%s1 + $0xe8] sm:$0xff]
        %v558 = vld [vmem:[%s1 + $0xf0] sm:$0xff]
        %v559 = vld [vmem:[%s1 + $0xf8] sm:$0xff]
        %v560 = vld [vmem:[%s1 + $0x100] sm:$0xff]
        %v561 = vld [vmem:[%s1 + $0x108] sm:$0xff]
        %v562 = vld [vmem:[%s1 + $0x110] sm:$0xff]
        %v563 = vld [vmem:[%s1 + $0x118] sm:$0xff]
        %v564 = vld [vmem:[%s1 + $0x120] sm:$0xff]
        %v565 = vld [vmem:[%s1 + $0x128] sm:$0xff]
        %v566 = vld [vmem:[%s1 + $0x130] sm:$0xff]
        %v567 = vld [vmem:[%s1 + $0x138] sm:$0xff]
        %v568 = vld [vmem:[%s1 + $0x140] sm:$0xff]
        %v569 = vld [vmem:[%s1 + $0x148] sm:$0xff]
        %v570 = vld [vmem:[%s1 + $0x150] sm:$0xff]
        %v571 = vld [vmem:[%s1 + $0x158] sm:$0xff]
        %v572 = vld [vmem:[%s1 + $0x160] sm:$0xff]
        %v573 = vld [vmem:[%s1 + $0x168] sm:$0xff]
        %v574 = vld [vmem:[%s1 + $0x170] sm:$0xff]
        %v575 = vld [vmem:[%s1 + $0x178] sm:$0xff]
        %v576 = vld [vmem:[%s1 + $0x180] sm:$0xff]
        %v577 = vld [vmem:[%s1 + $0x188] sm:$0xff]
        %v578 = vld [vmem:[%s1 + $0x190] sm:$0xff]
        %v579 = vld [vmem:[%s1 + $0x198] sm:$0xff]
        %v580 = vld [vmem:[%s1 + $0x1a0] sm:$0xff]
        %v581 = vld [vmem:[%s1 + $0x1a8] sm:$0xff]
        %v582 = vld [vmem:[%s1 + $0x1b0] sm:$0xff]
        %v583 = vld [vmem:[%s1 + $0x1b8] sm:$0xff]
        %v584 = vld [vmem:[%s1 + $0x1c0] sm:$0xff]
        %v585 = vld [vmem:[%s1 + $0x1c8] sm:$0xff]
        %v586 = vld [vmem:[%s1 + $0x1d0] sm:$0xff]
        %v587 = vld [vmem:[%s1 + $0x1d8] sm:$0xff]
        %v588 = vld [vmem:[%s1 + $0x1e0] sm:$0xff]
        %v589 = vld [vmem:[%s1 + $0x1e8] sm:$0xff]
        %v590 = vld [vmem:[%s1 + $0x1f0] sm:$0xff]
        %v591 = vld [vmem:[%s1 + $0x1f8] sm:$0xff]
        %v592 = vld [vmem:[%s1 + $0x200] sm:$0xff]
        %v593 = vld [vmem:[%s1 + $0x208] sm:$0xff]
        %v594 = vld [vmem:[%s1 + $0x210] sm:$0xff]
        %v595 = vld [vmem:[%s1 + $0x218] sm:$0xff]
        %v596 = vld [vmem:[%s1 + $0x220] sm:$0xff]
        %v597 = vld [vmem:[%s1 + $0x228] sm:$0xff]
        %v598 = vld [vmem:[%s1 + $0x230] sm:$0xff]
        %v599 = vld [vmem:[%s1 + $0x238] sm:$0xff]
        %v600 = vld [vmem:[%s1 + $0x240] sm:$0xff]
        %v601 = vld [vmem:[%s1 + $0x248] sm:$0xff]
        %v602 = vld [vmem:[%s1 + $0x250] sm:$0xff]
        %v603 = vld [vmem:[%s1 + $0x258] sm:$0xff]
        %v604 = vld [vmem:[%s1 + $0x260] sm:$0xff]
        %v605 = vld [vmem:[%s1 + $0x268] sm:$0xff]
        %v606 = vld [vmem:[%s1 + $0x270] sm:$0xff]
        %v607 = vld [vmem:[%s1 + $0x278] sm:$0xff]
        %v608 = vld [vmem:[%s1 + $0x280] sm:$0xff]
        %v609 = vld [vmem:[%s1 + $0x288] sm:$0xff]
        %v610 = vld [vmem:[%s1 + $0x290] sm:$0xff]
        %v611 = vld [vmem:[%s1 + $0x298] sm:$0xff]
        %v612 = vld [vmem:[%s1 + $0x2a0] sm:$0xff]
        %v613 = vld [vmem:[%s1 + $0x2a8] sm:$0xff]
        %v614 = vld [vmem:[%s1 + $0x2b0] sm:$0xff]
        %v615 = vld [vmem:[%s1 + $0x2b8] sm:$0xff]
        %v616 = vld [vmem:[%s1 + $0x2c0] sm:$0xff]
        %v617 = vld [vmem:[%s1 + $0x2c8] sm:$0xff]
        %v618 = vld [vmem:[%s1 + $0x2d0] sm:$0xff]
        %v619 = vld [vmem:[%s1 + $0x2d8] sm:$0xff]
        %v620 = vld [vmem:[%s1 + $0x2e0] sm:$0xff]
        %v621 = vld [vmem:[%s1 + $0x2e8] sm:$0xff]
        %v622 = vld [vmem:[%s1 + $0x2f0] sm:$0xff]
        %v623 = vld [vmem:[%s1 + $0x2f8] sm:$0xff]
        %v624 = vld [vmem:[%s1 + $0x300] sm:$0xff]
        %v625 = vld [vmem:[%s1 + $0x308] sm:$0xff]
        %v626 = vld [vmem:[%s1 + $0x310] sm:$0xff]
        %v627 = vld [vmem:[%s1 + $0x318] sm:$0xff]
        %v628 = vld [vmem:[%s1 + $0x320] sm:$0xff]
        %v629 = vld [vmem:[%s1 + $0x328] sm:$0xff]
        %v630 = vld [vmem:[%s1 + $0x330] sm:$0xff]
        %v631 = vld [vmem:[%s1 + $0x338] sm:$0xff]
        %v632 = vld [vmem:[%s1 + $0x340] sm:$0xff]
        %v633 = vld [vmem:[%s1 + $0x348] sm:$0xff]
        %v634 = vld [vmem:[%s1 + $0x350] sm:$0xff]
        %v635 = vld [vmem:[%s1 + $0x358] sm:$0xff]
        %v636 = vld [vmem:[%s1 + $0x360] sm:$0xff]
        %v637 = vld [vmem:[%s1 + $0x368] sm:$0xff]
        %v638 = vld [vmem:[%s1 + $0x370] sm:$0xff]
        %v639 = vld [vmem:[%s1 + $0x378] sm:$0xff]
        %v640 = vld [vmem:[%s1 + $0x380] sm:$0xff]
        %v641 = vld [vmem:[%s1 + $0x388] sm:$0xff]
        %v642 = vld [vmem:[%s1 + $0x390] sm:$0xff]
        %v643 = vld [vmem:[%s1 + $0x398] sm:$0xff]
        %v644 = vld [vmem:[%s1 + $0x3a0] sm:$0xff]
        %v645 = vld [vmem:[%s1 + $0x3a8] sm:$0xff]
        %v646 = vld [vmem:[%s1 + $0x3b0] sm:$0xff]
        %v647 = vld [vmem:[%s1 + $0x3b8] sm:$0xff]
        %v648 = vld [vmem:[%s1 + $0x3c0] sm:$0xff]
        %v649 = vld [vmem:[%s1 + $0x3c8] sm:$0xff]
        %v650 = vld [vmem:[%s1 + $0x3d0] sm:$0xff]
        %v651 = vld [vmem:[%s1 + $0x3d8] sm:$0xff]
        %v652 = vld [vmem:[%s1 + $0x3e0] sm:$0xff]
        %v653 = vld [vmem:[%s1 + $0x3e8] sm:$0xff]
        %v654 = vld [vmem:[%s1 + $0x3f0] sm:$0xff]
        %v655 = vld [vmem:[%s1 + $0x3f8] sm:$0xff]
        %v656 = vld [vmem:[%s1 + $0x400] sm:$0xff]
        %v657 = vld [vmem:[%s1 + $0x408] sm:$0xff]
        %v658 = vld [vmem:[%s1 + $0x410] sm:$0xff]
        %v659 = vld [vmem:[%s1 + $0x418] sm:$0xff]
        %v660 = vld [vmem:[%s1 + $0x420] sm:$0xff]
        %v661 = vld [vmem:[%s1 + $0x428] sm:$0xff]
        %v662 = vld [vmem:[%s1 + $0x430] sm:$0xff]
        %v663 = vld [vmem:[%s1 + $0x438] sm:$0xff]
        %v664 = vld [vmem:[%s1 + $0x440] sm:$0xff]
        %v665 = vld [vmem:[%s1 + $0x448] sm:$0xff]
        %v666 = vld [vmem:[%s1 + $0x450] sm:$0xff]
        %v667 = vld [vmem:[%s1 + $0x458] sm:$0xff]
        %v668 = vld [vmem:[%s1 + $0x460] sm:$0xff]
        %v669 = vld [vmem:[%s1 + $0x468] sm:$0xff]
        %v670 = vld [vmem:[%s1 + $0x470] sm:$0xff]
        %v671 = vld [vmem:[%s1 + $0x478] sm:$0xff]
        %v672 = vld [vmem:[%s2] sm:$0x1]
        %v674 = vlaneseq
        %v675 = vshrl.u32 %v674, 7
        %v676 = vsub.s32 0, %v675
        %v677 = vrot.slane %v672, %v676
        %679 = vmatprep.subr.mxu0 0.0
        %680 = vmatpush1.msra.mxu0 %v528
        %681 = vmatprep.subr.mxu0 0.0
        %682 = vmatpush1.msra.mxu0 %v529
        %683 = vmatprep.subr.mxu0 0.0
        %684 = vmatpush1.msra.mxu0 %v530
        %685 = vmatprep.subr.mxu0 0.0
        %686 = vmatpush1.msra.mxu0 %v531
        %687 = vmatprep.subr.mxu0 0.0
        %688 = vmatpush1.msra.mxu0 %v532
        %689 = vmatprep.subr.mxu0 0.0
        %690 = vmatpush1.msra.mxu0 %v533
        %691 = vmatprep.subr.mxu0 0.0
        %692 = vmatpush1.msra.mxu0 %v534
        %693 = vmatprep.subr.mxu0 0.0
        %694 = vmatpush1.msra.mxu0 %v535
        %695 = vmatprep.subr.mxu0 0.0
        %696 = vmatpush1.msra.mxu0 %v536
        %697 = vmatprep.subr.mxu0 0.0
        %698 = vmatpush1.msra.mxu0 %v537
        %699 = vmatprep.subr.mxu0 0.0
        %700 = vmatpush1.msra.mxu0 %v538
        %701 = vmatprep.subr.mxu0 0.0
        %702 = vmatpush1.msra.mxu0 %v539
        %703 = vmatprep.subr.mxu0 0.0
        %704 = vmatpush1.msra.mxu0 %v540
        %705 = vmatprep.subr.mxu0 0.0
        %706 = vmatpush1.msra.mxu0 %v541
        %707 = vmatprep.subr.mxu0 0.0
        %708 = vmatpush1.msra.mxu0 %v542
        %709 = vmatprep.subr.mxu0 0.0
        %710 = vmatpush1.msra.mxu0 %v543
        %711 = vmatprep.subr.mxu0 0.0
        %712 = vmatpush1.msra.mxu0 %v544
        %713 = vmatprep.subr.mxu0 0.0
        %714 = vmatpush1.msra.mxu0 %v545
        %715 = vmatprep.subr.mxu0 0.0
        %716 = vmatpush1.msra.mxu0 %v546
        %717 = vmatprep.subr.mxu0 0.0
        %718 = vmatpush1.msra.mxu0 %v547
        %719 = vmatprep.subr.mxu0 0.0
        %720 = vmatpush1.msra.mxu0 %v548
        %721 = vmatprep.subr.mxu0 0.0
        %722 = vmatpush1.msra.mxu0 %v549
        %723 = vmatprep.subr.mxu0 0.0
        %724 = vmatpush1.msra.mxu0 %v550
        %725 = vmatprep.subr.mxu0 0.0
        %726 = vmatpush1.msra.mxu0 %v551
        %727 = vmatprep.subr.mxu0 0.0
        %728 = vmatpush1.msra.mxu0 %v552
        %729 = vmatprep.subr.mxu0 0.0
        %730 = vmatpush1.msra.mxu0 %v553
        %731 = vmatprep.subr.mxu0 0.0
        %732 = vmatpush1.msra.mxu0 %v554
        %733 = vmatprep.subr.mxu0 0.0
        %734 = vmatpush1.msra.mxu0 %v555
        %735 = vmatprep.subr.mxu0 0.0
        %736 = vmatpush1.msra.mxu0 %v556
        %737 = vmatprep.subr.mxu0 0.0
        %738 = vmatpush1.msra.mxu0 %v557
        %739 = vmatprep.subr.mxu0 0.0
        %740 = vmatpush1.msra.mxu0 %v558
        %741 = vmatprep.subr.mxu0 0.0
        %742 = vmatpush1.msra.mxu0 %v559
        %743 = vmatprep.mubr.f32.mxu0 %v270
        %744 = vmatmul.mubr.f32.gmra.mrb[0].mxu0 %v238
        %v745 = vpop.f32.mrb[0].mxu0
        %v746 = vadd.f32 %v677, %v745
        %v747 = vpop.f32.mrb[0].mxu0
        %748 = vmatprep.mubr.f32.mxu0 %v271
        %749 = vmatmul.mubr.f32.gmra.mrb[0].mxu0 %v239
        %v750 = vpop.f32.mrb[0].mxu0
        %v751 = vadd.f32 %v677, %v750
        %v752 = vpop.f32.mrb[0].mxu0
        %753 = vmatprep.mubr.f32.mxu0 %v272
        %754 = vmatmul.mubr.f32.gmra.mrb[0].mxu0 %v240
        %v755 = vpop.f32.mrb[0].mxu0
        %v756 = vadd.f32 %v677, %v755
        %v757 = vpop.f32.mrb[0].mxu0
        %758 = vmatprep.mubr.f32.mxu0 %v273
        %759 = vmatmul.mubr.f32.gmra.mrb[0].mxu0 %v241
        %v760 = vpop.f32.mrb[0].mxu0
        %v761 = vadd.f32 %v677, %v760
        %v762 = vpop.f32.mrb[0].mxu0
        %763 = vmatprep.mubr.f32.mxu0 %v274
        %764 = vmatmul.mubr.f32.gmra.mrb[0].mxu0 %v242
        %v765 = vpop.f32.mrb[0].mxu0
        %v766 = vadd.f32 %v677, %v765
        %v767 = vpop.f32.mrb[0].mxu0
        %768 = vmatprep.mubr.f32.mxu0 %v275
        %769 = vmatmul.mubr.f32.gmra.mrb[0].mxu0 %v243
        %v770 = vpop.f32.mrb[0].mxu0
        %v771 = vadd.f32 %v677, %v770
        %v772 = vpop.f32.mrb[0].mxu0
        %773 = vmatprep.mubr.f32.mxu0 %v276
        %774 = vmatmul.mubr.f32.gmra.mrb[0].mxu0 %v244
        %v775 = vpop.f32.mrb[0].mxu0
        %v776 = vadd.f32 %v677, %v775
        %v777 = vpop.f32.mrb[0].mxu0
        %778 = vmatprep.mubr.f32.mxu0 %v277
        %779 = vmatmul.mubr.f32.gmra.mrb[0].mxu0 %v245
        %v780 = vpop.f32.mrb[0].mxu0
        %v781 = vadd.f32 %v677, %v780
        %v782 = vpop.f32.mrb[0].mxu0
        %783 = vmatprep.mubr.f32.mxu0 %v278
        %784 = vmatmul.mubr.f32.gmra.mrb[0].mxu0 %v246
        %v785 = vpop.f32.mrb[0].mxu0
        %v786 = vadd.f32 %v677, %v785
        %v787 = vpop.f32.mrb[0].mxu0
        %788 = vmatprep.mubr.f32.mxu0 %v279
        %789 = vmatmul.mubr.f32.gmra.mrb[0].mxu0 %v247
        %v790 = vpop.f32.mrb[0].mxu0
        %v791 = vadd.f32 %v677, %v790
        %v792 = vpop.f32.mrb[0].mxu0
        %793 = vmatprep.mubr.f32.mxu0 %v280
        %794 = vmatmul.mubr.f32.gmra.mrb[0].mxu0 %v248
        %v795 = vpop.f32.mrb[0].mxu0
        %v796 = vadd.f32 %v677, %v795
        %v797 = vpop.f32.mrb[0].mxu0
        %798 = vmatprep.mubr.f32.mxu0 %v281
        %799 = vmatmul.mubr.f32.gmra.mrb[0].mxu0 %v249
        %v800 = vpop.f32.mrb[0].mxu0
        %v801 = vadd.f32 %v677, %v800
        %v802 = vpop.f32.mrb[0].mxu0
        %803 = vmatprep.mubr.f32.mxu0 %v282
        %804 = vmatmul.mubr.f32.gmra.mrb[0].mxu0 %v250
        %v805 = vpop.f32.mrb[0].mxu0
        %v806 = vadd.f32 %v677, %v805
        %v807 = vpop.f32.mrb[0].mxu0
        %808 = vmatprep.mubr.f32.mxu0 %v283
        %809 = vmatmul.mubr.f32.gmra.mrb[0].mxu0 %v251
        %v810 = vpop.f32.mrb[0].mxu0
        %v811 = vadd.f32 %v677, %v810
        %v812 = vpop.f32.mrb[0].mxu0
        %813 = vmatprep.mubr.f32.mxu0 %v284
        %814 = vmatmul.mubr.f32.gmra.mrb[0].mxu0 %v252
        %v815 = vpop.f32.mrb[0].mxu0
        %v816 = vadd.f32 %v677, %v815
        %v817 = vpop.f32.mrb[0].mxu0
        %818 = vmatprep.mubr.f32.mxu0 %v285
        %819 = vmatmul.mubr.f32.gmra.mrb[0].mxu0 %v253
        %v820 = vpop.f32.mrb[0].mxu0
        %v821 = vadd.f32 %v677, %v820
        %v822 = vpop.f32.mrb[0].mxu0
        %823 = vmatprep.mubr.f32.mxu0 %v286
        %824 = vmatmul.mubr.f32.gmra.mrb[0].mxu0 %v254
        %v825 = vpop.f32.mrb[0].mxu0
        %v826 = vadd.f32 %v677, %v825
        %v827 = vpop.f32.mrb[0].mxu0
        %828 = vmatprep.mubr.f32.mxu0 %v287
        %829 = vmatmul.mubr.f32.gmra.mrb[0].mxu0 %v255
        %v830 = vpop.f32.mrb[0].mxu0
        %v831 = vadd.f32 %v677, %v830
        %v832 = vpop.f32.mrb[0].mxu0
        %833 = vmatprep.mubr.f32.mxu0 %v288
        %834 = vmatmul.mubr.f32.gmra.mrb[0].mxu0 %v256
        %v835 = vpop.f32.mrb[0].mxu0
        %v836 = vadd.f32 %v677, %v835
        %v837 = vpop.f32.mrb[0].mxu0
        %838 = vmatprep.mubr.f32.mxu0 %v289
        %839 = vmatmul.mubr.f32.gmra.mrb[0].mxu0 %v257
        %v840 = vpop.f32.mrb[0].mxu0
        %v841 = vadd.f32 %v677, %v840
        %v842 = vpop.f32.mrb[0].mxu0
        %843 = vmatprep.mubr.f32.mxu0 %v290
        %844 = vmatmul.mubr.f32.gmra.mrb[0].mxu0 %v258
        %v845 = vpop.f32.mrb[0].mxu0
        %v846 = vadd.f32 %v677, %v845
        %v847 = vpop.f32.mrb[0].mxu0
        %848 = vmatprep.mubr.f32.mxu0 %v291
        %849 = vmatmul.mubr.f32.gmra.mrb[0].mxu0 %v259
        %v850 = vpop.f32.mrb[0].mxu0
        %v851 = vadd.f32 %v677, %v850
        %v852 = vpop.f32.mrb[0].mxu0
        %853 = vmatprep.mubr.f32.mxu0 %v292
        %854 = vmatmul.mubr.f32.gmra.mrb[0].mxu0 %v260
        %v855 = vpop.f32.mrb[0].mxu0
        %v856 = vadd.f32 %v677, %v855
        %v857 = vpop.f32.mrb[0].mxu0
        %858 = vmatprep.mubr.f32.mxu0 %v293
        %859 = vmatmul.mubr.f32.gmra.mrb[0].mxu0 %v261
        %v860 = vpop.f32.mrb[0].mxu0
        %v861 = vadd.f32 %v677, %v860
        %v862 = vpop.f32.mrb[0].mxu0
        %863 = vmatprep.mubr.f32.mxu0 %v294
        %864 = vmatmul.mubr.f32.gmra.mrb[0].mxu0 %v262
        %v865 = vpop.f32.mrb[0].mxu0
        %v866 = vadd.f32 %v677, %v865
        %v867 = vpop.f32.mrb[0].mxu0
        %868 = vmatprep.mubr.f32.mxu0 %v295
        %869 = vmatmul.mubr.f32.gmra.mrb[0].mxu0 %v263
        %v870 = vpop.f32.mrb[0].mxu0
        %v871 = vadd.f32 %v677, %v870
        %v872 = vpop.f32.mrb[0].mxu0
        %873 = vmatprep.mubr.f32.mxu0 %v296
        %874 = vmatmul.mubr.f32.gmra.mrb[0].mxu0 %v264
        %v875 = vpop.f32.mrb[0].mxu0
        %v876 = vadd.f32 %v677, %v875
        %v877 = vpop.f32.mrb[0].mxu0
        %878 = vmatprep.mubr.f32.mxu0 %v297
        %879 = vmatmul.mubr.f32.gmra.mrb[0].mxu0 %v265
        %v880 = vpop.f32.mrb[0].mxu0
        %v881 = vadd.f32 %v677, %v880
        %v882 = vpop.f32.mrb[0].mxu0
        %883 = vmatprep.mubr.f32.mxu0 %v298
        %884 = vmatmul.mubr.f32.gmra.mrb[0].mxu0 %v266
        %v885 = vpop.f32.mrb[0].mxu0
        %v886 = vadd.f32 %v677, %v885
        %v887 = vpop.f32.mrb[0].mxu0
        %888 = vmatprep.mubr.f32.mxu0 %v299
        %889 = vmatmul.mubr.f32.gmra.mrb[0].mxu0 %v267
        %v890 = vpop.f32.mrb[0].mxu0
        %v891 = vadd.f32 %v677, %v890
        %v892 = vpop.f32.mrb[0].mxu0
        %893 = vmatprep.mubr.f32.mxu0 %v300
        %894 = vmatmul.mubr.f32.gmra.mrb[0].mxu0 %v268
        %v895 = vpop.f32.mrb[0].mxu0
        %v896 = vadd.f32 %v677, %v895
        %v897 = vpop.f32.mrb[0].mxu0
        %898 = vmatprep.mubr.f32.mxu0 %v301
        %899 = vmatmul.mubr.f32.gmra.mrb[0].mxu0 %v269
        %v900 = vpop.f32.mrb[0].mxu0
        %v901 = vadd.f32 %v677, %v900
        %v902 = vpop.f32.mrb[0].mxu0
        %903 = vdwg.mxu0
        %904 = vmatprep.subr.mxu0 0.0
        %905 = vmatpush1.msra.mxu0 %v560
        %906 = vmatprep.subr.mxu0 0.0
        %907 = vmatpush1.msra.mxu0 %v561
        %908 = vmatprep.subr.mxu0 0.0
        %909 = vmatpush1.msra.mxu0 %v562
        %910 = vmatprep.subr.mxu0 0.0
        %911 = vmatpush1.msra.mxu0 %v563
        %912 = vmatprep.subr.mxu0 0.0
        %913 = vmatpush1.msra.mxu0 %v564
        %914 = vmatprep.subr.mxu0 0.0
        %915 = vmatpush1.msra.mxu0 %v565
        %916 = vmatprep.subr.mxu0 0.0
        %917 = vmatpush1.msra.mxu0 %v566
        %918 = vmatprep.subr.mxu0 0.0
        %919 = vmatpush1.msra.mxu0 %v567
        %920 = vmatprep.subr.mxu0 0.0
        %921 = vmatpush1.msra.mxu0 %v568
        %922 = vmatprep.subr.mxu0 0.0
        %923 = vmatpush1.msra.mxu0 %v569
        %924 = vmatprep.subr.mxu0 0.0
        %925 = vmatpush1.msra.mxu0 %v570
        %926 = vmatprep.subr.mxu0 0.0
        %927 = vmatpush1.msra.mxu0 %v571
        %928 = vmatprep.subr.mxu0 0.0
        %929 = vmatpush1.msra.mxu0 %v572
        %930 = vmatprep.subr.mxu0 0.0
        %931 = vmatpush1.msra.mxu0 %v573
        %932 = vmatprep.subr.mxu0 0.0
        %933 = vmatpush1.msra.mxu0 %v574
        %934 = vmatprep.subr.mxu0 0.0
        %935 = vmatpush1.msra.mxu0 %v575
        %936 = vmatprep.subr.mxu0 0.0
        %937 = vmatpush1.msra.mxu0 %v576
        %938 = vmatprep.subr.mxu0 0.0
        %939 = vmatpush1.msra.mxu0 %v577
        %940 = vmatprep.subr.mxu0 0.0
        %941 = vmatpush1.msra.mxu0 %v578
        %942 = vmatprep.subr.mxu0 0.0
        %943 = vmatpush1.msra.mxu0 %v579
        %944 = vmatprep.subr.mxu0 0.0
        %945 = vmatpush1.msra.mxu0 %v580
        %946 = vmatprep.subr.mxu0 0.0
        %947 = vmatpush1.msra.mxu0 %v581
        %948 = vmatprep.subr.mxu0 0.0
        %949 = vmatpush1.msra.mxu0 %v582
        %950 = vmatprep.subr.mxu0 0.0
        %951 = vmatpush1.msra.mxu0 %v583
        %952 = vmatprep.subr.mxu0 0.0
        %953 = vmatpush1.msra.mxu0 %v584
        %954 = vmatprep.subr.mxu0 0.0
        %955 = vmatpush1.msra.mxu0 %v585
        %956 = vmatprep.subr.mxu0 0.0
        %957 = vmatpush1.msra.mxu0 %v586
        %958 = vmatprep.subr.mxu0 0.0
        %959 = vmatpush1.msra.mxu0 %v587
        %960 = vmatprep.subr.mxu0 0.0
        %961 = vmatpush1.msra.mxu0 %v588
        %962 = vmatprep.subr.mxu0 0.0
        %963 = vmatpush1.msra.mxu0 %v589
        %964 = vmatprep.subr.mxu0 0.0
        %965 = vmatpush1.msra.mxu0 %v590
        %966 = vmatprep.subr.mxu0 0.0
        %967 = vmatpush1.msra.mxu0 %v591
        %968 = vmatprep.mubr.f32.mxu0 %v335
        %969 = vmatmul.mubr.f32.gmra.mrb[0].mxu0 %v302
        %v970 = vpop.f32.mrb[0].mxu0
        %v971 = vadd.f32 %v746, %v970
        %v972 = vpop.f32.mrb[0].mxu0
        %973 = vmatprep.mubr.f32.mxu0 %v336
        %974 = vmatmul.mubr.f32.gmra.mrb[0].mxu0 %v303
        %v975 = vpop.f32.mrb[0].mxu0
        %v976 = vadd.f32 %v751, %v975
        %v977 = vpop.f32.mrb[0].mxu0
        %978 = vmatprep.mubr.f32.mxu0 %v337
        %979 = vmatmul.mubr.f32.gmra.mrb[0].mxu0 %v304
        %v980 = vpop.f32.mrb[0].mxu0
        %v981 = vadd.f32 %v756, %v980
        %v982 = vpop.f32.mrb[0].mxu0
        %983 = vmatprep.mubr.f32.mxu0 %v338
        %984 = vmatmul.mubr.f32.gmra.mrb[0].mxu0 %v305
        %v985 = vpop.f32.mrb[0].mxu0
        %v986 = vadd.f32 %v761, %v985
        %v987 = vpop.f32.mrb[0].mxu0
        %988 = vmatprep.mubr.f32.mxu0 %v339
        %989 = vmatmul.mubr.f32.gmra.mrb[0].mxu0 %v306
        %v990 = vpop.f32.mrb[0].mxu0
        %v991 = vadd.f32 %v766, %v990
        %v992 = vpop.f32.mrb[0].mxu0
        %993 = vmatprep.mubr.f32.mxu0 %v340
        %994 = vmatmul.mubr.f32.gmra.mrb[0].mxu0 %v307
        %v995 = vpop.f32.mrb[0].mxu0
        %v996 = vadd.f32 %v771, %v995
        %v997 = vpop.f32.mrb[0].mxu0
        %998 = vmatprep.mubr.f32.mxu0 %v341
        %999 = vmatmul.mubr.f32.gmra.mrb[0].mxu0 %v308
        %v1000 = vpop.f32.mrb[0].mxu0
        %v1001 = vadd.f32 %v776, %v1000
        %v1002 = vpop.f32.mrb[0].mxu0
        %1003 = vmatprep.mubr.f32.mxu0 %v342
        %1004 = vmatmul.mubr.f32.gmra.mrb[0].mxu0 %v309
        %v1005 = vpop.f32.mrb[0].mxu0
        %v1006 = vadd.f32 %v781, %v1005
        %v1007 = vpop.f32.mrb[0].mxu0
        %1008 = vmatprep.mubr.f32.mxu0 %v343
        %1009 = vmatmul.mubr.f32.gmra.mrb[0].mxu0 %v310
        %v1010 = vpop.f32.mrb[0].mxu0
        %v1011 = vadd.f32 %v786, %v1010
        %v1012 = vpop.f32.mrb[0].mxu0
        %1013 = vmatprep.mubr.f32.mxu0 %v344
        %1014 = vmatmul.mubr.f32.gmra.mrb[0].mxu0 %v311
        %v1015 = vpop.f32.mrb[0].mxu0
        %v1016 = vadd.f32 %v791, %v1015
        %v1017 = vpop.f32.mrb[0].mxu0
        %1018 = vmatprep.mubr.f32.mxu0 %v345
        %1019 = vmatmul.mubr.f32.gmra.mrb[0].mxu0 %v312
        %v1020 = vpop.f32.mrb[0].mxu0
        %v1021 = vadd.f32 %v796, %v1020
        %v1022 = vpop.f32.mrb[0].mxu0
        %1023 = vmatprep.mubr.f32.mxu0 %v346
        %1024 = vmatmul.mubr.f32.gmra.mrb[0].mxu0 %v313
        %v1025 = vpop.f32.mrb[0].mxu0
        %v1026 = vadd.f32 %v801, %v1025
        %v1027 = vpop.f32.mrb[0].mxu0
        %1028 = vmatprep.mubr.f32.mxu0 %v347
        %1029 = vmatmul.mubr.f32.gmra.mrb[0].mxu0 %v314
        %v1030 = vpop.f32.mrb[0].mxu0
        %v1031 = vadd.f32 %v806, %v1030
        %v1032 = vpop.f32.mrb[0].mxu0
        %1033 = vmatprep.mubr.f32.mxu0 %v348
        %1034 = vmatmul.mubr.f32.gmra.mrb[0].mxu0 %v315
        %v1035 = vpop.f32.mrb[0].mxu0
        %v1036 = vadd.f32 %v811, %v1035
        %v1037 = vpop.f32.mrb[0].mxu0
        %1038 = vmatprep.mubr.f32.mxu0 %v349
        %1039 = vmatmul.mubr.f32.gmra.mrb[0].mxu0 %v316
        %v1040 = vpop.f32.mrb[0].mxu0
        %v1041 = vadd.f32 %v816, %v1040
        %v1042 = vpop.f32.mrb[0].mxu0
        %1043 = vmatprep.mubr.f32.mxu0 %v350
        %1044 = vmatmul.mubr.f32.gmra.mrb[0].mxu0 %v317
        %v1045 = vpop.f32.mrb[0].mxu0
        %v1046 = vadd.f32 %v821, %v1045
        %v1047 = vpop.f32.mrb[0].mxu0
        %1048 = vmatprep.mubr.f32.mxu0 %v351
        %1049 = vmatmul.mubr.f32.gmra.mrb[0].mxu0 %v318
        %v1050 = vpop.f32.mrb[0].mxu0
        %v1051 = vadd.f32 %v826, %v1050
        %v1052 = vpop.f32.mrb[0].mxu0
        %1053 = vmatprep.mubr.f32.mxu0 %v352
        %1054 = vmatmul.mubr.f32.gmra.mrb[0].mxu0 %v319
        %v1055 = vpop.f32.mrb[0].mxu0
        %v1056 = vadd.f32 %v831, %v1055
        %v1057 = vpop.f32.mrb[0].mxu0
        %1058 = vmatprep.mubr.f32.mxu0 %v353
        %1059 = vmatmul.mubr.f32.gmra.mrb[0].mxu0 %v320
        %v1060 = vpop.f32.mrb[0].mxu0
        %v1061 = vadd.f32 %v836, %v1060
        %v1062 = vpop.f32.mrb[0].mxu0
        %1063 = vmatprep.mubr.f32.mxu0 %v354
        %1064 = vmatmul.mubr.f32.gmra.mrb[0].mxu0 %v321
        %v1065 = vpop.f32.mrb[0].mxu0
        %v1066 = vadd.f32 %v841, %v1065
        %v1067 = vpop.f32.mrb[0].mxu0
        %1068 = vmatprep.mubr.f32.mxu0 %v355
        %1069 = vmatmul.mubr.f32.gmra.mrb[0].mxu0 %v322
        %v1070 = vpop.f32.mrb[0].mxu0
        %v1071 = vadd.f32 %v846, %v1070
        %v1072 = vpop.f32.mrb[0].mxu0
        %1073 = vmatprep.mubr.f32.mxu0 %v356
        %1074 = vmatmul.mubr.f32.gmra.mrb[0].mxu0 %v323
        %v1075 = vpop.f32.mrb[0].mxu0
        %v1076 = vadd.f32 %v851, %v1075
        %v1077 = vpop.f32.mrb[0].mxu0
        %1078 = vmatprep.mubr.f32.mxu0 %v357
        %1079 = vmatmul.mubr.f32.gmra.mrb[0].mxu0 %v324
        %v1080 = vpop.f32.mrb[0].mxu0
        %v1081 = vadd.f32 %v856, %v1080
        %v1082 = vpop.f32.mrb[0].mxu0
        %1083 = vmatprep.mubr.f32.mxu0 %v358
        %1084 = vmatmul.mubr.f32.gmra.mrb[0].mxu0 %v325
        %v1085 = vpop.f32.mrb[0].mxu0
        %v1086 = vadd.f32 %v861, %v1085
        %v1087 = vpop.f32.mrb[0].mxu0
        %1088 = vmatprep.mubr.f32.mxu0 %v359
        %1089 = vmatmul.mubr.f32.gmra.mrb[0].mxu0 %v326
        %v1090 = vpop.f32.mrb[0].mxu0
        %v1091 = vadd.f32 %v866, %v1090
        %v1092 = vpop.f32.mrb[0].mxu0
        %1093 = vmatprep.mubr.f32.mxu0 %v360
        %1094 = vmatmul.mubr.f32.gmra.mrb[0].mxu0 %v327
        %v1095 = vpop.f32.mrb[0].mxu0
        %v1096 = vadd.f32 %v871, %v1095
        %v1097 = vpop.f32.mrb[0].mxu0
        %1098 = vmatprep.mubr.f32.mxu0 %v361
        %1099 = vmatmul.mubr.f32.gmra.mrb[0].mxu0 %v328
        %v1100 = vpop.f32.mrb[0].mxu0
        %v1101 = vadd.f32 %v876, %v1100
        %v1102 = vpop.f32.mrb[0].mxu0
        %1103 = vmatprep.mubr.f32.mxu0 %v362
        %1104 = vmatmul.mubr.f32.gmra.mrb[0].mxu0 %v329
        %v1105 = vpop.f32.mrb[0].mxu0
        %v1106 = vadd.f32 %v881, %v1105
        %v1107 = vpop.f32.mrb[0].mxu0
        %1108 = vmatprep.mubr.f32.mxu0 %v363
        %1109 = vmatmul.mubr.f32.gmra.mrb[0].mxu0 %v330
        %v1110 = vpop.f32.mrb[0].mxu0
        %v1111 = vadd.f32 %v886, %v1110
        %v1112 = vpop.f32.mrb[0].mxu0
        %1113 = vmatprep.mubr.f32.mxu0 %v364
        %1114 = vmatmul.mubr.f32.gmra.mrb[0].mxu0 %v331
        %v1115 = vpop.f32.mrb[0].mxu0
        %v1116 = vadd.f32 %v891, %v1115
        %v1117 = vpop.f32.mrb[0].mxu0
        %1118 = vmatprep.mubr.f32.mxu0 %v365
        %1119 = vmatmul.mubr.f32.gmra.mrb[0].mxu0 %v332
        %v1120 = vpop.f32.mrb[0].mxu0
        %v1121 = vadd.f32 %v896, %v1120
        %v1122 = vpop.f32.mrb[0].mxu0
        %1123 = vmatprep.mubr.f32.mxu0 %v366
        %1124 = vmatmul.mubr.f32.gmra.mrb[0].mxu0 %v333
        %v1125 = vpop.f32.mrb[0].mxu0
        %v1126 = vadd.f32 %v901, %v1125
        %v1127 = vpop.f32.mrb[0].mxu0
        %1128 = vdwg.mxu0
        %1129 = vmatprep.subr.mxu0 0.0
        %1130 = vmatpush1.msra.mxu0 %v592
        %1131 = vmatprep.subr.mxu0 0.0
        %1132 = vmatpush1.msra.mxu0 %v593
        %1133 = vmatprep.subr.mxu0 0.0
        %1134 = vmatpush1.msra.mxu0 %v594
        %1135 = vmatprep.subr.mxu0 0.0
        %1136 = vmatpush1.msra.mxu0 %v595
        %1137 = vmatprep.subr.mxu0 0.0
        %1138 = vmatpush1.msra.mxu0 %v596
        %1139 = vmatprep.subr.mxu0 0.0
        %1140 = vmatpush1.msra.mxu0 %v597
        %1141 = vmatprep.subr.mxu0 0.0
        %1142 = vmatpush1.msra.mxu0 %v598
        %1143 = vmatprep.subr.mxu0 0.0
        %1144 = vmatpush1.msra.mxu0 %v599
        %1145 = vmatprep.subr.mxu0 0.0
        %1146 = vmatpush1.msra.mxu0 %v600
        %1147 = vmatprep.subr.mxu0 0.0
        %1148 = vmatpush1.msra.mxu0 %v601
        %1149 = vmatprep.subr.mxu0 0.0
        %1150 = vmatpush1.msra.mxu0 %v602
        %1151 = vmatprep.subr.mxu0 0.0
        %1152 = vmatpush1.msra.mxu0 %v603
        %1153 = vmatprep.subr.mxu0 0.0
        %1154 = vmatpush1.msra.mxu0 %v604
        %1155 = vmatprep.subr.mxu0 0.0
        %1156 = vmatpush1.msra.mxu0 %v605
        %1157 = vmatprep.subr.mxu0 0.0
        %1158 = vmatpush1.msra.mxu0 %v606
        %1159 = vmatprep.subr.mxu0 0.0
        %1160 = vmatpush1.msra.mxu0 %v607
        %1161 = vmatprep.subr.mxu0 0.0
        %1162 = vmatpush1.msra.mxu0 %v608
        %1163 = vmatprep.subr.mxu0 0.0
        %1164 = vmatpush1.msra.mxu0 %v609
        %1165 = vmatprep.subr.mxu0 0.0
        %1166 = vmatpush1.msra.mxu0 %v610
        %1167 = vmatprep.subr.mxu0 0.0
        %1168 = vmatpush1.msra.mxu0 %v611
        %1169 = vmatprep.subr.mxu0 0.0
        %1170 = vmatpush1.msra.mxu0 %v612
        %1171 = vmatprep.subr.mxu0 0.0
        %1172 = vmatpush1.msra.mxu0 %v613
        %1173 = vmatprep.subr.mxu0 0.0
        %1174 = vmatpush1.msra.mxu0 %v614
        %1175 = vmatprep.subr.mxu0 0.0
        %1176 = vmatpush1.msra.mxu0 %v615
        %1177 = vmatprep.subr.mxu0 0.0
        %1178 = vmatpush1.msra.mxu0 %v616
        %1179 = vmatprep.subr.mxu0 0.0
        %1180 = vmatpush1.msra.mxu0 %v617
        %1181 = vmatprep.subr.mxu0 0.0
        %1182 = vmatpush1.msra.mxu0 %v618
        %1183 = vmatprep.subr.mxu0 0.0
        %1184 = vmatpush1.msra.mxu0 %v619
        %1185 = vmatprep.subr.mxu0 0.0
        %1186 = vmatpush1.msra.mxu0 %v620
        %1187 = vmatprep.subr.mxu0 0.0
        %1188 = vmatpush1.msra.mxu0 %v621
        %1189 = vmatprep.subr.mxu0 0.0
        %1190 = vmatpush1.msra.mxu0 %v622
        %1191 = vmatprep.subr.mxu0 0.0
        %1192 = vmatpush1.msra.mxu0 %v623
        %1193 = vmatprep.mubr.f32.mxu0 %v399
        %1194 = vmatmul.mubr.f32.gmra.mrb[0].mxu0 %v367
        %v1195 = vpop.f32.mrb[0].mxu0
        %v1196 = vadd.f32 %v971, %v1195
        %v1197 = vpop.f32.mrb[0].mxu0
        %1198 = vmatprep.mubr.f32.mxu0 %v400
        %1199 = vmatmul.mubr.f32.gmra.mrb[0].mxu0 %v368
        %v1200 = vpop.f32.mrb[0].mxu0
        %v1201 = vadd.f32 %v976, %v1200
        %v1202 = vpop.f32.mrb[0].mxu0
        %1203 = vmatprep.mubr.f32.mxu0 %v401
        %1204 = vmatmul.mubr.f32.gmra.mrb[0].mxu0 %v369
        %v1205 = vpop.f32.mrb[0].mxu0
        %v1206 = vadd.f32 %v981, %v1205
        %v1207 = vpop.f32.mrb[0].mxu0
        %1208 = vmatprep.mubr.f32.mxu0 %v402
        %1209 = vmatmul.mubr.f32.gmra.mrb[0].mxu0 %v370
        %v1210 = vpop.f32.mrb[0].mxu0
        %v1211 = vadd.f32 %v986, %v1210
        %v1212 = vpop.f32.mrb[0].mxu0
        %1213 = vmatprep.mubr.f32.mxu0 %v403
        %1214 = vmatmul.mubr.f32.gmra.mrb[0].mxu0 %v371
        %v1215 = vpop.f32.mrb[0].mxu0
        %v1216 = vadd.f32 %v991, %v1215
        %v1217 = vpop.f32.mrb[0].mxu0
        %1218 = vmatprep.mubr.f32.mxu0 %v404
        %1219 = vmatmul.mubr.f32.gmra.mrb[0].mxu0 %v372
        %v1220 = vpop.f32.mrb[0].mxu0
        %v1221 = vadd.f32 %v996, %v1220
        %v1222 = vpop.f32.mrb[0].mxu0
        %1223 = vmatprep.mubr.f32.mxu0 %v405
        %1224 = vmatmul.mubr.f32.gmra.mrb[0].mxu0 %v373
        %v1225 = vpop.f32.mrb[0].mxu0
        %v1226 = vadd.f32 %v1001, %v1225
        %v1227 = vpop.f32.mrb[0].mxu0
        %1228 = vmatprep.mubr.f32.mxu0 %v406
        %1229 = vmatmul.mubr.f32.gmra.mrb[0].mxu0 %v374
        %v1230 = vpop.f32.mrb[0].mxu0
        %v1231 = vadd.f32 %v1006, %v1230
        %v1232 = vpop.f32.mrb[0].mxu0
        %1233 = vmatprep.mubr.f32.mxu0 %v407
        %1234 = vmatmul.mubr.f32.gmra.mrb[0].mxu0 %v375
        %v1235 = vpop.f32.mrb[0].mxu0
        %v1236 = vadd.f32 %v1011, %v1235
        %v1237 = vpop.f32.mrb[0].mxu0
        %1238 = vmatprep.mubr.f32.mxu0 %v408
        %1239 = vmatmul.mubr.f32.gmra.mrb[0].mxu0 %v376
        %v1240 = vpop.f32.mrb[0].mxu0
        %v1241 = vadd.f32 %v1016, %v1240
        %v1242 = vpop.f32.mrb[0].mxu0
        %1243 = vmatprep.mubr.f32.mxu0 %v409
        %1244 = vmatmul.mubr.f32.gmra.mrb[0].mxu0 %v377
        %v1245 = vpop.f32.mrb[0].mxu0
        %v1246 = vadd.f32 %v1021, %v1245
        %v1247 = vpop.f32.mrb[0].mxu0
        %1248 = vmatprep.mubr.f32.mxu0 %v410
        %1249 = vmatmul.mubr.f32.gmra.mrb[0].mxu0 %v378
        %v1250 = vpop.f32.mrb[0].mxu0
        %v1251 = vadd.f32 %v1026, %v1250
        %v1252 = vpop.f32.mrb[0].mxu0
        %1253 = vmatprep.mubr.f32.mxu0 %v411
        %1254 = vmatmul.mubr.f32.gmra.mrb[0].mxu0 %v379
        %v1255 = vpop.f32.mrb[0].mxu0
        %v1256 = vadd.f32 %v1031, %v1255
        %v1257 = vpop.f32.mrb[0].mxu0
        %1258 = vmatprep.mubr.f32.mxu0 %v412
        %1259 = vmatmul.mubr.f32.gmra.mrb[0].mxu0 %v380
        %v1260 = vpop.f32.mrb[0].mxu0
        %v1261 = vadd.f32 %v1036, %v1260
        %v1262 = vpop.f32.mrb[0].mxu0
        %1263 = vmatprep.mubr.f32.mxu0 %v413
        %1264 = vmatmul.mubr.f32.gmra.mrb[0].mxu0 %v381
        %v1265 = vpop.f32.mrb[0].mxu0
        %v1266 = vadd.f32 %v1041, %v1265
        %v1267 = vpop.f32.mrb[0].mxu0
        %1268 = vmatprep.mubr.f32.mxu0 %v414
        %1269 = vmatmul.mubr.f32.gmra.mrb[0].mxu0 %v382
        %v1270 = vpop.f32.mrb[0].mxu0
        %v1271 = vadd.f32 %v1046, %v1270
        %v1272 = vpop.f32.mrb[0].mxu0
        %1273 = vmatprep.mubr.f32.mxu0 %v415
        %1274 = vmatmul.mubr.f32.gmra.mrb[0].mxu0 %v383
        %v1275 = vpop.f32.mrb[0].mxu0
        %v1276 = vadd.f32 %v1051, %v1275
        %v1277 = vpop.f32.mrb[0].mxu0
        %1278 = vmatprep.mubr.f32.mxu0 %v416
        %1279 = vmatmul.mubr.f32.gmra.mrb[0].mxu0 %v384
        %v1280 = vpop.f32.mrb[0].mxu0
        %v1281 = vadd.f32 %v1056, %v1280
        %v1282 = vpop.f32.mrb[0].mxu0
        %1283 = vmatprep.mubr.f32.mxu0 %v417
        %1284 = vmatmul.mubr.f32.gmra.mrb[0].mxu0 %v385
        %v1285 = vpop.f32.mrb[0].mxu0
        %v1286 = vadd.f32 %v1061, %v1285
        %v1287 = vpop.f32.mrb[0].mxu0
        %1288 = vmatprep.mubr.f32.mxu0 %v418
        %1289 = vmatmul.mubr.f32.gmra.mrb[0].mxu0 %v386
        %v1290 = vpop.f32.mrb[0].mxu0
        %v1291 = vadd.f32 %v1066, %v1290
        %v1292 = vpop.f32.mrb[0].mxu0
        %1293 = vmatprep.mubr.f32.mxu0 %v419
        %1294 = vmatmul.mubr.f32.gmra.mrb[0].mxu0 %v387
        %v1295 = vpop.f32.mrb[0].mxu0
        %v1296 = vadd.f32 %v1071, %v1295
        %v1297 = vpop.f32.mrb[0].mxu0
        %1298 = vmatprep.mubr.f32.mxu0 %v420
        %1299 = vmatmul.mubr.f32.gmra.mrb[0].mxu0 %v388
        %v1300 = vpop.f32.mrb[0].mxu0
        %v1301 = vadd.f32 %v1076, %v1300
        %v1302 = vpop.f32.mrb[0].mxu0
        %1303 = vmatprep.mubr.f32.mxu0 %v421
        %1304 = vmatmul.mubr.f32.gmra.mrb[0].mxu0 %v389
        %v1305 = vpop.f32.mrb[0].mxu0
        %v1306 = vadd.f32 %v1081, %v1305
        %v1307 = vpop.f32.mrb[0].mxu0
        %1308 = vmatprep.mubr.f32.mxu0 %v422
        %1309 = vmatmul.mubr.f32.gmra.mrb[0].mxu0 %v390
        %v1310 = vpop.f32.mrb[0].mxu0
        %v1311 = vadd.f32 %v1086, %v1310
        %v1312 = vpop.f32.mrb[0].mxu0
        %1313 = vmatprep.mubr.f32.mxu0 %v423
        %1314 = vmatmul.mubr.f32.gmra.mrb[0].mxu0 %v391
        %v1315 = vpop.f32.mrb[0].mxu0
        %v1316 = vadd.f32 %v1091, %v1315
        %v1317 = vpop.f32.mrb[0].mxu0
        %1318 = vmatprep.mubr.f32.mxu0 %v424
        %1319 = vmatmul.mubr.f32.gmra.mrb[0].mxu0 %v392
        %v1320 = vpop.f32.mrb[0].mxu0
        %v1321 = vadd.f32 %v1096, %v1320
        %v1322 = vpop.f32.mrb[0].mxu0
        %1323 = vmatprep.mubr.f32.mxu0 %v425
        %1324 = vmatmul.mubr.f32.gmra.mrb[0].mxu0 %v393
        %v1325 = vpop.f32.mrb[0].mxu0
        %v1326 = vadd.f32 %v1101, %v1325
        %v1327 = vpop.f32.mrb[0].mxu0
        %1328 = vmatprep.mubr.f32.mxu0 %v426
        %1329 = vmatmul.mubr.f32.gmra.mrb[0].mxu0 %v394
        %v1330 = vpop.f32.mrb[0].mxu0
        %v1331 = vadd.f32 %v1106, %v1330
        %v1332 = vpop.f32.mrb[0].mxu0
        %1333 = vmatprep.mubr.f32.mxu0 %v427
        %1334 = vmatmul.mubr.f32.gmra.mrb[0].mxu0 %v395
        %v1335 = vpop.f32.mrb[0].mxu0
        %v1336 = vadd.f32 %v1111, %v1335
        %v1337 = vpop.f32.mrb[0].mxu0
        %1338 = vmatprep.mubr.f32.mxu0 %v428
        %1339 = vmatmul.mubr.f32.gmra.mrb[0].mxu0 %v396
        %v1340 = vpop.f32.mrb[0].mxu0
        %v1341 = vadd.f32 %v1116, %v1340
        %v1342 = vpop.f32.mrb[0].mxu0
        %1343 = vmatprep.mubr.f32.mxu0 %v429
        %1344 = vmatmul.mubr.f32.gmra.mrb[0].mxu0 %v397
        %v1345 = vpop.f32.mrb[0].mxu0
        %v1346 = vadd.f32 %v1121, %v1345
        %v1347 = vpop.f32.mrb[0].mxu0
        %1348 = vmatprep.mubr.f32.mxu0 %v430
        %1349 = vmatmul.mubr.f32.gmra.mrb[0].mxu0 %v398
        %v1350 = vpop.f32.mrb[0].mxu0
        %v1351 = vadd.f32 %v1126, %v1350
        %v1352 = vpop.f32.mrb[0].mxu0
        %1353 = vdwg.mxu0
        %1354 = vmatprep.subr.mxu0 0.0
        %1355 = vmatpush1.msra.mxu0 %v624
        %1356 = vmatprep.subr.mxu0 0.0
        %1357 = vmatpush1.msra.mxu0 %v625
        %1358 = vmatprep.subr.mxu0 0.0
        %1359 = vmatpush1.msra.mxu0 %v626
        %1360 = vmatprep.subr.mxu0 0.0
        %1361 = vmatpush1.msra.mxu0 %v627
        %1362 = vmatprep.subr.mxu0 0.0
        %1363 = vmatpush1.msra.mxu0 %v628
        %1364 = vmatprep.subr.mxu0 0.0
        %1365 = vmatpush1.msra.mxu0 %v629
        %1366 = vmatprep.subr.mxu0 0.0
        %1367 = vmatpush1.msra.mxu0 %v630
        %1368 = vmatprep.subr.mxu0 0.0
        %1369 = vmatpush1.msra.mxu0 %v631
        %1370 = vmatprep.subr.mxu0 0.0
        %1371 = vmatpush1.msra.mxu0 %v632
        %1372 = vmatprep.subr.mxu0 0.0
        %1373 = vmatpush1.msra.mxu0 %v633
        %1374 = vmatprep.subr.mxu0 0.0
        %1375 = vmatpush1.msra.mxu0 %v634
        %1376 = vmatprep.subr.mxu0 0.0
        %1377 = vmatpush1.msra.mxu0 %v635
        %1378 = vmatprep.subr.mxu0 0.0
        %1379 = vmatpush1.msra.mxu0 %v636
        %1380 = vmatprep.subr.mxu0 0.0
        %1381 = vmatpush1.msra.mxu0 %v637
        %1382 = vmatprep.subr.mxu0 0.0
        %1383 = vmatpush1.msra.mxu0 %v638
        %1384 = vmatprep.subr.mxu0 0.0
        %1385 = vmatpush1.msra.mxu0 %v639
        %1386 = vmatprep.subr.mxu0 0.0
        %1387 = vmatpush1.msra.mxu0 %v640
        %1388 = vmatprep.subr.mxu0 0.0
        %1389 = vmatpush1.msra.mxu0 %v641
        %1390 = vmatprep.subr.mxu0 0.0
        %1391 = vmatpush1.msra.mxu0 %v642
        %1392 = vmatprep.subr.mxu0 0.0
        %1393 = vmatpush1.msra.mxu0 %v643
        %1394 = vmatprep.subr.mxu0 0.0
        %1395 = vmatpush1.msra.mxu0 %v644
        %1396 = vmatprep.subr.mxu0 0.0
        %1397 = vmatpush1.msra.mxu0 %v645
        %1398 = vmatprep.subr.mxu0 0.0
        %1399 = vmatpush1.msra.mxu0 %v646
        %1400 = vmatprep.subr.mxu0 0.0
        %1401 = vmatpush1.msra.mxu0 %v647
        %1402 = vmatprep.subr.mxu0 0.0
        %1403 = vmatpush1.msra.mxu0 %v648
        %1404 = vmatprep.subr.mxu0 0.0
        %1405 = vmatpush1.msra.mxu0 %v649
        %1406 = vmatprep.subr.mxu0 0.0
        %1407 = vmatpush1.msra.mxu0 %v650
        %1408 = vmatprep.subr.mxu0 0.0
        %1409 = vmatpush1.msra.mxu0 %v651
        %1410 = vmatprep.subr.mxu0 0.0
        %1411 = vmatpush1.msra.mxu0 %v652
        %1412 = vmatprep.subr.mxu0 0.0
        %1413 = vmatpush1.msra.mxu0 %v653
        %1414 = vmatprep.subr.mxu0 0.0
        %1415 = vmatpush1.msra.mxu0 %v654
        %1416 = vmatprep.subr.mxu0 0.0
        %1417 = vmatpush1.msra.mxu0 %v655
        %1418 = vmatprep.mubr.f32.mxu0 %v464
        %1419 = vmatmul.mubr.f32.gmra.mrb[0].mxu0 %v432
        %v1420 = vpop.f32.mrb[0].mxu0
        %v1421 = vadd.f32 %v1196, %v1420
        %v1422 = vpop.f32.mrb[0].mxu0
        %1423 = vmatprep.mubr.f32.mxu0 %v465
        %1424 = vmatmul.mubr.f32.gmra.mrb[0].mxu0 %v433
        %v1425 = vpop.f32.mrb[0].mxu0
        %v1426 = vadd.f32 %v1201, %v1425
        %v1427 = vpop.f32.mrb[0].mxu0
        %1428 = vmatprep.mubr.f32.mxu0 %v466
        %1429 = vmatmul.mubr.f32.gmra.mrb[0].mxu0 %v434
        %v1430 = vpop.f32.mrb[0].mxu0
        %v1431 = vadd.f32 %v1206, %v1430
        %v1432 = vpop.f32.mrb[0].mxu0
        %1433 = vmatprep.mubr.f32.mxu0 %v467
        %1434 = vmatmul.mubr.f32.gmra.mrb[0].mxu0 %v435
        %v1435 = vpop.f32.mrb[0].mxu0
        %v1436 = vadd.f32 %v1211, %v1435
        %v1437 = vpop.f32.mrb[0].mxu0
        %1438 = vmatprep.mubr.f32.mxu0 %v468
        %1439 = vmatmul.mubr.f32.gmra.mrb[0].mxu0 %v436
        %v1440 = vpop.f32.mrb[0].mxu0
        %v1441 = vadd.f32 %v1216, %v1440
        %v1442 = vpop.f32.mrb[0].mxu0
        %1443 = vmatprep.mubr.f32.mxu0 %v469
        %1444 = vmatmul.mubr.f32.gmra.mrb[0].mxu0 %v437
        %v1445 = vpop.f32.mrb[0].mxu0
        %v1446 = vadd.f32 %v1221, %v1445
        %v1447 = vpop.f32.mrb[0].mxu0
        %1448 = vmatprep.mubr.f32.mxu0 %v470
        %1449 = vmatmul.mubr.f32.gmra.mrb[0].mxu0 %v438
        %v1450 = vpop.f32.mrb[0].mxu0
        %v1451 = vadd.f32 %v1226, %v1450
        %v1452 = vpop.f32.mrb[0].mxu0
        %1453 = vmatprep.mubr.f32.mxu0 %v471
        %1454 = vmatmul.mubr.f32.gmra.mrb[0].mxu0 %v439
        %v1455 = vpop.f32.mrb[0].mxu0
        %v1456 = vadd.f32 %v1231, %v1455
        %v1457 = vpop.f32.mrb[0].mxu0
        %1458 = vmatprep.mubr.f32.mxu0 %v472
        %1459 = vmatmul.mubr.f32.gmra.mrb[0].mxu0 %v440
        %v1460 = vpop.f32.mrb[0].mxu0
        %v1461 = vadd.f32 %v1236, %v1460
        %v1462 = vpop.f32.mrb[0].mxu0
        %1463 = vmatprep.mubr.f32.mxu0 %v473
        %1464 = vmatmul.mubr.f32.gmra.mrb[0].mxu0 %v441
        %v1465 = vpop.f32.mrb[0].mxu0
        %v1466 = vadd.f32 %v1241, %v1465
        %v1467 = vpop.f32.mrb[0].mxu0
        %1468 = vmatprep.mubr.f32.mxu0 %v474
        %1469 = vmatmul.mubr.f32.gmra.mrb[0].mxu0 %v442
        %v1470 = vpop.f32.mrb[0].mxu0
        %v1471 = vadd.f32 %v1246, %v1470
        %v1472 = vpop.f32.mrb[0].mxu0
        %1473 = vmatprep.mubr.f32.mxu0 %v475
        %1474 = vmatmul.mubr.f32.gmra.mrb[0].mxu0 %v443
        %v1475 = vpop.f32.mrb[0].mxu0
        %v1476 = vadd.f32 %v1251, %v1475
        %v1477 = vpop.f32.mrb[0].mxu0
        %1478 = vmatprep.mubr.f32.mxu0 %v476
        %1479 = vmatmul.mubr.f32.gmra.mrb[0].mxu0 %v444
        %v1480 = vpop.f32.mrb[0].mxu0
        %v1481 = vadd.f32 %v1256, %v1480
        %v1482 = vpop.f32.mrb[0].mxu0
        %1483 = vmatprep.mubr.f32.mxu0 %v477
        %1484 = vmatmul.mubr.f32.gmra.mrb[0].mxu0 %v445
        %v1485 = vpop.f32.mrb[0].mxu0
        %v1486 = vadd.f32 %v1261, %v1485
        %v1487 = vpop.f32.mrb[0].mxu0
        %1488 = vmatprep.mubr.f32.mxu0 %v478
        %1489 = vmatmul.mubr.f32.gmra.mrb[0].mxu0 %v446
        %v1490 = vpop.f32.mrb[0].mxu0
        %v1491 = vadd.f32 %v1266, %v1490
        %v1492 = vpop.f32.mrb[0].mxu0
        %1493 = vmatprep.mubr.f32.mxu0 %v479
        %1494 = vmatmul.mubr.f32.gmra.mrb[0].mxu0 %v447
        %v1495 = vpop.f32.mrb[0].mxu0
        %v1496 = vadd.f32 %v1271, %v1495
        %v1497 = vpop.f32.mrb[0].mxu0
        %1498 = vmatprep.mubr.f32.mxu0 %v480
        %1499 = vmatmul.mubr.f32.gmra.mrb[0].mxu0 %v448
        %v1500 = vpop.f32.mrb[0].mxu0
        %v1501 = vadd.f32 %v1276, %v1500
        %v1502 = vpop.f32.mrb[0].mxu0
        %1503 = vmatprep.mubr.f32.mxu0 %v481
        %1504 = vmatmul.mubr.f32.gmra.mrb[0].mxu0 %v449
        %v1505 = vpop.f32.mrb[0].mxu0
        %v1506 = vadd.f32 %v1281, %v1505
        %v1507 = vpop.f32.mrb[0].mxu0
        %1508 = vmatprep.mubr.f32.mxu0 %v482
        %1509 = vmatmul.mubr.f32.gmra.mrb[0].mxu0 %v450
        %v1510 = vpop.f32.mrb[0].mxu0
        %v1511 = vadd.f32 %v1286, %v1510
        %v1512 = vpop.f32.mrb[0].mxu0
        %1513 = vmatprep.mubr.f32.mxu0 %v483
        %1514 = vmatmul.mubr.f32.gmra.mrb[0].mxu0 %v451
        %v1515 = vpop.f32.mrb[0].mxu0
        %v1516 = vadd.f32 %v1291, %v1515
        %v1517 = vpop.f32.mrb[0].mxu0
        %1518 = vmatprep.mubr.f32.mxu0 %v484
        %1519 = vmatmul.mubr.f32.gmra.mrb[0].mxu0 %v452
        %v1520 = vpop.f32.mrb[0].mxu0
        %v1521 = vadd.f32 %v1296, %v1520
        %v1522 = vpop.f32.mrb[0].mxu0
        %1523 = vmatprep.mubr.f32.mxu0 %v485
        %1524 = vmatmul.mubr.f32.gmra.mrb[0].mxu0 %v453
        %v1525 = vpop.f32.mrb[0].mxu0
        %v1526 = vadd.f32 %v1301, %v1525
        %v1527 = vpop.f32.mrb[0].mxu0
        %1528 = vmatprep.mubr.f32.mxu0 %v486
        %1529 = vmatmul.mubr.f32.gmra.mrb[0].mxu0 %v454
        %v1530 = vpop.f32.mrb[0].mxu0
        %v1531 = vadd.f32 %v1306, %v1530
        %v1532 = vpop.f32.mrb[0].mxu0
        %1533 = vmatprep.mubr.f32.mxu0 %v487
        %1534 = vmatmul.mubr.f32.gmra.mrb[0].mxu0 %v455
        %v1535 = vpop.f32.mrb[0].mxu0
        %v1536 = vadd.f32 %v1311, %v1535
        %v1537 = vpop.f32.mrb[0].mxu0
        %1538 = vmatprep.mubr.f32.mxu0 %v488
        %1539 = vmatmul.mubr.f32.gmra.mrb[0].mxu0 %v456
        %v1540 = vpop.f32.mrb[0].mxu0
        %v1541 = vadd.f32 %v1316, %v1540
        %v1542 = vpop.f32.mrb[0].mxu0
        %1543 = vmatprep.mubr.f32.mxu0 %v489
        %1544 = vmatmul.mubr.f32.gmra.mrb[0].mxu0 %v457
        %v1545 = vpop.f32.mrb[0].mxu0
        %v1546 = vadd.f32 %v1321, %v1545
        %v1547 = vpop.f32.mrb[0].mxu0
        %1548 = vmatprep.mubr.f32.mxu0 %v490
        %1549 = vmatmul.mubr.f32.gmra.mrb[0].mxu0 %v458
        %v1550 = vpop.f32.mrb[0].mxu0
        %v1551 = vadd.f32 %v1326, %v1550
        %v1552 = vpop.f32.mrb[0].mxu0
        %1553 = vmatprep.mubr.f32.mxu0 %v491
        %1554 = vmatmul.mubr.f32.gmra.mrb[0].mxu0 %v459
        %v1555 = vpop.f32.mrb[0].mxu0
        %v1556 = vadd.f32 %v1331, %v1555
        %v1557 = vpop.f32.mrb[0].mxu0
        %1558 = vmatprep.mubr.f32.mxu0 %v492
        %1559 = vmatmul.mubr.f32.gmra.mrb[0].mxu0 %v460
        %v1560 = vpop.f32.mrb[0].mxu0
        %v1561 = vadd.f32 %v1336, %v1560
        %v1562 = vpop.f32.mrb[0].mxu0
        %1563 = vmatprep.mubr.f32.mxu0 %v493
        %1564 = vmatmul.mubr.f32.gmra.mrb[0].mxu0 %v461
        %v1565 = vpop.f32.mrb[0].mxu0
        %v1566 = vadd.f32 %v1341, %v1565
        %v1567 = vpop.f32.mrb[0].mxu0
        %1568 = vmatprep.mubr.f32.mxu0 %v494
        %1569 = vmatmul.mubr.f32.gmra.mrb[0].mxu0 %v462
        %v1570 = vpop.f32.mrb[0].mxu0
        %v1571 = vadd.f32 %v1346, %v1570
        %v1572 = vpop.f32.mrb[0].mxu0
        %1573 = vmatprep.mubr.f32.mxu0 %v495
        %1574 = vmatmul.mubr.f32.gmra.mrb[0].mxu0 %v463
        %v1575 = vpop.f32.mrb[0].mxu0
        %v1576 = vadd.f32 %v1351, %v1575
        %v1577 = vpop.f32.mrb[0].mxu0
        %1578 = vdwg.mxu0
        %1579 = vmatprep.subr.mxu0 0.0
        %1580 = vmatpush1.msra.mxu0 %v656
        %1581 = vmatprep.subr.mxu0 0.0
        %1582 = vmatpush1.msra.mxu0 %v657
        %1583 = vmatprep.subr.mxu0 0.0
        %1584 = vmatpush1.msra.mxu0 %v658
        %1585 = vmatprep.subr.mxu0 0.0
        %1586 = vmatpush1.msra.mxu0 %v659
        %1587 = vmatprep.subr.mxu0 0.0
        %1588 = vmatpush1.msra.mxu0 %v660
        %1589 = vmatprep.subr.mxu0 0.0
        %1590 = vmatpush1.msra.mxu0 %v661
        %1591 = vmatprep.subr.mxu0 0.0
        %1592 = vmatpush1.msra.mxu0 %v662
        %1593 = vmatprep.subr.mxu0 0.0
        %1594 = vmatpush1.msra.mxu0 %v663
        %1595 = vmatprep.subr.mxu0 0.0
        %1596 = vmatpush1.msra.mxu0 %v664
        %1597 = vmatprep.subr.mxu0 0.0
        %1598 = vmatpush1.msra.mxu0 %v665
        %1599 = vmatprep.subr.mxu0 0.0
        %1600 = vmatpush1.msra.mxu0 %v666
        %1601 = vmatprep.subr.mxu0 0.0
        %1602 = vmatpush1.msra.mxu0 %v667
        %1603 = vmatprep.subr.mxu0 0.0
        %1604 = vmatpush1.msra.mxu0 %v668
        %1605 = vmatprep.subr.mxu0 0.0
        %1606 = vmatpush1.msra.mxu0 %v669
        %1607 = vmatprep.subr.mxu0 0.0
        %1608 = vmatpush1.msra.mxu0 %v670
        %1609 = vmatprep.subr.mxu0 0.0
        %1610 = vmatpush1.msra.mxu0 %v671
        %1611 = vmatprep.subr.mxu0 0.0
        %1612 = vmatpush1.msra.mxu0 0.0
        %1613 = vmatprep.subr.mxu0 0.0
        %1614 = vmatpush1.msra.mxu0 0.0
        %1615 = vmatprep.subr.mxu0 0.0
        %1616 = vmatpush1.msra.mxu0 0.0
        %1617 = vmatprep.subr.mxu0 0.0
        %1618 = vmatpush1.msra.mxu0 0.0
        %1619 = vmatprep.subr.mxu0 0.0
        %1620 = vmatpush1.msra.mxu0 0.0
        %1621 = vmatprep.subr.mxu0 0.0
        %1622 = vmatpush1.msra.mxu0 0.0
        %1623 = vmatprep.subr.mxu0 0.0
        %1624 = vmatpush1.msra.mxu0 0.0
        %1625 = vmatprep.subr.mxu0 0.0
        %1626 = vmatpush1.msra.mxu0 0.0
        %1627 = vmatprep.subr.mxu0 0.0
        %1628 = vmatpush1.msra.mxu0 0.0
        %1629 = vmatprep.subr.mxu0 0.0
        %1630 = vmatpush1.msra.mxu0 0.0
        %1631 = vmatprep.subr.mxu0 0.0
        %1632 = vmatpush1.msra.mxu0 0.0
        %1633 = vmatprep.subr.mxu0 0.0
        %1634 = vmatpush1.msra.mxu0 0.0
        %1635 = vmatprep.subr.mxu0 0.0
        %1636 = vmatpush1.msra.mxu0 0.0
        %1637 = vmatprep.subr.mxu0 0.0
        %1638 = vmatpush1.msra.mxu0 0.0
        %1639 = vmatprep.subr.mxu0 0.0
        %1640 = vmatpush1.msra.mxu0 0.0
        %1641 = vmatprep.subr.mxu0 0.0
        %1642 = vmatpush1.msra.mxu0 0.0
        %1643 = vmatprep.mubr.f32.mxu0 0.0
        %1644 = vmatmul.mubr.f32.gmra.mrb[0].mxu0 %v496
        %v1645 = vpop.f32.mrb[0].mxu0
        %v1646 = vadd.f32 %v1421, %v1645
        %v1647 = vpop.f32.mrb[0].mxu0
        %1648 = vmatprep.mubr.f32.mxu0 0.0
        %1649 = vmatmul.mubr.f32.gmra.mrb[0].mxu0 %v497
        %v1650 = vpop.f32.mrb[0].mxu0
        %v1651 = vadd.f32 %v1426, %v1650
        %v1652 = vpop.f32.mrb[0].mxu0
        %1653 = vmatprep.mubr.f32.mxu0 0.0
        %1654 = vmatmul.mubr.f32.gmra.mrb[0].mxu0 %v498
        %v1655 = vpop.f32.mrb[0].mxu0
        %v1656 = vadd.f32 %v1431, %v1655
        %v1657 = vpop.f32.mrb[0].mxu0
        %1658 = vmatprep.mubr.f32.mxu0 0.0
        %1659 = vmatmul.mubr.f32.gmra.mrb[0].mxu0 %v499
        %v1660 = vpop.f32.mrb[0].mxu0
        %v1661 = vadd.f32 %v1436, %v1660
        %v1662 = vpop.f32.mrb[0].mxu0
        %1663 = vmatprep.mubr.f32.mxu0 0.0
        %1664 = vmatmul.mubr.f32.gmra.mrb[0].mxu0 %v500
        %v1665 = vpop.f32.mrb[0].mxu0
        %v1666 = vadd.f32 %v1441, %v1665
        %v1667 = vpop.f32.mrb[0].mxu0
        %1668 = vmatprep.mubr.f32.mxu0 0.0
        %1669 = vmatmul.mubr.f32.gmra.mrb[0].mxu0 %v501
        %v1670 = vpop.f32.mrb[0].mxu0
        %v1671 = vadd.f32 %v1446, %v1670
        %v1672 = vpop.f32.mrb[0].mxu0
        %1673 = vmatprep.mubr.f32.mxu0 0.0
        %1674 = vmatmul.mubr.f32.gmra.mrb[0].mxu0 %v502
        %v1675 = vpop.f32.mrb[0].mxu0
        %v1676 = vadd.f32 %v1451, %v1675
        %v1677 = vpop.f32.mrb[0].mxu0
        %1678 = vmatprep.mubr.f32.mxu0 0.0
        %1679 = vmatmul.mubr.f32.gmra.mrb[0].mxu0 %v503
        %v1680 = vpop.f32.mrb[0].mxu0
        %v1681 = vadd.f32 %v1456, %v1680
        %v1682 = vpop.f32.mrb[0].mxu0
        %1683 = vmatprep.mubr.f32.mxu0 0.0
        %1684 = vmatmul.mubr.f32.gmra.mrb[0].mxu0 %v504
        %v1685 = vpop.f32.mrb[0].mxu0
        %v1686 = vadd.f32 %v1461, %v1685
        %v1687 = vpop.f32.mrb[0].mxu0
        %1688 = vmatprep.mubr.f32.mxu0 0.0
        %1689 = vmatmul.mubr.f32.gmra.mrb[0].mxu0 %v505
        %v1690 = vpop.f32.mrb[0].mxu0
        %v1691 = vadd.f32 %v1466, %v1690
        %v1692 = vpop.f32.mrb[0].mxu0
        %1693 = vmatprep.mubr.f32.mxu0 0.0
        %1694 = vmatmul.mubr.f32.gmra.mrb[0].mxu0 %v506
        %v1695 = vpop.f32.mrb[0].mxu0
        %v1696 = vadd.f32 %v1471, %v1695
        %v1697 = vpop.f32.mrb[0].mxu0
        %1698 = vmatprep.mubr.f32.mxu0 0.0
        %1699 = vmatmul.mubr.f32.gmra.mrb[0].mxu0 %v507
        %v1700 = vpop.f32.mrb[0].mxu0
        %v1701 = vadd.f32 %v1476, %v1700
        %v1702 = vpop.f32.mrb[0].mxu0
        %1703 = vmatprep.mubr.f32.mxu0 0.0
        %1704 = vmatmul.mubr.f32.gmra.mrb[0].mxu0 %v508
        %v1705 = vpop.f32.mrb[0].mxu0
        %v1706 = vadd.f32 %v1481, %v1705
        %v1707 = vpop.f32.mrb[0].mxu0
        %1708 = vmatprep.mubr.f32.mxu0 0.0
        %1709 = vmatmul.mubr.f32.gmra.mrb[0].mxu0 %v509
        %v1710 = vpop.f32.mrb[0].mxu0
        %v1711 = vadd.f32 %v1486, %v1710
        %v1712 = vpop.f32.mrb[0].mxu0
        %1713 = vmatprep.mubr.f32.mxu0 0.0
        %1714 = vmatmul.mubr.f32.gmra.mrb[0].mxu0 %v510
        %v1715 = vpop.f32.mrb[0].mxu0
        %v1716 = vadd.f32 %v1491, %v1715
        %v1717 = vpop.f32.mrb[0].mxu0
        %1718 = vmatprep.mubr.f32.mxu0 0.0
        %1719 = vmatmul.mubr.f32.gmra.mrb[0].mxu0 %v511
        %v1720 = vpop.f32.mrb[0].mxu0
        %v1721 = vadd.f32 %v1496, %v1720
        %v1722 = vpop.f32.mrb[0].mxu0
        %1723 = vmatprep.mubr.f32.mxu0 0.0
        %1724 = vmatmul.mubr.f32.gmra.mrb[0].mxu0 %v512
        %v1725 = vpop.f32.mrb[0].mxu0
        %v1726 = vadd.f32 %v1501, %v1725
        %v1727 = vpop.f32.mrb[0].mxu0
        %1728 = vmatprep.mubr.f32.mxu0 0.0
        %1729 = vmatmul.mubr.f32.gmra.mrb[0].mxu0 %v513
        %v1730 = vpop.f32.mrb[0].mxu0
        %v1731 = vadd.f32 %v1506, %v1730
        %v1732 = vpop.f32.mrb[0].mxu0
        %1733 = vmatprep.mubr.f32.mxu0 0.0
        %1734 = vmatmul.mubr.f32.gmra.mrb[0].mxu0 %v514
        %v1735 = vpop.f32.mrb[0].mxu0
        %v1736 = vadd.f32 %v1511, %v1735
        %v1737 = vpop.f32.mrb[0].mxu0
        %1738 = vmatprep.mubr.f32.mxu0 0.0
        %1739 = vmatmul.mubr.f32.gmra.mrb[0].mxu0 %v515
        %v1740 = vpop.f32.mrb[0].mxu0
        %v1741 = vadd.f32 %v1516, %v1740
        %v1742 = vpop.f32.mrb[0].mxu0
        %1743 = vmatprep.mubr.f32.mxu0 0.0
        %1744 = vmatmul.mubr.f32.gmra.mrb[0].mxu0 %v516
        %v1745 = vpop.f32.mrb[0].mxu0
        %v1746 = vadd.f32 %v1521, %v1745
        %v1747 = vpop.f32.mrb[0].mxu0
        %1748 = vmatprep.mubr.f32.mxu0 0.0
        %1749 = vmatmul.mubr.f32.gmra.mrb[0].mxu0 %v517
        %v1750 = vpop.f32.mrb[0].mxu0
        %v1751 = vadd.f32 %v1526, %v1750
        %v1752 = vpop.f32.mrb[0].mxu0
        %1753 = vmatprep.mubr.f32.mxu0 0.0
        %1754 = vmatmul.mubr.f32.gmra.mrb[0].mxu0 %v518
        %v1755 = vpop.f32.mrb[0].mxu0
        %v1756 = vadd.f32 %v1531, %v1755
        %v1757 = vpop.f32.mrb[0].mxu0
        %1758 = vmatprep.mubr.f32.mxu0 0.0
        %1759 = vmatmul.mubr.f32.gmra.mrb[0].mxu0 %v519
        %v1760 = vpop.f32.mrb[0].mxu0
        %v1761 = vadd.f32 %v1536, %v1760
        %v1762 = vpop.f32.mrb[0].mxu0
        %1763 = vmatprep.mubr.f32.mxu0 0.0
        %1764 = vmatmul.mubr.f32.gmra.mrb[0].mxu0 %v520
        %v1765 = vpop.f32.mrb[0].mxu0
        %v1766 = vadd.f32 %v1541, %v1765
        %v1767 = vpop.f32.mrb[0].mxu0
        %1768 = vmatprep.mubr.f32.mxu0 0.0
        %1769 = vmatmul.mubr.f32.gmra.mrb[0].mxu0 %v521
        %v1770 = vpop.f32.mrb[0].mxu0
        %v1771 = vadd.f32 %v1546, %v1770
        %v1772 = vpop.f32.mrb[0].mxu0
        %1773 = vmatprep.mubr.f32.mxu0 0.0
        %1774 = vmatmul.mubr.f32.gmra.mrb[0].mxu0 %v522
        %v1775 = vpop.f32.mrb[0].mxu0
        %v1776 = vadd.f32 %v1551, %v1775
        %v1777 = vpop.f32.mrb[0].mxu0
        %1778 = vmatprep.mubr.f32.mxu0 0.0
        %1779 = vmatmul.mubr.f32.gmra.mrb[0].mxu0 %v523
        %v1780 = vpop.f32.mrb[0].mxu0
        %v1781 = vadd.f32 %v1556, %v1780
        %v1782 = vpop.f32.mrb[0].mxu0
        %1783 = vmatprep.mubr.f32.mxu0 0.0
        %1784 = vmatmul.mubr.f32.gmra.mrb[0].mxu0 %v524
        %v1785 = vpop.f32.mrb[0].mxu0
        %v1786 = vadd.f32 %v1561, %v1785
        %v1787 = vpop.f32.mrb[0].mxu0
        %1788 = vmatprep.mubr.f32.mxu0 0.0
        %1789 = vmatmul.mubr.f32.gmra.mrb[0].mxu0 %v525
        %v1790 = vpop.f32.mrb[0].mxu0
        %v1791 = vadd.f32 %v1566, %v1790
        %v1792 = vpop.f32.mrb[0].mxu0
        %1793 = vmatprep.mubr.f32.mxu0 0.0
        %1794 = vmatmul.mubr.f32.gmra.mrb[0].mxu0 %v526
        %v1795 = vpop.f32.mrb[0].mxu0
        %v1796 = vadd.f32 %v1571, %v1795
        %v1797 = vpop.f32.mrb[0].mxu0
        %1798 = vmatprep.mubr.f32.mxu0 0.0
        %1799 = vmatmul.mubr.f32.gmra.mrb[0].mxu0 %v527
        %v1800 = vpop.f32.mrb[0].mxu0
        %v1801 = vadd.f32 %v1576, %v1800
        %v1802 = vpop.f32.mrb[0].mxu0
        %1803 = vdwg.mxu0
        %v1804 = vmax.f32 %v1646, 0.0
        %v1805 = vmax.f32 %v1651, 0.0
        %v1806 = vmax.f32 %v1656, 0.0
        %v1807 = vmax.f32 %v1661, 0.0
        %v1808 = vmax.f32 %v1666, 0.0
        %v1809 = vmax.f32 %v1671, 0.0
        %v1810 = vmax.f32 %v1676, 0.0
        %v1811 = vmax.f32 %v1681, 0.0
        %v1812 = vmax.f32 %v1686, 0.0
        %v1813 = vmax.f32 %v1691, 0.0
        %v1814 = vmax.f32 %v1696, 0.0
        %v1815 = vmax.f32 %v1701, 0.0
        %v1816 = vmax.f32 %v1706, 0.0
        %v1817 = vmax.f32 %v1711, 0.0
        %v1818 = vmax.f32 %v1716, 0.0
        %v1819 = vmax.f32 %v1721, 0.0
        %v1820 = vmax.f32 %v1726, 0.0
        %v1821 = vmax.f32 %v1731, 0.0
        %v1822 = vmax.f32 %v1736, 0.0
        %v1823 = vmax.f32 %v1741, 0.0
        %v1824 = vmax.f32 %v1746, 0.0
        %v1825 = vmax.f32 %v1751, 0.0
        %v1826 = vmax.f32 %v1756, 0.0
        %v1827 = vmax.f32 %v1761, 0.0
        %v1828 = vmax.f32 %v1766, 0.0
        %v1829 = vmax.f32 %v1771, 0.0
        %v1830 = vmax.f32 %v1776, 0.0
        %v1831 = vmax.f32 %v1781, 0.0
        %v1832 = vmax.f32 %v1786, 0.0
        %v1833 = vmax.f32 %v1791, 0.0
        %v1834 = vmax.f32 %v1796, 0.0
        %v1835 = vmax.f32 %v1801, 0.0
        %1836 = vst [vmem:[#allocation2] sm:$0xff] 0.0
        %1837 = vst [vmem:[#allocation2 + $0x8] sm:$0xff] 0.0
        %1838 = vst [vmem:[#allocation2 + $0x10] sm:$0x3] 0.0
        %s1839 = scalar_lea.vmem [#allocation2], 408
        %1840 = vst [vmem:[%s1839] sm:$0xff] 0.0
        %1841 = vst [vmem:[%s1839 + $0x8] sm:$0xff] 0.0
        %1842 = vst [vmem:[%s1839 + $0x10] sm:$0x3] 0.0
        %1843 = vst [vmem:[#allocation2] sm:$0x1] 0.0
        %1844 = vst [vmem:[#allocation2 + $0x18] sm:$0x1] 0.0
        %1845 = vst [vmem:[#allocation2 + $0x30] sm:$0x1] 0.0
        %1846 = vst [vmem:[#allocation2 + $0x48] sm:$0x1] 0.0
        %1847 = vst [vmem:[#allocation2 + $0x60] sm:$0x1] 0.0
        %1848 = vst [vmem:[#allocation2 + $0x78] sm:$0x1] 0.0
        %1849 = vst [vmem:[#allocation2 + $0x90] sm:$0x1] 0.0
        %1850 = vst [vmem:[#allocation2 + $0xa8] sm:$0x1] 0.0
        %1851 = vst [vmem:[#allocation2 + $0xc0] sm:$0x1] 0.0
        %1852 = vst [vmem:[#allocation2 + $0xd8] sm:$0x1] 0.0
        %1853 = vst [vmem:[#allocation2 + $0xf0] sm:$0x1] 0.0
        %1854 = vst [vmem:[#allocation2 + $0x108] sm:$0x1] 0.0
        %1855 = vst [vmem:[#allocation2 + $0x120] sm:$0x1] 0.0
        %1856 = vst [vmem:[#allocation2 + $0x138] sm:$0x1] 0.0
        %1857 = vst [vmem:[#allocation2 + $0x150] sm:$0x1] 0.0
        %1858 = vst [vmem:[#allocation2 + $0x168] sm:$0x1] 0.0
        %1859 = vst [vmem:[#allocation2 + $0x180] sm:$0x1] 0.0
        %1860 = vst [vmem:[#allocation2 + $0x198] sm:$0x1] 0.0
        %1861 = vst [vmem:[#allocation2 + $0x11] sm:$0x1] 0.0
        %1862 = vst [vmem:[#allocation2 + $0x29] sm:$0x1] 0.0
        %1863 = vst [vmem:[#allocation2 + $0x41] sm:$0x1] 0.0
        %1864 = vst [vmem:[#allocation2 + $0x59] sm:$0x1] 0.0
        %1865 = vst [vmem:[#allocation2 + $0x71] sm:$0x1] 0.0
        %1866 = vst [vmem:[#allocation2 + $0x89] sm:$0x1] 0.0
        %1867 = vst [vmem:[#allocation2 + $0xa1] sm:$0x1] 0.0
        %1868 = vst [vmem:[#allocation2 + $0xb9] sm:$0x1] 0.0
        %1869 = vst [vmem:[#allocation2 + $0xd1] sm:$0x1] 0.0
        %1870 = vst [vmem:[#allocation2 + $0xe9] sm:$0x1] 0.0
        %1871 = vst [vmem:[#allocation2 + $0x101] sm:$0x1] 0.0
        %1872 = vst [vmem:[#allocation2 + $0x119] sm:$0x1] 0.0
        %1873 = vst [vmem:[#allocation2 + $0x131] sm:$0x1] 0.0
        %1874 = vst [vmem:[#allocation2 + $0x149] sm:$0x1] 0.0
        %1875 = vst [vmem:[#allocation2 + $0x161] sm:$0x1] 0.0
        %1876 = vst [vmem:[#allocation2 + $0x179] sm:$0x1] 0.0
        %1877 = vst [vmem:[#allocation2 + $0x191] sm:$0x1] 0.0
        %1878 = vst [vmem:[#allocation2 + $0x1a9] sm:$0x1] 0.0
        %s1879 = scalar_lea.vmem [#allocation2], 24
        %1880 = vst [vmem:[%s1879 + $0x1] sm:$0xff] %v1804
        %1881 = vst [vmem:[%s1879 + $0x9] sm:$0xff] %v1805
        %1882 = vst [vmem:[%s1879 + $0x19] sm:$0xff] %v1806
        %1883 = vst [vmem:[%s1879 + $0x21] sm:$0xff] %v1807
        %1884 = vst [vmem:[%s1879 + $0x31] sm:$0xff] %v1808
        %1885 = vst [vmem:[%s1879 + $0x39] sm:$0xff] %v1809
        %1886 = vst [vmem:[%s1879 + $0x49] sm:$0xff] %v1810
        %1887 = vst [vmem:[%s1879 + $0x51] sm:$0xff] %v1811
        %1888 = vst [vmem:[%s1879 + $0x61] sm:$0xff] %v1812
        %1889 = vst [vmem:[%s1879 + $0x69] sm:$0xff] %v1813
        %1890 = vst [vmem:[%s1879 + $0x79] sm:$0xff] %v1814
        %1891 = vst [vmem:[%s1879 + $0x81] sm:$0xff] %v1815
        %1892 = vst [vmem:[%s1879 + $0x91] sm:$0xff] %v1816
        %1893 = vst [vmem:[%s1879 + $0x99] sm:$0xff] %v1817
        %1894 = vst [vmem:[%s1879 + $0xa9] sm:$0xff] %v1818
        %1895 = vst [vmem:[%s1879 + $0xb1] sm:$0xff] %v1819
        %1896 = vst [vmem:[%s1879 + $0xc1] sm:$0xff] %v1820
        %1897 = vst [vmem:[%s1879 + $0xc9] sm:$0xff] %v1821
        %1898 = vst [vmem:[%s1879 + $0xd9] sm:$0xff] %v1822
        %1899 = vst [vmem:[%s1879 + $0xe1] sm:$0xff] %v1823
        %1900 = vst [vmem:[%s1879 + $0xf1] sm:$0xff] %v1824
        %1901 = vst [vmem:[%s1879 + $0xf9] sm:$0xff] %v1825
        %1902 = vst [vmem:[%s1879 + $0x109] sm:$0xff] %v1826
        %1903 = vst [vmem:[%s1879 + $0x111] sm:$0xff] %v1827
        %1904 = vst [vmem:[%s1879 + $0x121] sm:$0xff] %v1828
        %1905 = vst [vmem:[%s1879 + $0x129] sm:$0xff] %v1829
        %1906 = vst [vmem:[%s1879 + $0x139] sm:$0xff] %v1830
        %1907 = vst [vmem:[%s1879 + $0x141] sm:$0xff] %v1831
        %1908 = vst [vmem:[%s1879 + $0x151] sm:$0xff] %v1832
        %1909 = vst [vmem:[%s1879 + $0x159] sm:$0xff] %v1833
        %1910 = vst [vmem:[%s1879 + $0x169] sm:$0xff] %v1834
        %1911 = vst [vmem:[%s1879 + $0x171] sm:$0xff] %v1835
        %v1912 = vld [vmem:[#allocation2] sm:$0xff]
        %v1913 = vld [vmem:[#allocation2 + $0x8] sm:$0xff]
        %v1914 = vld [vmem:[#allocation2 + $0x18] sm:$0xff]
        %v1915 = vld [vmem:[#allocation2 + $0x20] sm:$0xff]
        %v1916 = vld [vmem:[#allocation2 + $0x30] sm:$0xff]
        %v1917 = vld [vmem:[#allocation2 + $0x38] sm:$0xff]
        %v1918 = vld [vmem:[#allocation2 + $0x48] sm:$0xff]
        %v1919 = vld [vmem:[#allocation2 + $0x50] sm:$0xff]
        %v1920 = vld [vmem:[#allocation2 + $0x60] sm:$0xff]
        %v1921 = vld [vmem:[#allocation2 + $0x68] sm:$0xff]
        %v1922 = vld [vmem:[#allocation2 + $0x78] sm:$0xff]
        %v1923 = vld [vmem:[#allocation2 + $0x80] sm:$0xff]
        %v1924 = vld [vmem:[#allocation2 + $0x90] sm:$0xff]
        %v1925 = vld [vmem:[#allocation2 + $0x98] sm:$0xff]
        %v1926 = vld [vmem:[#allocation2 + $0xa8] sm:$0xff]
        %v1927 = vld [vmem:[#allocation2 + $0xb0] sm:$0xff]
        %v1928 = vld [vmem:[#allocation2 + $0xc0] sm:$0xff]
        %v1929 = vld [vmem:[#allocation2 + $0xc8] sm:$0xff]
        %v1930 = vld [vmem:[#allocation2 + $0xd8] sm:$0xff]
        %v1931 = vld [vmem:[#allocation2 + $0xe0] sm:$0xff]
        %v1932 = vld [vmem:[#allocation2 + $0xf0] sm:$0xff]
        %v1933 = vld [vmem:[#allocation2 + $0xf8] sm:$0xff]
        %v1934 = vld [vmem:[#allocation2 + $0x108] sm:$0xff]
        %v1935 = vld [vmem:[#allocation2 + $0x110] sm:$0xff]
        %v1936 = vld [vmem:[#allocation2 + $0x120] sm:$0xff]
        %v1937 = vld [vmem:[#allocation2 + $0x128] sm:$0xff]
        %v1938 = vld [vmem:[#allocation2 + $0x138] sm:$0xff]
        %v1939 = vld [vmem:[#allocation2 + $0x140] sm:$0xff]
        %v1940 = vld [vmem:[#allocation2 + $0x150] sm:$0xff]
        %v1941 = vld [vmem:[#allocation2 + $0x158] sm:$0xff]
        %v1942 = vld [vmem:[#allocation2 + $0x168] sm:$0xff]
        %v1943 = vld [vmem:[#allocation2 + $0x170] sm:$0xff]
        %v1944 = vld [vmem:[#allocation2 + $0x1] sm:$0xff]
        %v1945 = vld [vmem:[#allocation2 + $0x9] sm:$0xff]
        %v1946 = vld [vmem:[#allocation2 + $0x19] sm:$0xff]
        %v1947 = vld [vmem:[#allocation2 + $0x21] sm:$0xff]
        %v1948 = vld [vmem:[#allocation2 + $0x31] sm:$0xff]
        %v1949 = vld [vmem:[#allocation2 + $0x39] sm:$0xff]
        %v1950 = vld [vmem:[#allocation2 + $0x49] sm:$0xff]
        %v1951 = vld [vmem:[#allocation2 + $0x51] sm:$0xff]
        %v1952 = vld [vmem:[#allocation2 + $0x61] sm:$0xff]
        %v1953 = vld [vmem:[#allocation2 + $0x69] sm:$0xff]
        %v1954 = vld [vmem:[#allocation2 + $0x79] sm:$0xff]
        %v1955 = vld [vmem:[#allocation2 + $0x81] sm:$0xff]
        %v1956 = vld [vmem:[#allocation2 + $0x91] sm:$0xff]
        %v1957 = vld [vmem:[#allocation2 + $0x99] sm:$0xff]
        %v1958 = vld [vmem:[#allocation2 + $0xa9] sm:$0xff]
        %v1959 = vld [vmem:[#allocation2 + $0xb1] sm:$0xff]
        %v1960 = vld [vmem:[#allocation2 + $0xc1] sm:$0xff]
        %v1961 = vld [vmem:[#allocation2 + $0xc9] sm:$0xff]
        %v1962 = vld [vmem:[#allocation2 + $0xd9] sm:$0xff]
        %v1963 = vld [vmem:[#allocation2 + $0xe1] sm:$0xff]
        %v1964 = vld [vmem:[#allocation2 + $0xf1] sm:$0xff]
        %v1965 = vld [vmem:[#allocation2 + $0xf9] sm:$0xff]
        %v1966 = vld [vmem:[#allocation2 + $0x109] sm:$0xff]
        %v1967 = vld [vmem:[#allocation2 + $0x111] sm:$0xff]
        %v1968 = vld [vmem:[#allocation2 + $0x121] sm:$0xff]
        %v1969 = vld [vmem:[#allocation2 + $0x129] sm:$0xff]
        %v1970 = vld [vmem:[#allocation2 + $0x139] sm:$0xff]
        %v1971 = vld [vmem:[#allocation2 + $0x141] sm:$0xff]
        %v1972 = vld [vmem:[#allocation2 + $0x151] sm:$0xff]
        %v1973 = vld [vmem:[#allocation2 + $0x159] sm:$0xff]
        %v1974 = vld [vmem:[#allocation2 + $0x169] sm:$0xff]
        %v1975 = vld [vmem:[#allocation2 + $0x171] sm:$0xff]
        %v1976 = vld [vmem:[#allocation2 + $0x2] sm:$0xff]
        %v1977 = vld [vmem:[#allocation2 + $0xa] sm:$0xff]
        %v1978 = vld [vmem:[#allocation2 + $0x1a] sm:$0xff]
        %v1979 = vld [vmem:[#allocation2 + $0x22] sm:$0xff]
        %v1980 = vld [vmem:[#allocation2 + $0x32] sm:$0xff]
        %v1981 = vld [vmem:[#allocation2 + $0x3a] sm:$0xff]
        %v1982 = vld [vmem:[#allocation2 + $0x4a] sm:$0xff]
        %v1983 = vld [vmem:[#allocation2 + $0x52] sm:$0xff]
        %v1984 = vld [vmem:[#allocation2 + $0x62] sm:$0xff]
        %v1985 = vld [vmem:[#allocation2 + $0x6a] sm:$0xff]
        %v1986 = vld [vmem:[#allocation2 + $0x7a] sm:$0xff]
        %v1987 = vld [vmem:[#allocation2 + $0x82] sm:$0xff]
        %v1988 = vld [vmem:[#allocation2 + $0x92] sm:$0xff]
        %v1989 = vld [vmem:[#allocation2 + $0x9a] sm:$0xff]
        %v1990 = vld [vmem:[#allocation2 + $0xaa] sm:$0xff]
        %v1991 = vld [vmem:[#allocation2 + $0xb2] sm:$0xff]
        %v1992 = vld [vmem:[#allocation2 + $0xc2] sm:$0xff]
        %v1993 = vld [vmem:[#allocation2 + $0xca] sm:$0xff]
        %v1994 = vld [vmem:[#allocation2 + $0xda] sm:$0xff]
        %v1995 = vld [vmem:[#allocation2 + $0xe2] sm:$0xff]
        %v1996 = vld [vmem:[#allocation2 + $0xf2] sm:$0xff]
        %v1997 = vld [vmem:[#allocation2 + $0xfa] sm:$0xff]
        %v1998 = vld [vmem:[#allocation2 + $0x10a] sm:$0xff]
        %v1999 = vld [vmem:[#allocation2 + $0x112] sm:$0xff]
        %v2000 = vld [vmem:[#allocation2 + $0x122] sm:$0xff]
        %v2001 = vld [vmem:[#allocation2 + $0x12a] sm:$0xff]
        %v2002 = vld [vmem:[#allocation2 + $0x13a] sm:$0xff]
        %v2003 = vld [vmem:[#allocation2 + $0x142] sm:$0xff]
        %v2004 = vld [vmem:[#allocation2 + $0x152] sm:$0xff]
        %v2005 = vld [vmem:[#allocation2 + $0x15a] sm:$0xff]
        %v2006 = vld [vmem:[#allocation2 + $0x16a] sm:$0xff]
        %v2007 = vld [vmem:[#allocation2 + $0x172] sm:$0xff]
        %v2008 = vld [vmem:[%s1879] sm:$0xff]
        %v2009 = vld [vmem:[%s1879 + $0x8] sm:$0xff]
        %v2010 = vld [vmem:[%s1879 + $0x18] sm:$0xff]
        %v2011 = vld [vmem:[%s1879 + $0x20] sm:$0xff]
        %v2012 = vld [vmem:[%s1879 + $0x30] sm:$0xff]
        %v2013 = vld [vmem:[%s1879 + $0x38] sm:$0xff]
        %v2014 = vld [vmem:[%s1879 + $0x48] sm:$0xff]
        %v2015 = vld [vmem:[%s1879 + $0x50] sm:$0xff]
        %v2016 = vld [vmem:[%s1879 + $0x60] sm:$0xff]
        %v2017 = vld [vmem:[%s1879 + $0x68] sm:$0xff]
        %v2018 = vld [vmem:[%s1879 + $0x78] sm:$0xff]
        %v2019 = vld [vmem:[%s1879 + $0x80] sm:$0xff]
        %v2020 = vld [vmem:[%s1879 + $0x90] sm:$0xff]
        %v2021 = vld [vmem:[%s1879 + $0x98] sm:$0xff]
        %v2022 = vld [vmem:[%s1879 + $0xa8] sm:$0xff]
        %v2023 = vld [vmem:[%s1879 + $0xb0] sm:$0xff]
        %v2024 = vld [vmem:[%s1879 + $0xc0] sm:$0xff]
        %v2025 = vld [vmem:[%s1879 + $0xc8] sm:$0xff]
        %v2026 = vld [vmem:[%s1879 + $0xd8] sm:$0xff]
        %v2027 = vld [vmem:[%s1879 + $0xe0] sm:$0xff]
        %v2028 = vld [vmem:[%s1879 + $0xf0] sm:$0xff]
        %v2029 = vld [vmem:[%s1879 + $0xf8] sm:$0xff]
        %v2030 = vld [vmem:[%s1879 + $0x108] sm:$0xff]
        %v2031 = vld [vmem:[%s1879 + $0x110] sm:$0xff]
        %v2032 = vld [vmem:[%s1879 + $0x120] sm:$0xff]
        %v2033 = vld [vmem:[%s1879 + $0x128] sm:$0xff]
        %v2034 = vld [vmem:[%s1879 + $0x138] sm:$0xff]
        %v2035 = vld [vmem:[%s1879 + $0x140] sm:$0xff]
        %v2036 = vld [vmem:[%s1879 + $0x150] sm:$0xff]
        %v2037 = vld [vmem:[%s1879 + $0x158] sm:$0xff]
        %v2038 = vld [vmem:[%s1879 + $0x168] sm:$0xff]
        %v2039 = vld [vmem:[%s1879 + $0x170] sm:$0xff]
        %v2040 = vld [vmem:[%s1879 + $0x1] sm:$0xff]
        %v2041 = vld [vmem:[%s1879 + $0x9] sm:$0xff]
        %v2042 = vld [vmem:[%s1879 + $0x19] sm:$0xff]
        %v2043 = vld [vmem:[%s1879 + $0x21] sm:$0xff]
        %v2044 = vld [vmem:[%s1879 + $0x31] sm:$0xff]
        %v2045 = vld [vmem:[%s1879 + $0x39] sm:$0xff]
        %v2046 = vld [vmem:[%s1879 + $0x49] sm:$0xff]
        %v2047 = vld [vmem:[%s1879 + $0x51] sm:$0xff]
        %v2048 = vld [vmem:[%s1879 + $0x61] sm:$0xff]
        %v2049 = vld [vmem:[%s1879 + $0x69] sm:$0xff]
        %v2050 = vld [vmem:[%s1879 + $0x79] sm:$0xff]
        %v2051 = vld [vmem:[%s1879 + $0x81] sm:$0xff]
        %v2052 = vld [vmem:[%s1879 + $0x91] sm:$0xff]
        %v2053 = vld [vmem:[%s1879 + $0x99] sm:$0xff]
        %v2054 = vld [vmem:[%s1879 + $0xa9] sm:$0xff]
        %v2055 = vld [vmem:[%s1879 + $0xb1] sm:$0xff]
        %v2056 = vld [vmem:[%s1879 + $0xc1] sm:$0xff]
        %v2057 = vld [vmem:[%s1879 + $0xc9] sm:$0xff]
        %v2058 = vld [vmem:[%s1879 + $0xd9] sm:$0xff]
        %v2059 = vld [vmem:[%s1879 + $0xe1] sm:$0xff]
        %v2060 = vld [vmem:[%s1879 + $0xf1] sm:$0xff]
        %v2061 = vld [vmem:[%s1879 + $0xf9] sm:$0xff]
        %v2062 = vld [vmem:[%s1879 + $0x109] sm:$0xff]
        %v2063 = vld [vmem:[%s1879 + $0x111] sm:$0xff]
        %v2064 = vld [vmem:[%s1879 + $0x121] sm:$0xff]
        %v2065 = vld [vmem:[%s1879 + $0x129] sm:$0xff]
        %v2066 = vld [vmem:[%s1879 + $0x139] sm:$0xff]
        %v2067 = vld [vmem:[%s1879 + $0x141] sm:$0xff]
        %v2068 = vld [vmem:[%s1879 + $0x151] sm:$0xff]
        %v2069 = vld [vmem:[%s1879 + $0x159] sm:$0xff]
        %v2070 = vld [vmem:[%s1879 + $0x169] sm:$0xff]
        %v2071 = vld [vmem:[%s1879 + $0x171] sm:$0xff]
        %v2072 = vld [vmem:[%s1879 + $0x2] sm:$0xff]
        %v2073 = vld [vmem:[%s1879 + $0xa] sm:$0xff]
        %v2074 = vld [vmem:[%s1879 + $0x1a] sm:$0xff]
        %v2075 = vld [vmem:[%s1879 + $0x22] sm:$0xff]
        %v2076 = vld [vmem:[%s1879 + $0x32] sm:$0xff]
        %v2077 = vld [vmem:[%s1879 + $0x3a] sm:$0xff]
        %v2078 = vld [vmem:[%s1879 + $0x4a] sm:$0xff]
        %v2079 = vld [vmem:[%s1879 + $0x52] sm:$0xff]
        %v2080 = vld [vmem:[%s1879 + $0x62] sm:$0xff]
        %v2081 = vld [vmem:[%s1879 + $0x6a] sm:$0xff]
        %v2082 = vld [vmem:[%s1879 + $0x7a] sm:$0xff]
        %v2083 = vld [vmem:[%s1879 + $0x82] sm:$0xff]
        %v2084 = vld [vmem:[%s1879 + $0x92] sm:$0xff]
        %v2085 = vld [vmem:[%s1879 + $0x9a] sm:$0xff]
        %v2086 = vld [vmem:[%s1879 + $0xaa] sm:$0xff]
        %v2087 = vld [vmem:[%s1879 + $0xb2] sm:$0xff]
        %v2088 = vld [vmem:[%s1879 + $0xc2] sm:$0xff]
        %v2089 = vld [vmem:[%s1879 + $0xca] sm:$0xff]
        %v2090 = vld [vmem:[%s1879 + $0xda] sm:$0xff]
        %v2091 = vld [vmem:[%s1879 + $0xe2] sm:$0xff]
        %v2092 = vld [vmem:[%s1879 + $0xf2] sm:$0xff]
        %v2093 = vld [vmem:[%s1879 + $0xfa] sm:$0xff]
        %v2094 = vld [vmem:[%s1879 + $0x10a] sm:$0xff]
        %v2095 = vld [vmem:[%s1879 + $0x112] sm:$0xff]
        %v2096 = vld [vmem:[%s1879 + $0x122] sm:$0xff]
        %v2097 = vld [vmem:[%s1879 + $0x12a] sm:$0xff]
        %v2098 = vld [vmem:[%s1879 + $0x13a] sm:$0xff]
        %v2099 = vld [vmem:[%s1879 + $0x142] sm:$0xff]
        %v2100 = vld [vmem:[%s1879 + $0x152] sm:$0xff]
        %v2101 = vld [vmem:[%s1879 + $0x15a] sm:$0xff]
        %v2102 = vld [vmem:[%s1879 + $0x16a] sm:$0xff]
        %v2103 = vld [vmem:[%s1879 + $0x172] sm:$0xff]
        %s2104 = scalar_lea.vmem [#allocation2], 48
        %v2105 = vld [vmem:[%s2104] sm:$0xff]
        %v2106 = vld [vmem:[%s2104 + $0x8] sm:$0xff]
        %v2107 = vld [vmem:[%s2104 + $0x18] sm:$0xff]
        %v2108 = vld [vmem:[%s2104 + $0x20] sm:$0xff]
        %v2109 = vld [vmem:[%s2104 + $0x30] sm:$0xff]
        %v2110 = vld [vmem:[%s2104 + $0x38] sm:$0xff]
        %v2111 = vld [vmem:[%s2104 + $0x48] sm:$0xff]
        %v2112 = vld [vmem:[%s2104 + $0x50] sm:$0xff]
        %v2113 = vld [vmem:[%s2104 + $0x60] sm:$0xff]
        %v2114 = vld [vmem:[%s2104 + $0x68] sm:$0xff]
        %v2115 = vld [vmem:[%s2104 + $0x78] sm:$0xff]
        %v2116 = vld [vmem:[%s2104 + $0x80] sm:$0xff]
        %v2117 = vld [vmem:[%s2104 + $0x90] sm:$0xff]
        %v2118 = vld [vmem:[%s2104 + $0x98] sm:$0xff]
        %v2119 = vld [vmem:[%s2104 + $0xa8] sm:$0xff]
        %v2120 = vld [vmem:[%s2104 + $0xb0] sm:$0xff]
        %v2121 = vld [vmem:[%s2104 + $0xc0] sm:$0xff]
        %v2122 = vld [vmem:[%s2104 + $0xc8] sm:$0xff]
        %v2123 = vld [vmem:[%s2104 + $0xd8] sm:$0xff]
        %v2124 = vld [vmem:[%s2104 + $0xe0] sm:$0xff]
        %v2125 = vld [vmem:[%s2104 + $0xf0] sm:$0xff]
        %v2126 = vld [vmem:[%s2104 + $0xf8] sm:$0xff]
        %v2127 = vld [vmem:[%s2104 + $0x108] sm:$0xff]
        %v2128 = vld [vmem:[%s2104 + $0x110] sm:$0xff]
        %v2129 = vld [vmem:[%s2104 + $0x120] sm:$0xff]
        %v2130 = vld [vmem:[%s2104 + $0x128] sm:$0xff]
        %v2131 = vld [vmem:[%s2104 + $0x138] sm:$0xff]
        %v2132 = vld [vmem:[%s2104 + $0x140] sm:$0xff]
        %v2133 = vld [vmem:[%s2104 + $0x150] sm:$0xff]
        %v2134 = vld [vmem:[%s2104 + $0x158] sm:$0xff]
        %v2135 = vld [vmem:[%s2104 + $0x168] sm:$0xff]
        %v2136 = vld [vmem:[%s2104 + $0x170] sm:$0xff]
        %v2137 = vld [vmem:[%s2104 + $0x1] sm:$0xff]
        %v2138 = vld [vmem:[%s2104 + $0x9] sm:$0xff]
        %v2139 = vld [vmem:[%s2104 + $0x19] sm:$0xff]
        %v2140 = vld [vmem:[%s2104 + $0x21] sm:$0xff]
        %v2141 = vld [vmem:[%s2104 + $0x31] sm:$0xff]
        %v2142 = vld [vmem:[%s2104 + $0x39] sm:$0xff]
        %v2143 = vld [vmem:[%s2104 + $0x49] sm:$0xff]
        %v2144 = vld [vmem:[%s2104 + $0x51] sm:$0xff]
        %v2145 = vld [vmem:[%s2104 + $0x61] sm:$0xff]
        %v2146 = vld [vmem:[%s2104 + $0x69] sm:$0xff]
        %v2147 = vld [vmem:[%s2104 + $0x79] sm:$0xff]
        %v2148 = vld [vmem:[%s2104 + $0x81] sm:$0xff]
        %v2149 = vld [vmem:[%s2104 + $0x91] sm:$0xff]
        %v2150 = vld [vmem:[%s2104 + $0x99] sm:$0xff]
        %v2151 = vld [vmem:[%s2104 + $0xa9] sm:$0xff]
        %v2152 = vld [vmem:[%s2104 + $0xb1] sm:$0xff]
        %v2153 = vld [vmem:[%s2104 + $0xc1] sm:$0xff]
        %v2154 = vld [vmem:[%s2104 + $0xc9] sm:$0xff]
        %v2155 = vld [vmem:[%s2104 + $0xd9] sm:$0xff]
        %v2156 = vld [vmem:[%s2104 + $0xe1] sm:$0xff]
        %v2157 = vld [vmem:[%s2104 + $0xf1] sm:$0xff]
        %v2158 = vld [vmem:[%s2104 + $0xf9] sm:$0xff]
        %v2159 = vld [vmem:[%s2104 + $0x109] sm:$0xff]
        %v2160 = vld [vmem:[%s2104 + $0x111] sm:$0xff]
        %v2161 = vld [vmem:[%s2104 + $0x121] sm:$0xff]
        %v2162 = vld [vmem:[%s2104 + $0x129] sm:$0xff]
        %v2163 = vld [vmem:[%s2104 + $0x139] sm:$0xff]
        %v2164 = vld [vmem:[%s2104 + $0x141] sm:$0xff]
        %v2165 = vld [vmem:[%s2104 + $0x151] sm:$0xff]
        %v2166 = vld [vmem:[%s2104 + $0x159] sm:$0xff]
        %v2167 = vld [vmem:[%s2104 + $0x169] sm:$0xff]
        %v2168 = vld [vmem:[%s2104 + $0x171] sm:$0xff]
        %v2169 = vld [vmem:[%s2104 + $0x2] sm:$0xff]
        %v2170 = vld [vmem:[%s2104 + $0xa] sm:$0xff]
        %v2171 = vld [vmem:[%s2104 + $0x1a] sm:$0xff]
        %v2172 = vld [vmem:[%s2104 + $0x22] sm:$0xff]
        %v2173 = vld [vmem:[%s2104 + $0x32] sm:$0xff]
        %v2174 = vld [vmem:[%s2104 + $0x3a] sm:$0xff]
        %v2175 = vld [vmem:[%s2104 + $0x4a] sm:$0xff]
        %v2176 = vld [vmem:[%s2104 + $0x52] sm:$0xff]
        %v2177 = vld [vmem:[%s2104 + $0x62] sm:$0xff]
        %v2178 = vld [vmem:[%s2104 + $0x6a] sm:$0xff]
        %v2179 = vld [vmem:[%s2104 + $0x7a] sm:$0xff]
        %v2180 = vld [vmem:[%s2104 + $0x82] sm:$0xff]
        %v2181 = vld [vmem:[%s2104 + $0x92] sm:$0xff]
        %v2182 = vld [vmem:[%s2104 + $0x9a] sm:$0xff]
        %v2183 = vld [vmem:[%s2104 + $0xaa] sm:$0xff]
        %v2184 = vld [vmem:[%s2104 + $0xb2] sm:$0xff]
        %v2185 = vld [vmem:[%s2104 + $0xc2] sm:$0xff]
        %v2186 = vld [vmem:[%s2104 + $0xca] sm:$0xff]
        %v2187 = vld [vmem:[%s2104 + $0xda] sm:$0xff]
        %v2188 = vld [vmem:[%s2104 + $0xe2] sm:$0xff]
        %v2189 = vld [vmem:[%s2104 + $0xf2] sm:$0xff]
        %v2190 = vld [vmem:[%s2104 + $0xfa] sm:$0xff]
        %v2191 = vld [vmem:[%s2104 + $0x10a] sm:$0xff]
        %v2192 = vld [vmem:[%s2104 + $0x112] sm:$0xff]
        %v2193 = vld [vmem:[%s2104 + $0x122] sm:$0xff]
        %v2194 = vld [vmem:[%s2104 + $0x12a] sm:$0xff]
        %v2195 = vld [vmem:[%s2104 + $0x13a] sm:$0xff]
        %v2196 = vld [vmem:[%s2104 + $0x142] sm:$0xff]
        %v2197 = vld [vmem:[%s2104 + $0x152] sm:$0xff]
        %v2198 = vld [vmem:[%s2104 + $0x15a] sm:$0xff]
        %v2199 = vld [vmem:[%s2104 + $0x16a] sm:$0xff]
        %v2200 = vld [vmem:[%s2104 + $0x172] sm:$0xff]
        %v2201 = vld [vmem:[#allocation3] sm:$0xff]
        %v2202 = vld [vmem:[#allocation3 + $0x8] sm:$0xff]
        %v2203 = vld [vmem:[#allocation3 + $0x10] sm:$0xff]
        %v2204 = vld [vmem:[#allocation3 + $0x18] sm:$0xff]
        %v2205 = vld [vmem:[#allocation3 + $0x20] sm:$0xff]
        %v2206 = vld [vmem:[#allocation3 + $0x28] sm:$0xff]
        %v2207 = vld [vmem:[#allocation3 + $0x30] sm:$0xff]
        %v2208 = vld [vmem:[#allocation3 + $0x38] sm:$0xff]
        %v2209 = vld [vmem:[#allocation3 + $0x40] sm:$0xff]
        %v2210 = vld [vmem:[#allocation3 + $0x48] sm:$0xff]
        %v2211 = vld [vmem:[#allocation3 + $0x50] sm:$0xff]
        %v2212 = vld [vmem:[#allocation3 + $0x58] sm:$0xff]
        %v2213 = vld [vmem:[#allocation3 + $0x60] sm:$0xff]
        %v2214 = vld [vmem:[#allocation3 + $0x68] sm:$0xff]
        %v2215 = vld [vmem:[#allocation3 + $0x70] sm:$0xff]
        %v2216 = vld [vmem:[#allocation3 + $0x78] sm:$0xff]
        %v2217 = vld [vmem:[#allocation3 + $0x80] sm:$0xff]
        %v2218 = vld [vmem:[#allocation3 + $0x88] sm:$0xff]
        %v2219 = vld [vmem:[#allocation3 + $0x90] sm:$0xff]
        %v2220 = vld [vmem:[#allocation3 + $0x98] sm:$0xff]
        %v2221 = vld [vmem:[#allocation3 + $0xa0] sm:$0xff]
        %v2222 = vld [vmem:[#allocation3 + $0xa8] sm:$0xff]
        %v2223 = vld [vmem:[#allocation3 + $0xb0] sm:$0xff]
        %v2224 = vld [vmem:[#allocation3 + $0xb8] sm:$0xff]
        %v2225 = vld [vmem:[#allocation3 + $0xc0] sm:$0xff]
        %v2226 = vld [vmem:[#allocation3 + $0xc8] sm:$0xff]
        %v2227 = vld [vmem:[#allocation3 + $0xd0] sm:$0xff]
        %v2228 = vld [vmem:[#allocation3 + $0xd8] sm:$0xff]
        %v2229 = vld [vmem:[#allocation3 + $0xe0] sm:$0xff]
        %v2230 = vld [vmem:[#allocation3 + $0xe8] sm:$0xff]
        %v2231 = vld [vmem:[#allocation3 + $0xf0] sm:$0xff]
        %v2232 = vld [vmem:[#allocation3 + $0xf8] sm:$0xff]
        %v2233 = vld [vmem:[#allocation3 + $0x100] sm:$0xff]
        %v2234 = vld [vmem:[#allocation3 + $0x108] sm:$0xff]
        %v2235 = vld [vmem:[#allocation3 + $0x110] sm:$0xff]
        %v2236 = vld [vmem:[#allocation3 + $0x118] sm:$0xff]
        %v2237 = vld [vmem:[#allocation3 + $0x120] sm:$0xff]
        %v2238 = vld [vmem:[#allocation3 + $0x128] sm:$0xff]
        %v2239 = vld [vmem:[#allocation3 + $0x130] sm:$0xff]
        %v2240 = vld [vmem:[#allocation3 + $0x138] sm:$0xff]
        %v2241 = vld [vmem:[#allocation3 + $0x140] sm:$0xff]
        %v2242 = vld [vmem:[#allocation3 + $0x148] sm:$0xff]
        %v2243 = vld [vmem:[#allocation3 + $0x150] sm:$0xff]
        %v2244 = vld [vmem:[#allocation3 + $0x158] sm:$0xff]
        %v2245 = vld [vmem:[#allocation3 + $0x160] sm:$0xff]
        %v2246 = vld [vmem:[#allocation3 + $0x168] sm:$0xff]
        %v2247 = vld [vmem:[#allocation3 + $0x170] sm:$0xff]
        %v2248 = vld [vmem:[#allocation3 + $0x178] sm:$0xff]
        %v2249 = vld [vmem:[#allocation3 + $0x180] sm:$0xff]
        %v2250 = vld [vmem:[#allocation3 + $0x188] sm:$0xff]
        %v2251 = vld [vmem:[#allocation3 + $0x190] sm:$0xff]
        %v2252 = vld [vmem:[#allocation3 + $0x198] sm:$0xff]
        %v2253 = vld [vmem:[#allocation3 + $0x1a0] sm:$0xff]
        %v2254 = vld [vmem:[#allocation3 + $0x1a8] sm:$0xff]
        %v2255 = vld [vmem:[#allocation3 + $0x1b0] sm:$0xff]
        %v2256 = vld [vmem:[#allocation3 + $0x1b8] sm:$0xff]
        %v2257 = vld [vmem:[#allocation3 + $0x1c0] sm:$0xff]
        %v2258 = vld [vmem:[#allocation3 + $0x1c8] sm:$0xff]
        %v2259 = vld [vmem:[#allocation3 + $0x1d0] sm:$0xff]
        %v2260 = vld [vmem:[#allocation3 + $0x1d8] sm:$0xff]
        %v2261 = vld [vmem:[#allocation3 + $0x1e0] sm:$0xff]
        %v2262 = vld [vmem:[#allocation3 + $0x1e8] sm:$0xff]
        %v2263 = vld [vmem:[#allocation3 + $0x1f0] sm:$0xff]
        %v2264 = vld [vmem:[#allocation3 + $0x1f8] sm:$0xff]
        %v2265 = vld [vmem:[#allocation3 + $0x200] sm:$0xff]
        %v2266 = vld [vmem:[#allocation3 + $0x208] sm:$0xff]
        %v2267 = vld [vmem:[#allocation3 + $0x210] sm:$0xff]
        %v2268 = vld [vmem:[#allocation3 + $0x218] sm:$0xff]
        %v2269 = vld [vmem:[#allocation3 + $0x220] sm:$0xff]
        %v2270 = vld [vmem:[#allocation3 + $0x228] sm:$0xff]
        %v2271 = vld [vmem:[#allocation3 + $0x230] sm:$0xff]
        %v2272 = vld [vmem:[#allocation3 + $0x238] sm:$0xff]
        %v2273 = vld [vmem:[#allocation3 + $0x240] sm:$0xff]
        %v2274 = vld [vmem:[#allocation3 + $0x248] sm:$0xff]
        %v2275 = vld [vmem:[#allocation3 + $0x250] sm:$0xff]
        %v2276 = vld [vmem:[#allocation3 + $0x258] sm:$0xff]
        %v2277 = vld [vmem:[#allocation3 + $0x260] sm:$0xff]
        %v2278 = vld [vmem:[#allocation3 + $0x268] sm:$0xff]
        %v2279 = vld [vmem:[#allocation3 + $0x270] sm:$0xff]
        %v2280 = vld [vmem:[#allocation3 + $0x278] sm:$0xff]
        %v2281 = vld [vmem:[#allocation3 + $0x280] sm:$0xff]
        %v2282 = vld [vmem:[#allocation3 + $0x288] sm:$0xff]
        %v2283 = vld [vmem:[#allocation3 + $0x290] sm:$0xff]
        %v2284 = vld [vmem:[#allocation3 + $0x298] sm:$0xff]
        %v2285 = vld [vmem:[#allocation3 + $0x2a0] sm:$0xff]
        %v2286 = vld [vmem:[#allocation3 + $0x2a8] sm:$0xff]
        %v2287 = vld [vmem:[#allocation3 + $0x2b0] sm:$0xff]
        %v2288 = vld [vmem:[#allocation3 + $0x2b8] sm:$0xff]
        %v2289 = vld [vmem:[#allocation3 + $0x2c0] sm:$0xff]
        %v2290 = vld [vmem:[#allocation3 + $0x2c8] sm:$0xff]
        %v2291 = vld [vmem:[#allocation3 + $0x2d0] sm:$0xff]
        %v2292 = vld [vmem:[#allocation3 + $0x2d8] sm:$0xff]
        %v2293 = vld [vmem:[#allocation3 + $0x2e0] sm:$0xff]
        %v2294 = vld [vmem:[#allocation3 + $0x2e8] sm:$0xff]
        %v2295 = vld [vmem:[#allocation3 + $0x2f0] sm:$0xff]
        %v2296 = vld [vmem:[#allocation3 + $0x2f8] sm:$0xff]
        %v2297 = vld [vmem:[#allocation3 + $0x300] sm:$0xff]
        %v2298 = vld [vmem:[#allocation3 + $0x308] sm:$0xff]
        %v2299 = vld [vmem:[#allocation3 + $0x310] sm:$0xff]
        %v2300 = vld [vmem:[#allocation3 + $0x318] sm:$0xff]
        %v2301 = vld [vmem:[#allocation3 + $0x320] sm:$0xff]
        %v2302 = vld [vmem:[#allocation3 + $0x328] sm:$0xff]
        %v2303 = vld [vmem:[#allocation3 + $0x330] sm:$0xff]
        %v2304 = vld [vmem:[#allocation3 + $0x338] sm:$0xff]
        %v2305 = vld [vmem:[#allocation3 + $0x340] sm:$0xff]
        %v2306 = vld [vmem:[#allocation3 + $0x348] sm:$0xff]
        %v2307 = vld [vmem:[#allocation3 + $0x350] sm:$0xff]
        %v2308 = vld [vmem:[#allocation3 + $0x358] sm:$0xff]
        %v2309 = vld [vmem:[#allocation3 + $0x360] sm:$0xff]
        %v2310 = vld [vmem:[#allocation3 + $0x368] sm:$0xff]
        %v2311 = vld [vmem:[#allocation3 + $0x370] sm:$0xff]
        %v2312 = vld [vmem:[#allocation3 + $0x378] sm:$0xff]
        %v2313 = vld [vmem:[#allocation3 + $0x380] sm:$0xff]
        %v2314 = vld [vmem:[#allocation3 + $0x388] sm:$0xff]
        %v2315 = vld [vmem:[#allocation3 + $0x390] sm:$0xff]
        %v2316 = vld [vmem:[#allocation3 + $0x398] sm:$0xff]
        %v2317 = vld [vmem:[#allocation3 + $0x3a0] sm:$0xff]
        %v2318 = vld [vmem:[#allocation3 + $0x3a8] sm:$0xff]
        %v2319 = vld [vmem:[#allocation3 + $0x3b0] sm:$0xff]
        %v2320 = vld [vmem:[#allocation3 + $0x3b8] sm:$0xff]
        %v2321 = vld [vmem:[#allocation3 + $0x3c0] sm:$0xff]
        %v2322 = vld [vmem:[#allocation3 + $0x3c8] sm:$0xff]
        %v2323 = vld [vmem:[#allocation3 + $0x3d0] sm:$0xff]
        %v2324 = vld [vmem:[#allocation3 + $0x3d8] sm:$0xff]
        %v2325 = vld [vmem:[#allocation3 + $0x3e0] sm:$0xff]
        %v2326 = vld [vmem:[#allocation3 + $0x3e8] sm:$0xff]
        %v2327 = vld [vmem:[#allocation3 + $0x3f0] sm:$0xff]
        %v2328 = vld [vmem:[#allocation3 + $0x3f8] sm:$0xff]
        %v2329 = vld [vmem:[#allocation3 + $0x400] sm:$0xff]
        %v2330 = vld [vmem:[#allocation3 + $0x408] sm:$0xff]
        %v2331 = vld [vmem:[#allocation3 + $0x410] sm:$0xff]
        %v2332 = vld [vmem:[#allocation3 + $0x418] sm:$0xff]
        %v2333 = vld [vmem:[#allocation3 + $0x420] sm:$0xff]
        %v2334 = vld [vmem:[#allocation3 + $0x428] sm:$0xff]
        %v2335 = vld [vmem:[#allocation3 + $0x430] sm:$0xff]
        %v2336 = vld [vmem:[#allocation3 + $0x438] sm:$0xff]
        %v2337 = vld [vmem:[#allocation3 + $0x440] sm:$0xff]
        %v2338 = vld [vmem:[#allocation3 + $0x448] sm:$0xff]
        %v2339 = vld [vmem:[#allocation3 + $0x450] sm:$0xff]
        %v2340 = vld [vmem:[#allocation3 + $0x458] sm:$0xff]
        %v2341 = vld [vmem:[#allocation3 + $0x460] sm:$0xff]
        %v2342 = vld [vmem:[#allocation3 + $0x468] sm:$0xff]
        %v2343 = vld [vmem:[#allocation3 + $0x470] sm:$0xff]
        %v2344 = vld [vmem:[#allocation3 + $0x478] sm:$0xff]
        %v2345 = vld [vmem:[%s4] sm:$0x1]
        %v2347 = vlaneseq
        %v2348 = vshrl.u32 %v2347, 7
        %v2349 = vsub.s32 0, %v2348
        %v2350 = vrot.slane %v2345, %v2349
        %2352 = vmatprep.subr.mxu0 0.0
        %2353 = vmatpush1.msra.mxu0 %v2201
        %2354 = vmatprep.subr.mxu0 0.0
        %2355 = vmatpush1.msra.mxu0 %v2202
        %2356 = vmatprep.subr.mxu0 0.0
        %2357 = vmatpush1.msra.mxu0 %v2203
        %2358 = vmatprep.subr.mxu0 0.0
        %2359 = vmatpush1.msra.mxu0 %v2204
        %2360 = vmatprep.subr.mxu0 0.0
        %2361 = vmatpush1.msra.mxu0 %v2205
        %2362 = vmatprep.subr.mxu0 0.0
        %2363 = vmatpush1.msra.mxu0 %v2206
        %2364 = vmatprep.subr.mxu0 0.0
        %2365 = vmatpush1.msra.mxu0 %v2207
        %2366 = vmatprep.subr.mxu0 0.0
        %2367 = vmatpush1.msra.mxu0 %v2208
        %2368 = vmatprep.subr.mxu0 0.0
        %2369 = vmatpush1.msra.mxu0 %v2209
        %2370 = vmatprep.subr.mxu0 0.0
        %2371 = vmatpush1.msra.mxu0 %v2210
        %2372 = vmatprep.subr.mxu0 0.0
        %2373 = vmatpush1.msra.mxu0 %v2211
        %2374 = vmatprep.subr.mxu0 0.0
        %2375 = vmatpush1.msra.mxu0 %v2212
        %2376 = vmatprep.subr.mxu0 0.0
        %2377 = vmatpush1.msra.mxu0 %v2213
        %2378 = vmatprep.subr.mxu0 0.0
        %2379 = vmatpush1.msra.mxu0 %v2214
        %2380 = vmatprep.subr.mxu0 0.0
        %2381 = vmatpush1.msra.mxu0 %v2215
        %2382 = vmatprep.subr.mxu0 0.0
        %2383 = vmatpush1.msra.mxu0 %v2216
        %2384 = vmatprep.subr.mxu0 0.0
        %2385 = vmatpush1.msra.mxu0 %v2217
        %2386 = vmatprep.subr.mxu0 0.0
        %2387 = vmatpush1.msra.mxu0 %v2218
        %2388 = vmatprep.subr.mxu0 0.0
        %2389 = vmatpush1.msra.mxu0 %v2219
        %2390 = vmatprep.subr.mxu0 0.0
        %2391 = vmatpush1.msra.mxu0 %v2220
        %2392 = vmatprep.subr.mxu0 0.0
        %2393 = vmatpush1.msra.mxu0 %v2221
        %2394 = vmatprep.subr.mxu0 0.0
        %2395 = vmatpush1.msra.mxu0 %v2222
        %2396 = vmatprep.subr.mxu0 0.0
        %2397 = vmatpush1.msra.mxu0 %v2223
        %2398 = vmatprep.subr.mxu0 0.0
        %2399 = vmatpush1.msra.mxu0 %v2224
        %2400 = vmatprep.subr.mxu0 0.0
        %2401 = vmatpush1.msra.mxu0 %v2225
        %2402 = vmatprep.subr.mxu0 0.0
        %2403 = vmatpush1.msra.mxu0 %v2226
        %2404 = vmatprep.subr.mxu0 0.0
        %2405 = vmatpush1.msra.mxu0 %v2227
        %2406 = vmatprep.subr.mxu0 0.0
        %2407 = vmatpush1.msra.mxu0 %v2228
        %2408 = vmatprep.subr.mxu0 0.0
        %2409 = vmatpush1.msra.mxu0 %v2229
        %2410 = vmatprep.subr.mxu0 0.0
        %2411 = vmatpush1.msra.mxu0 %v2230
        %2412 = vmatprep.subr.mxu0 0.0
        %2413 = vmatpush1.msra.mxu0 %v2231
        %2414 = vmatprep.subr.mxu0 0.0
        %2415 = vmatpush1.msra.mxu0 %v2232
        %2416 = vmatprep.mubr.f32.mxu0 %v1944
        %2417 = vmatmul.mubr.f32.gmra.mrb[0].mxu0 %v1912
        %v2418 = vpop.f32.mrb[0].mxu0
        %v2419 = vadd.f32 %v2350, %v2418
        %v2420 = vpop.f32.mrb[0].mxu0
        %2421 = vmatprep.mubr.f32.mxu0 %v1945
        %2422 = vmatmul.mubr.f32.gmra.mrb[0].mxu0 %v1913
        %v2423 = vpop.f32.mrb[0].mxu0
        %v2424 = vadd.f32 %v2350, %v2423
        %v2425 = vpop.f32.mrb[0].mxu0
        %2426 = vmatprep.mubr.f32.mxu0 %v1946
        %2427 = vmatmul.mubr.f32.gmra.mrb[0].mxu0 %v1914
        %v2428 = vpop.f32.mrb[0].mxu0
        %v2429 = vadd.f32 %v2350, %v2428
        %v2430 = vpop.f32.mrb[0].mxu0
        %2431 = vmatprep.mubr.f32.mxu0 %v1947
        %2432 = vmatmul.mubr.f32.gmra.mrb[0].mxu0 %v1915
        %v2433 = vpop.f32.mrb[0].mxu0
        %v2434 = vadd.f32 %v2350, %v2433
        %v2435 = vpop.f32.mrb[0].mxu0
        %2436 = vmatprep.mubr.f32.mxu0 %v1948
        %2437 = vmatmul.mubr.f32.gmra.mrb[0].mxu0 %v1916
        %v2438 = vpop.f32.mrb[0].mxu0
        %v2439 = vadd.f32 %v2350, %v2438
        %v2440 = vpop.f32.mrb[0].mxu0
        %2441 = vmatprep.mubr.f32.mxu0 %v1949
        %2442 = vmatmul.mubr.f32.gmra.mrb[0].mxu0 %v1917
        %v2443 = vpop.f32.mrb[0].mxu0
        %v2444 = vadd.f32 %v2350, %v2443
        %v2445 = vpop.f32.mrb[0].mxu0
        %2446 = vmatprep.mubr.f32.mxu0 %v1950
        %2447 = vmatmul.mubr.f32.gmra.mrb[0].mxu0 %v1918
        %v2448 = vpop.f32.mrb[0].mxu0
        %v2449 = vadd.f32 %v2350, %v2448
        %v2450 = vpop.f32.mrb[0].mxu0
        %2451 = vmatprep.mubr.f32.mxu0 %v1951
        %2452 = vmatmul.mubr.f32.gmra.mrb[0].mxu0 %v1919
        %v2453 = vpop.f32.mrb[0].mxu0
        %v2454 = vadd.f32 %v2350, %v2453
        %v2455 = vpop.f32.mrb[0].mxu0
        %2456 = vmatprep.mubr.f32.mxu0 %v1952
        %2457 = vmatmul.mubr.f32.gmra.mrb[0].mxu0 %v1920
        %v2458 = vpop.f32.mrb[0].mxu0
        %v2459 = vadd.f32 %v2350, %v2458
        %v2460 = vpop.f32.mrb[0].mxu0
        %2461 = vmatprep.mubr.f32.mxu0 %v1953
        %2462 = vmatmul.mubr.f32.gmra.mrb[0].mxu0 %v1921
        %v2463 = vpop.f32.mrb[0].mxu0
        %v2464 = vadd.f32 %v2350, %v2463
        %v2465 = vpop.f32.mrb[0].mxu0
        %2466 = vmatprep.mubr.f32.mxu0 %v1954
        %2467 = vmatmul.mubr.f32.gmra.mrb[0].mxu0 %v1922
        %v2468 = vpop.f32.mrb[0].mxu0
        %v2469 = vadd.f32 %v2350, %v2468
        %v2470 = vpop.f32.mrb[0].mxu0
        %2471 = vmatprep.mubr.f32.mxu0 %v1955
        %2472 = vmatmul.mubr.f32.gmra.mrb[0].mxu0 %v1923
        %v2473 = vpop.f32.mrb[0].mxu0
        %v2474 = vadd.f32 %v2350, %v2473
        %v2475 = vpop.f32.mrb[0].mxu0
        %2476 = vmatprep.mubr.f32.mxu0 %v1956
        %2477 = vmatmul.mubr.f32.gmra.mrb[0].mxu0 %v1924
        %v2478 = vpop.f32.mrb[0].mxu0
        %v2479 = vadd.f32 %v2350, %v2478
        %v2480 = vpop.f32.mrb[0].mxu0
        %2481 = vmatprep.mubr.f32.mxu0 %v1957
        %2482 = vmatmul.mubr.f32.gmra.mrb[0].mxu0 %v1925
        %v2483 = vpop.f32.mrb[0].mxu0
        %v2484 = vadd.f32 %v2350, %v2483
        %v2485 = vpop.f32.mrb[0].mxu0
        %2486 = vmatprep.mubr.f32.mxu0 %v1958
        %2487 = vmatmul.mubr.f32.gmra.mrb[0].mxu0 %v1926
        %v2488 = vpop.f32.mrb[0].mxu0
        %v2489 = vadd.f32 %v2350, %v2488
        %v2490 = vpop.f32.mrb[0].mxu0
        %2491 = vmatprep.mubr.f32.mxu0 %v1959
        %2492 = vmatmul.mubr.f32.gmra.mrb[0].mxu0 %v1927
        %v2493 = vpop.f32.mrb[0].mxu0
        %v2494 = vadd.f32 %v2350, %v2493
        %v2495 = vpop.f32.mrb[0].mxu0
        %2496 = vmatprep.mubr.f32.mxu0 %v1960
        %2497 = vmatmul.mubr.f32.gmra.mrb[0].mxu0 %v1928
        %v2498 = vpop.f32.mrb[0].mxu0
        %v2499 = vadd.f32 %v2350, %v2498
        %v2500 = vpop.f32.mrb[0].mxu0
        %2501 = vmatprep.mubr.f32.mxu0 %v1961
        %2502 = vmatmul.mubr.f32.gmra.mrb[0].mxu0 %v1929
        %v2503 = vpop.f32.mrb[0].mxu0
        %v2504 = vadd.f32 %v2350, %v2503
        %v2505 = vpop.f32.mrb[0].mxu0
        %2506 = vmatprep.mubr.f32.mxu0 %v1962
        %2507 = vmatmul.mubr.f32.gmra.mrb[0].mxu0 %v1930
        %v2508 = vpop.f32.mrb[0].mxu0
        %v2509 = vadd.f32 %v2350, %v2508
        %v2510 = vpop.f32.mrb[0].mxu0
        %2511 = vmatprep.mubr.f32.mxu0 %v1963
        %2512 = vmatmul.mubr.f32.gmra.mrb[0].mxu0 %v1931
        %v2513 = vpop.f32.mrb[0].mxu0
        %v2514 = vadd.f32 %v2350, %v2513
        %v2515 = vpop.f32.mrb[0].mxu0
        %2516 = vmatprep.mubr.f32.mxu0 %v1964
        %2517 = vmatmul.mubr.f32.gmra.mrb[0].mxu0 %v1932
        %v2518 = vpop.f32.mrb[0].mxu0
        %v2519 = vadd.f32 %v2350, %v2518
        %v2520 = vpop.f32.mrb[0].mxu0
        %2521 = vmatprep.mubr.f32.mxu0 %v1965
        %2522 = vmatmul.mubr.f32.gmra.mrb[0].mxu0 %v1933
        %v2523 = vpop.f32.mrb[0].mxu0
        %v2524 = vadd.f32 %v2350, %v2523
        %v2525 = vpop.f32.mrb[0].mxu0
        %2526 = vmatprep.mubr.f32.mxu0 %v1966
        %2527 = vmatmul.mubr.f32.gmra.mrb[0].mxu0 %v1934
        %v2528 = vpop.f32.mrb[0].mxu0
        %v2529 = vadd.f32 %v2350, %v2528
        %v2530 = vpop.f32.mrb[0].mxu0
        %2531 = vmatprep.mubr.f32.mxu0 %v1967
        %2532 = vmatmul.mubr.f32.gmra.mrb[0].mxu0 %v1935
        %v2533 = vpop.f32.mrb[0].mxu0
        %v2534 = vadd.f32 %v2350, %v2533
        %v2535 = vpop.f32.mrb[0].mxu0
        %2536 = vmatprep.mubr.f32.mxu0 %v1968
        %2537 = vmatmul.mubr.f32.gmra.mrb[0].mxu0 %v1936
        %v2538 = vpop.f32.mrb[0].mxu0
        %v2539 = vadd.f32 %v2350, %v2538
        %v2540 = vpop.f32.mrb[0].mxu0
        %2541 = vmatprep.mubr.f32.mxu0 %v1969
        %2542 = vmatmul.mubr.f32.gmra.mrb[0].mxu0 %v1937
        %v2543 = vpop.f32.mrb[0].mxu0
        %v2544 = vadd.f32 %v2350, %v2543
        %v2545 = vpop.f32.mrb[0].mxu0
        %2546 = vmatprep.mubr.f32.mxu0 %v1970
        %2547 = vmatmul.mubr.f32.gmra.mrb[0].mxu0 %v1938
        %v2548 = vpop.f32.mrb[0].mxu0
        %v2549 = vadd.f32 %v2350, %v2548
        %v2550 = vpop.f32.mrb[0].mxu0
        %2551 = vmatprep.mubr.f32.mxu0 %v1971
        %2552 = vmatmul.mubr.f32.gmra.mrb[0].mxu0 %v1939
        %v2553 = vpop.f32.mrb[0].mxu0
        %v2554 = vadd.f32 %v2350, %v2553
        %v2555 = vpop.f32.mrb[0].mxu0
        %2556 = vmatprep.mubr.f32.mxu0 %v1972
        %2557 = vmatmul.mubr.f32.gmra.mrb[0].mxu0 %v1940
        %v2558 = vpop.f32.mrb[0].mxu0
        %v2559 = vadd.f32 %v2350, %v2558
        %v2560 = vpop.f32.mrb[0].mxu0
        %2561 = vmatprep.mubr.f32.mxu0 %v1973
        %2562 = vmatmul.mubr.f32.gmra.mrb[0].mxu0 %v1941
        %v2563 = vpop.f32.mrb[0].mxu0
        %v2564 = vadd.f32 %v2350, %v2563
        %v2565 = vpop.f32.mrb[0].mxu0
        %2566 = vmatprep.mubr.f32.mxu0 %v1974
        %2567 = vmatmul.mubr.f32.gmra.mrb[0].mxu0 %v1942
        %v2568 = vpop.f32.mrb[0].mxu0
        %v2569 = vadd.f32 %v2350, %v2568
        %v2570 = vpop.f32.mrb[0].mxu0
        %2571 = vmatprep.mubr.f32.mxu0 %v1975
        %2572 = vmatmul.mubr.f32.gmra.mrb[0].mxu0 %v1943
        %v2573 = vpop.f32.mrb[0].mxu0
        %v2574 = vadd.f32 %v2350, %v2573
        %v2575 = vpop.f32.mrb[0].mxu0
        %2576 = vdwg.mxu0
        %2577 = vmatprep.subr.mxu0 0.0
        %2578 = vmatpush1.msra.mxu0 %v2233
        %2579 = vmatprep.subr.mxu0 0.0
        %2580 = vmatpush1.msra.mxu0 %v2234
        %2581 = vmatprep.subr.mxu0 0.0
        %2582 = vmatpush1.msra.mxu0 %v2235
        %2583 = vmatprep.subr.mxu0 0.0
        %2584 = vmatpush1.msra.mxu0 %v2236
        %2585 = vmatprep.subr.mxu0 0.0
        %2586 = vmatpush1.msra.mxu0 %v2237
        %2587 = vmatprep.subr.mxu0 0.0
        %2588 = vmatpush1.msra.mxu0 %v2238
        %2589 = vmatprep.subr.mxu0 0.0
        %2590 = vmatpush1.msra.mxu0 %v2239
        %2591 = vmatprep.subr.mxu0 0.0
        %2592 = vmatpush1.msra.mxu0 %v2240
        %2593 = vmatprep.subr.mxu0 0.0
        %2594 = vmatpush1.msra.mxu0 %v2241
        %2595 = vmatprep.subr.mxu0 0.0
        %2596 = vmatpush1.msra.mxu0 %v2242
        %2597 = vmatprep.subr.mxu0 0.0
        %2598 = vmatpush1.msra.mxu0 %v2243
        %2599 = vmatprep.subr.mxu0 0.0
        %2600 = vmatpush1.msra.mxu0 %v2244
        %2601 = vmatprep.subr.mxu0 0.0
        %2602 = vmatpush1.msra.mxu0 %v2245
        %2603 = vmatprep.subr.mxu0 0.0
        %2604 = vmatpush1.msra.mxu0 %v2246
        %2605 = vmatprep.subr.mxu0 0.0
        %2606 = vmatpush1.msra.mxu0 %v2247
        %2607 = vmatprep.subr.mxu0 0.0
        %2608 = vmatpush1.msra.mxu0 %v2248
        %2609 = vmatprep.subr.mxu0 0.0
        %2610 = vmatpush1.msra.mxu0 %v2249
        %2611 = vmatprep.subr.mxu0 0.0
        %2612 = vmatpush1.msra.mxu0 %v2250
        %2613 = vmatprep.subr.mxu0 0.0
        %2614 = vmatpush1.msra.mxu0 %v2251
        %2615 = vmatprep.subr.mxu0 0.0
        %2616 = vmatpush1.msra.mxu0 %v2252
        %2617 = vmatprep.subr.mxu0 0.0
        %2618 = vmatpush1.msra.mxu0 %v2253
        %2619 = vmatprep.subr.mxu0 0.0
        %2620 = vmatpush1.msra.mxu0 %v2254
        %2621 = vmatprep.subr.mxu0 0.0
        %2622 = vmatpush1.msra.mxu0 %v2255
        %2623 = vmatprep.subr.mxu0 0.0
        %2624 = vmatpush1.msra.mxu0 %v2256
        %2625 = vmatprep.subr.mxu0 0.0
        %2626 = vmatpush1.msra.mxu0 %v2257
        %2627 = vmatprep.subr.mxu0 0.0
        %2628 = vmatpush1.msra.mxu0 %v2258
        %2629 = vmatprep.subr.mxu0 0.0
        %2630 = vmatpush1.msra.mxu0 %v2259
        %2631 = vmatprep.subr.mxu0 0.0
        %2632 = vmatpush1.msra.mxu0 %v2260
        %2633 = vmatprep.subr.mxu0 0.0
        %2634 = vmatpush1.msra.mxu0 %v2261
        %2635 = vmatprep.subr.mxu0 0.0
        %2636 = vmatpush1.msra.mxu0 %v2262
        %2637 = vmatprep.subr.mxu0 0.0
        %2638 = vmatpush1.msra.mxu0 %v2263
        %2639 = vmatprep.subr.mxu0 0.0
        %2640 = vmatpush1.msra.mxu0 %v2264
        %2641 = vmatprep.mubr.f32.mxu0 %v2008
        %2642 = vmatmul.mubr.f32.gmra.mrb[0].mxu0 %v1976
        %v2643 = vpop.f32.mrb[0].mxu0
        %v2644 = vadd.f32 %v2419, %v2643
        %v2645 = vpop.f32.mrb[0].mxu0
        %2646 = vmatprep.mubr.f32.mxu0 %v2009
        %2647 = vmatmul.mubr.f32.gmra.mrb[0].mxu0 %v1977
        %v2648 = vpop.f32.mrb[0].mxu0
        %v2649 = vadd.f32 %v2424, %v2648
        %v2650 = vpop.f32.mrb[0].mxu0
        %2651 = vmatprep.mubr.f32.mxu0 %v2010
        %2652 = vmatmul.mubr.f32.gmra.mrb[0].mxu0 %v1978
        %v2653 = vpop.f32.mrb[0].mxu0
        %v2654 = vadd.f32 %v2429, %v2653
        %v2655 = vpop.f32.mrb[0].mxu0
        %2656 = vmatprep.mubr.f32.mxu0 %v2011
        %2657 = vmatmul.mubr.f32.gmra.mrb[0].mxu0 %v1979
        %v2658 = vpop.f32.mrb[0].mxu0
        %v2659 = vadd.f32 %v2434, %v2658
        %v2660 = vpop.f32.mrb[0].mxu0
        %2661 = vmatprep.mubr.f32.mxu0 %v2012
        %2662 = vmatmul.mubr.f32.gmra.mrb[0].mxu0 %v1980
        %v2663 = vpop.f32.mrb[0].mxu0
        %v2664 = vadd.f32 %v2439, %v2663
        %v2665 = vpop.f32.mrb[0].mxu0
        %2666 = vmatprep.mubr.f32.mxu0 %v2013
        %2667 = vmatmul.mubr.f32.gmra.mrb[0].mxu0 %v1981
        %v2668 = vpop.f32.mrb[0].mxu0
        %v2669 = vadd.f32 %v2444, %v2668
        %v2670 = vpop.f32.mrb[0].mxu0
        %2671 = vmatprep.mubr.f32.mxu0 %v2014
        %2672 = vmatmul.mubr.f32.gmra.mrb[0].mxu0 %v1982
        %v2673 = vpop.f32.mrb[0].mxu0
        %v2674 = vadd.f32 %v2449, %v2673
        %v2675 = vpop.f32.mrb[0].mxu0
        %2676 = vmatprep.mubr.f32.mxu0 %v2015
        %2677 = vmatmul.mubr.f32.gmra.mrb[0].mxu0 %v1983
        %v2678 = vpop.f32.mrb[0].mxu0
        %v2679 = vadd.f32 %v2454, %v2678
        %v2680 = vpop.f32.mrb[0].mxu0
        %2681 = vmatprep.mubr.f32.mxu0 %v2016
        %2682 = vmatmul.mubr.f32.gmra.mrb[0].mxu0 %v1984
        %v2683 = vpop.f32.mrb[0].mxu0
        %v2684 = vadd.f32 %v2459, %v2683
        %v2685 = vpop.f32.mrb[0].mxu0
        %2686 = vmatprep.mubr.f32.mxu0 %v2017
        %2687 = vmatmul.mubr.f32.gmra.mrb[0].mxu0 %v1985
        %v2688 = vpop.f32.mrb[0].mxu0
        %v2689 = vadd.f32 %v2464, %v2688
        %v2690 = vpop.f32.mrb[0].mxu0
        %2691 = vmatprep.mubr.f32.mxu0 %v2018
        %2692 = vmatmul.mubr.f32.gmra.mrb[0].mxu0 %v1986
        %v2693 = vpop.f32.mrb[0].mxu0
        %v2694 = vadd.f32 %v2469, %v2693
        %v2695 = vpop.f32.mrb[0].mxu0
        %2696 = vmatprep.mubr.f32.mxu0 %v2019
        %2697 = vmatmul.mubr.f32.gmra.mrb[0].mxu0 %v1987
        %v2698 = vpop.f32.mrb[0].mxu0
        %v2699 = vadd.f32 %v2474, %v2698
        %v2700 = vpop.f32.mrb[0].mxu0
        %2701 = vmatprep.mubr.f32.mxu0 %v2020
        %2702 = vmatmul.mubr.f32.gmra.mrb[0].mxu0 %v1988
        %v2703 = vpop.f32.mrb[0].mxu0
        %v2704 = vadd.f32 %v2479, %v2703
        %v2705 = vpop.f32.mrb[0].mxu0
        %2706 = vmatprep.mubr.f32.mxu0 %v2021
        %2707 = vmatmul.mubr.f32.gmra.mrb[0].mxu0 %v1989
        %v2708 = vpop.f32.mrb[0].mxu0
        %v2709 = vadd.f32 %v2484, %v2708
        %v2710 = vpop.f32.mrb[0].mxu0
        %2711 = vmatprep.mubr.f32.mxu0 %v2022
        %2712 = vmatmul.mubr.f32.gmra.mrb[0].mxu0 %v1990
        %v2713 = vpop.f32.mrb[0].mxu0
        %v2714 = vadd.f32 %v2489, %v2713
        %v2715 = vpop.f32.mrb[0].mxu0
        %2716 = vmatprep.mubr.f32.mxu0 %v2023
        %2717 = vmatmul.mubr.f32.gmra.mrb[0].mxu0 %v1991
        %v2718 = vpop.f32.mrb[0].mxu0
        %v2719 = vadd.f32 %v2494, %v2718
        %v2720 = vpop.f32.mrb[0].mxu0
        %2721 = vmatprep.mubr.f32.mxu0 %v2024
        %2722 = vmatmul.mubr.f32.gmra.mrb[0].mxu0 %v1992
        %v2723 = vpop.f32.mrb[0].mxu0
        %v2724 = vadd.f32 %v2499, %v2723
        %v2725 = vpop.f32.mrb[0].mxu0
        %2726 = vmatprep.mubr.f32.mxu0 %v2025
        %2727 = vmatmul.mubr.f32.gmra.mrb[0].mxu0 %v1993
        %v2728 = vpop.f32.mrb[0].mxu0
        %v2729 = vadd.f32 %v2504, %v2728
        %v2730 = vpop.f32.mrb[0].mxu0
        %2731 = vmatprep.mubr.f32.mxu0 %v2026
        %2732 = vmatmul.mubr.f32.gmra.mrb[0].mxu0 %v1994
        %v2733 = vpop.f32.mrb[0].mxu0
        %v2734 = vadd.f32 %v2509, %v2733
        %v2735 = vpop.f32.mrb[0].mxu0
        %2736 = vmatprep.mubr.f32.mxu0 %v2027
        %2737 = vmatmul.mubr.f32.gmra.mrb[0].mxu0 %v1995
        %v2738 = vpop.f32.mrb[0].mxu0
        %v2739 = vadd.f32 %v2514, %v2738
        %v2740 = vpop.f32.mrb[0].mxu0
        %2741 = vmatprep.mubr.f32.mxu0 %v2028
        %2742 = vmatmul.mubr.f32.gmra.mrb[0].mxu0 %v1996
        %v2743 = vpop.f32.mrb[0].mxu0
        %v2744 = vadd.f32 %v2519, %v2743
        %v2745 = vpop.f32.mrb[0].mxu0
        %2746 = vmatprep.mubr.f32.mxu0 %v2029
        %2747 = vmatmul.mubr.f32.gmra.mrb[0].mxu0 %v1997
        %v2748 = vpop.f32.mrb[0].mxu0
        %v2749 = vadd.f32 %v2524, %v2748
        %v2750 = vpop.f32.mrb[0].mxu0
        %2751 = vmatprep.mubr.f32.mxu0 %v2030
        %2752 = vmatmul.mubr.f32.gmra.mrb[0].mxu0 %v1998
        %v2753 = vpop.f32.mrb[0].mxu0
        %v2754 = vadd.f32 %v2529, %v2753
        %v2755 = vpop.f32.mrb[0].mxu0
        %2756 = vmatprep.mubr.f32.mxu0 %v2031
        %2757 = vmatmul.mubr.f32.gmra.mrb[0].mxu0 %v1999
        %v2758 = vpop.f32.mrb[0].mxu0
        %v2759 = vadd.f32 %v2534, %v2758
        %v2760 = vpop.f32.mrb[0].mxu0
        %2761 = vmatprep.mubr.f32.mxu0 %v2032
        %2762 = vmatmul.mubr.f32.gmra.mrb[0].mxu0 %v2000
        %v2763 = vpop.f32.mrb[0].mxu0
        %v2764 = vadd.f32 %v2539, %v2763
        %v2765 = vpop.f32.mrb[0].mxu0
        %2766 = vmatprep.mubr.f32.mxu0 %v2033
        %2767 = vmatmul.mubr.f32.gmra.mrb[0].mxu0 %v2001
        %v2768 = vpop.f32.mrb[0].mxu0
        %v2769 = vadd.f32 %v2544, %v2768
        %v2770 = vpop.f32.mrb[0].mxu0
        %2771 = vmatprep.mubr.f32.mxu0 %v2034
        %2772 = vmatmul.mubr.f32.gmra.mrb[0].mxu0 %v2002
        %v2773 = vpop.f32.mrb[0].mxu0
        %v2774 = vadd.f32 %v2549, %v2773
        %v2775 = vpop.f32.mrb[0].mxu0
        %2776 = vmatprep.mubr.f32.mxu0 %v2035
        %2777 = vmatmul.mubr.f32.gmra.mrb[0].mxu0 %v2003
        %v2778 = vpop.f32.mrb[0].mxu0
        %v2779 = vadd.f32 %v2554, %v2778
        %v2780 = vpop.f32.mrb[0].mxu0
        %2781 = vmatprep.mubr.f32.mxu0 %v2036
        %2782 = vmatmul.mubr.f32.gmra.mrb[0].mxu0 %v2004
        %v2783 = vpop.f32.mrb[0].mxu0
        %v2784 = vadd.f32 %v2559, %v2783
        %v2785 = vpop.f32.mrb[0].mxu0
        %2786 = vmatprep.mubr.f32.mxu0 %v2037
        %2787 = vmatmul.mubr.f32.gmra.mrb[0].mxu0 %v2005
        %v2788 = vpop.f32.mrb[0].mxu0
        %v2789 = vadd.f32 %v2564, %v2788
        %v2790 = vpop.f32.mrb[0].mxu0
        %2791 = vmatprep.mubr.f32.mxu0 %v2038
        %2792 = vmatmul.mubr.f32.gmra.mrb[0].mxu0 %v2006
        %v2793 = vpop.f32.mrb[0].mxu0
        %v2794 = vadd.f32 %v2569, %v2793
        %v2795 = vpop.f32.mrb[0].mxu0
        %2796 = vmatprep.mubr.f32.mxu0 %v2039
        %2797 = vmatmul.mubr.f32.gmra.mrb[0].mxu0 %v2007
        %v2798 = vpop.f32.mrb[0].mxu0
        %v2799 = vadd.f32 %v2574, %v2798
        %v2800 = vpop.f32.mrb[0].mxu0
        %2801 = vdwg.mxu0
        %2802 = vmatprep.subr.mxu0 0.0
        %2803 = vmatpush1.msra.mxu0 %v2265
        %2804 = vmatprep.subr.mxu0 0.0
        %2805 = vmatpush1.msra.mxu0 %v2266
        %2806 = vmatprep.subr.mxu0 0.0
        %2807 = vmatpush1.msra.mxu0 %v2267
        %2808 = vmatprep.subr.mxu0 0.0
        %2809 = vmatpush1.msra.mxu0 %v2268
        %2810 = vmatprep.subr.mxu0 0.0
        %2811 = vmatpush1.msra.mxu0 %v2269
        %2812 = vmatprep.subr.mxu0 0.0
        %2813 = vmatpush1.msra.mxu0 %v2270
        %2814 = vmatprep.subr.mxu0 0.0
        %2815 = vmatpush1.msra.mxu0 %v2271
        %2816 = vmatprep.subr.mxu0 0.0
        %2817 = vmatpush1.msra.mxu0 %v2272
        %2818 = vmatprep.subr.mxu0 0.0
        %2819 = vmatpush1.msra.mxu0 %v2273
        %2820 = vmatprep.subr.mxu0 0.0
        %2821 = vmatpush1.msra.mxu0 %v2274
        %2822 = vmatprep.subr.mxu0 0.0
        %2823 = vmatpush1.msra.mxu0 %v2275
        %2824 = vmatprep.subr.mxu0 0.0
        %2825 = vmatpush1.msra.mxu0 %v2276
        %2826 = vmatprep.subr.mxu0 0.0
        %2827 = vmatpush1.msra.mxu0 %v2277
        %2828 = vmatprep.subr.mxu0 0.0
        %2829 = vmatpush1.msra.mxu0 %v2278
        %2830 = vmatprep.subr.mxu0 0.0
        %2831 = vmatpush1.msra.mxu0 %v2279
        %2832 = vmatprep.subr.mxu0 0.0
        %2833 = vmatpush1.msra.mxu0 %v2280
        %2834 = vmatprep.subr.mxu0 0.0
        %2835 = vmatpush1.msra.mxu0 %v2281
        %2836 = vmatprep.subr.mxu0 0.0
        %2837 = vmatpush1.msra.mxu0 %v2282
        %2838 = vmatprep.subr.mxu0 0.0
        %2839 = vmatpush1.msra.mxu0 %v2283
        %2840 = vmatprep.subr.mxu0 0.0
        %2841 = vmatpush1.msra.mxu0 %v2284
        %2842 = vmatprep.subr.mxu0 0.0
        %2843 = vmatpush1.msra.mxu0 %v2285
        %2844 = vmatprep.subr.mxu0 0.0
        %2845 = vmatpush1.msra.mxu0 %v2286
        %2846 = vmatprep.subr.mxu0 0.0
        %2847 = vmatpush1.msra.mxu0 %v2287
        %2848 = vmatprep.subr.mxu0 0.0
        %2849 = vmatpush1.msra.mxu0 %v2288
        %2850 = vmatprep.subr.mxu0 0.0
        %2851 = vmatpush1.msra.mxu0 %v2289
        %2852 = vmatprep.subr.mxu0 0.0
        %2853 = vmatpush1.msra.mxu0 %v2290
        %2854 = vmatprep.subr.mxu0 0.0
        %2855 = vmatpush1.msra.mxu0 %v2291
        %2856 = vmatprep.subr.mxu0 0.0
        %2857 = vmatpush1.msra.mxu0 %v2292
        %2858 = vmatprep.subr.mxu0 0.0
        %2859 = vmatpush1.msra.mxu0 %v2293
        %2860 = vmatprep.subr.mxu0 0.0
        %2861 = vmatpush1.msra.mxu0 %v2294
        %2862 = vmatprep.subr.mxu0 0.0
        %2863 = vmatpush1.msra.mxu0 %v2295
        %2864 = vmatprep.subr.mxu0 0.0
        %2865 = vmatpush1.msra.mxu0 %v2296
        %2866 = vmatprep.mubr.f32.mxu0 %v2072
        %2867 = vmatmul.mubr.f32.gmra.mrb[0].mxu0 %v2040
        %v2868 = vpop.f32.mrb[0].mxu0
        %v2869 = vadd.f32 %v2644, %v2868
        %v2870 = vpop.f32.mrb[0].mxu0
        %2871 = vmatprep.mubr.f32.mxu0 %v2073
        %2872 = vmatmul.mubr.f32.gmra.mrb[0].mxu0 %v2041
        %v2873 = vpop.f32.mrb[0].mxu0
        %v2874 = vadd.f32 %v2649, %v2873
        %v2875 = vpop.f32.mrb[0].mxu0
        %2876 = vmatprep.mubr.f32.mxu0 %v2074
        %2877 = vmatmul.mubr.f32.gmra.mrb[0].mxu0 %v2042
        %v2878 = vpop.f32.mrb[0].mxu0
        %v2879 = vadd.f32 %v2654, %v2878
        %v2880 = vpop.f32.mrb[0].mxu0
        %2881 = vmatprep.mubr.f32.mxu0 %v2075
        %2882 = vmatmul.mubr.f32.gmra.mrb[0].mxu0 %v2043
        %v2883 = vpop.f32.mrb[0].mxu0
        %v2884 = vadd.f32 %v2659, %v2883
        %v2885 = vpop.f32.mrb[0].mxu0
        %2886 = vmatprep.mubr.f32.mxu0 %v2076
        %2887 = vmatmul.mubr.f32.gmra.mrb[0].mxu0 %v2044
        %v2888 = vpop.f32.mrb[0].mxu0
        %v2889 = vadd.f32 %v2664, %v2888
        %v2890 = vpop.f32.mrb[0].mxu0
        %2891 = vmatprep.mubr.f32.mxu0 %v2077
        %2892 = vmatmul.mubr.f32.gmra.mrb[0].mxu0 %v2045
        %v2893 = vpop.f32.mrb[0].mxu0
        %v2894 = vadd.f32 %v2669, %v2893
        %v2895 = vpop.f32.mrb[0].mxu0
        %2896 = vmatprep.mubr.f32.mxu0 %v2078
        %2897 = vmatmul.mubr.f32.gmra.mrb[0].mxu0 %v2046
        %v2898 = vpop.f32.mrb[0].mxu0
        %v2899 = vadd.f32 %v2674, %v2898
        %v2900 = vpop.f32.mrb[0].mxu0
        %2901 = vmatprep.mubr.f32.mxu0 %v2079
        %2902 = vmatmul.mubr.f32.gmra.mrb[0].mxu0 %v2047
        %v2903 = vpop.f32.mrb[0].mxu0
        %v2904 = vadd.f32 %v2679, %v2903
        %v2905 = vpop.f32.mrb[0].mxu0
        %2906 = vmatprep.mubr.f32.mxu0 %v2080
        %2907 = vmatmul.mubr.f32.gmra.mrb[0].mxu0 %v2048
        %v2908 = vpop.f32.mrb[0].mxu0
        %v2909 = vadd.f32 %v2684, %v2908
        %v2910 = vpop.f32.mrb[0].mxu0
        %2911 = vmatprep.mubr.f32.mxu0 %v2081
        %2912 = vmatmul.mubr.f32.gmra.mrb[0].mxu0 %v2049
        %v2913 = vpop.f32.mrb[0].mxu0
        %v2914 = vadd.f32 %v2689, %v2913
        %v2915 = vpop.f32.mrb[0].mxu0
        %2916 = vmatprep.mubr.f32.mxu0 %v2082
        %2917 = vmatmul.mubr.f32.gmra.mrb[0].mxu0 %v2050
        %v2918 = vpop.f32.mrb[0].mxu0
        %v2919 = vadd.f32 %v2694, %v2918
        %v2920 = vpop.f32.mrb[0].mxu0
        %2921 = vmatprep.mubr.f32.mxu0 %v2083
        %2922 = vmatmul.mubr.f32.gmra.mrb[0].mxu0 %v2051
        %v2923 = vpop.f32.mrb[0].mxu0
        %v2924 = vadd.f32 %v2699, %v2923
        %v2925 = vpop.f32.mrb[0].mxu0
        %2926 = vmatprep.mubr.f32.mxu0 %v2084
        %2927 = vmatmul.mubr.f32.gmra.mrb[0].mxu0 %v2052
        %v2928 = vpop.f32.mrb[0].mxu0
        %v2929 = vadd.f32 %v2704, %v2928
        %v2930 = vpop.f32.mrb[0].mxu0
        %2931 = vmatprep.mubr.f32.mxu0 %v2085
        %2932 = vmatmul.mubr.f32.gmra.mrb[0].mxu0 %v2053
        %v2933 = vpop.f32.mrb[0].mxu0
        %v2934 = vadd.f32 %v2709, %v2933
        %v2935 = vpop.f32.mrb[0].mxu0
        %2936 = vmatprep.mubr.f32.mxu0 %v2086
        %2937 = vmatmul.mubr.f32.gmra.mrb[0].mxu0 %v2054
        %v2938 = vpop.f32.mrb[0].mxu0
        %v2939 = vadd.f32 %v2714, %v2938
        %v2940 = vpop.f32.mrb[0].mxu0
        %2941 = vmatprep.mubr.f32.mxu0 %v2087
        %2942 = vmatmul.mubr.f32.gmra.mrb[0].mxu0 %v2055
        %v2943 = vpop.f32.mrb[0].mxu0
        %v2944 = vadd.f32 %v2719, %v2943
        %v2945 = vpop.f32.mrb[0].mxu0
        %2946 = vmatprep.mubr.f32.mxu0 %v2088
        %2947 = vmatmul.mubr.f32.gmra.mrb[0].mxu0 %v2056
        %v2948 = vpop.f32.mrb[0].mxu0
        %v2949 = vadd.f32 %v2724, %v2948
        %v2950 = vpop.f32.mrb[0].mxu0
        %2951 = vmatprep.mubr.f32.mxu0 %v2089
        %2952 = vmatmul.mubr.f32.gmra.mrb[0].mxu0 %v2057
        %v2953 = vpop.f32.mrb[0].mxu0
        %v2954 = vadd.f32 %v2729, %v2953
        %v2955 = vpop.f32.mrb[0].mxu0
        %2956 = vmatprep.mubr.f32.mxu0 %v2090
        %2957 = vmatmul.mubr.f32.gmra.mrb[0].mxu0 %v2058
        %v2958 = vpop.f32.mrb[0].mxu0
        %v2959 = vadd.f32 %v2734, %v2958
        %v2960 = vpop.f32.mrb[0].mxu0
        %2961 = vmatprep.mubr.f32.mxu0 %v2091
        %2962 = vmatmul.mubr.f32.gmra.mrb[0].mxu0 %v2059
        %v2963 = vpop.f32.mrb[0].mxu0
        %v2964 = vadd.f32 %v2739, %v2963
        %v2965 = vpop.f32.mrb[0].mxu0
        %2966 = vmatprep.mubr.f32.mxu0 %v2092
        %2967 = vmatmul.mubr.f32.gmra.mrb[0].mxu0 %v2060
        %v2968 = vpop.f32.mrb[0].mxu0
        %v2969 = vadd.f32 %v2744, %v2968
        %v2970 = vpop.f32.mrb[0].mxu0
        %2971 = vmatprep.mubr.f32.mxu0 %v2093
        %2972 = vmatmul.mubr.f32.gmra.mrb[0].mxu0 %v2061
        %v2973 = vpop.f32.mrb[0].mxu0
        %v2974 = vadd.f32 %v2749, %v2973
        %v2975 = vpop.f32.mrb[0].mxu0
        %2976 = vmatprep.mubr.f32.mxu0 %v2094
        %2977 = vmatmul.mubr.f32.gmra.mrb[0].mxu0 %v2062
        %v2978 = vpop.f32.mrb[0].mxu0
        %v2979 = vadd.f32 %v2754, %v2978
        %v2980 = vpop.f32.mrb[0].mxu0
        %2981 = vmatprep.mubr.f32.mxu0 %v2095
        %2982 = vmatmul.mubr.f32.gmra.mrb[0].mxu0 %v2063
        %v2983 = vpop.f32.mrb[0].mxu0
        %v2984 = vadd.f32 %v2759, %v2983
        %v2985 = vpop.f32.mrb[0].mxu0
        %2986 = vmatprep.mubr.f32.mxu0 %v2096
        %2987 = vmatmul.mubr.f32.gmra.mrb[0].mxu0 %v2064
        %v2988 = vpop.f32.mrb[0].mxu0
        %v2989 = vadd.f32 %v2764, %v2988
        %v2990 = vpop.f32.mrb[0].mxu0
        %2991 = vmatprep.mubr.f32.mxu0 %v2097
        %2992 = vmatmul.mubr.f32.gmra.mrb[0].mxu0 %v2065
        %v2993 = vpop.f32.mrb[0].mxu0
        %v2994 = vadd.f32 %v2769, %v2993
        %v2995 = vpop.f32.mrb[0].mxu0
        %2996 = vmatprep.mubr.f32.mxu0 %v2098
        %2997 = vmatmul.mubr.f32.gmra.mrb[0].mxu0 %v2066
        %v2998 = vpop.f32.mrb[0].mxu0
        %v2999 = vadd.f32 %v2774, %v2998
        %v3000 = vpop.f32.mrb[0].mxu0
        %3001 = vmatprep.mubr.f32.mxu0 %v2099
        %3002 = vmatmul.mubr.f32.gmra.mrb[0].mxu0 %v2067
        %v3003 = vpop.f32.mrb[0].mxu0
        %v3004 = vadd.f32 %v2779, %v3003
        %v3005 = vpop.f32.mrb[0].mxu0
        %3006 = vmatprep.mubr.f32.mxu0 %v2100
        %3007 = vmatmul.mubr.f32.gmra.mrb[0].mxu0 %v2068
        %v3008 = vpop.f32.mrb[0].mxu0
        %v3009 = vadd.f32 %v2784, %v3008
        %v3010 = vpop.f32.mrb[0].mxu0
        %3011 = vmatprep.mubr.f32.mxu0 %v2101
        %3012 = vmatmul.mubr.f32.gmra.mrb[0].mxu0 %v2069
        %v3013 = vpop.f32.mrb[0].mxu0
        %v3014 = vadd.f32 %v2789, %v3013
        %v3015 = vpop.f32.mrb[0].mxu0
        %3016 = vmatprep.mubr.f32.mxu0 %v2102
        %3017 = vmatmul.mubr.f32.gmra.mrb[0].mxu0 %v2070
        %v3018 = vpop.f32.mrb[0].mxu0
        %v3019 = vadd.f32 %v2794, %v3018
        %v3020 = vpop.f32.mrb[0].mxu0
        %3021 = vmatprep.mubr.f32.mxu0 %v2103
        %3022 = vmatmul.mubr.f32.gmra.mrb[0].mxu0 %v2071
        %v3023 = vpop.f32.mrb[0].mxu0
        %v3024 = vadd.f32 %v2799, %v3023
        %v3025 = vpop.f32.mrb[0].mxu0
        %3026 = vdwg.mxu0
        %3027 = vmatprep.subr.mxu0 0.0
        %3028 = vmatpush1.msra.mxu0 %v2297
        %3029 = vmatprep.subr.mxu0 0.0
        %3030 = vmatpush1.msra.mxu0 %v2298
        %3031 = vmatprep.subr.mxu0 0.0
        %3032 = vmatpush1.msra.mxu0 %v2299
        %3033 = vmatprep.subr.mxu0 0.0
        %3034 = vmatpush1.msra.mxu0 %v2300
        %3035 = vmatprep.subr.mxu0 0.0
        %3036 = vmatpush1.msra.mxu0 %v2301
        %3037 = vmatprep.subr.mxu0 0.0
        %3038 = vmatpush1.msra.mxu0 %v2302
        %3039 = vmatprep.subr.mxu0 0.0
        %3040 = vmatpush1.msra.mxu0 %v2303
        %3041 = vmatprep.subr.mxu0 0.0
        %3042 = vmatpush1.msra.mxu0 %v2304
        %3043 = vmatprep.subr.mxu0 0.0
        %3044 = vmatpush1.msra.mxu0 %v2305
        %3045 = vmatprep.subr.mxu0 0.0
        %3046 = vmatpush1.msra.mxu0 %v2306
        %3047 = vmatprep.subr.mxu0 0.0
        %3048 = vmatpush1.msra.mxu0 %v2307
        %3049 = vmatprep.subr.mxu0 0.0
        %3050 = vmatpush1.msra.mxu0 %v2308
        %3051 = vmatprep.subr.mxu0 0.0
        %3052 = vmatpush1.msra.mxu0 %v2309
        %3053 = vmatprep.subr.mxu0 0.0
        %3054 = vmatpush1.msra.mxu0 %v2310
        %3055 = vmatprep.subr.mxu0 0.0
        %3056 = vmatpush1.msra.mxu0 %v2311
        %3057 = vmatprep.subr.mxu0 0.0
        %3058 = vmatpush1.msra.mxu0 %v2312
        %3059 = vmatprep.subr.mxu0 0.0
        %3060 = vmatpush1.msra.mxu0 %v2313
        %3061 = vmatprep.subr.mxu0 0.0
        %3062 = vmatpush1.msra.mxu0 %v2314
        %3063 = vmatprep.subr.mxu0 0.0
        %3064 = vmatpush1.msra.mxu0 %v2315
        %3065 = vmatprep.subr.mxu0 0.0
        %3066 = vmatpush1.msra.mxu0 %v2316
        %3067 = vmatprep.subr.mxu0 0.0
        %3068 = vmatpush1.msra.mxu0 %v2317
        %3069 = vmatprep.subr.mxu0 0.0
        %3070 = vmatpush1.msra.mxu0 %v2318
        %3071 = vmatprep.subr.mxu0 0.0
        %3072 = vmatpush1.msra.mxu0 %v2319
        %3073 = vmatprep.subr.mxu0 0.0
        %3074 = vmatpush1.msra.mxu0 %v2320
        %3075 = vmatprep.subr.mxu0 0.0
        %3076 = vmatpush1.msra.mxu0 %v2321
        %3077 = vmatprep.subr.mxu0 0.0
        %3078 = vmatpush1.msra.mxu0 %v2322
        %3079 = vmatprep.subr.mxu0 0.0
        %3080 = vmatpush1.msra.mxu0 %v2323
        %3081 = vmatprep.subr.mxu0 0.0
        %3082 = vmatpush1.msra.mxu0 %v2324
        %3083 = vmatprep.subr.mxu0 0.0
        %3084 = vmatpush1.msra.mxu0 %v2325
        %3085 = vmatprep.subr.mxu0 0.0
        %3086 = vmatpush1.msra.mxu0 %v2326
        %3087 = vmatprep.subr.mxu0 0.0
        %3088 = vmatpush1.msra.mxu0 %v2327
        %3089 = vmatprep.subr.mxu0 0.0
        %3090 = vmatpush1.msra.mxu0 %v2328
        %3091 = vmatprep.mubr.f32.mxu0 %v2137
        %3092 = vmatmul.mubr.f32.gmra.mrb[0].mxu0 %v2105
        %v3093 = vpop.f32.mrb[0].mxu0
        %v3094 = vadd.f32 %v2869, %v3093
        %v3095 = vpop.f32.mrb[0].mxu0
        %3096 = vmatprep.mubr.f32.mxu0 %v2138
        %3097 = vmatmul.mubr.f32.gmra.mrb[0].mxu0 %v2106
        %v3098 = vpop.f32.mrb[0].mxu0
        %v3099 = vadd.f32 %v2874, %v3098
        %v3100 = vpop.f32.mrb[0].mxu0
        %3101 = vmatprep.mubr.f32.mxu0 %v2139
        %3102 = vmatmul.mubr.f32.gmra.mrb[0].mxu0 %v2107
        %v3103 = vpop.f32.mrb[0].mxu0
        %v3104 = vadd.f32 %v2879, %v3103
        %v3105 = vpop.f32.mrb[0].mxu0
        %3106 = vmatprep.mubr.f32.mxu0 %v2140
        %3107 = vmatmul.mubr.f32.gmra.mrb[0].mxu0 %v2108
        %v3108 = vpop.f32.mrb[0].mxu0
        %v3109 = vadd.f32 %v2884, %v3108
        %v3110 = vpop.f32.mrb[0].mxu0
        %3111 = vmatprep.mubr.f32.mxu0 %v2141
        %3112 = vmatmul.mubr.f32.gmra.mrb[0].mxu0 %v2109
        %v3113 = vpop.f32.mrb[0].mxu0
        %v3114 = vadd.f32 %v2889, %v3113
        %v3115 = vpop.f32.mrb[0].mxu0
        %3116 = vmatprep.mubr.f32.mxu0 %v2142
        %3117 = vmatmul.mubr.f32.gmra.mrb[0].mxu0 %v2110
        %v3118 = vpop.f32.mrb[0].mxu0
        %v3119 = vadd.f32 %v2894, %v3118
        %v3120 = vpop.f32.mrb[0].mxu0
        %3121 = vmatprep.mubr.f32.mxu0 %v2143
        %3122 = vmatmul.mubr.f32.gmra.mrb[0].mxu0 %v2111
        %v3123 = vpop.f32.mrb[0].mxu0
        %v3124 = vadd.f32 %v2899, %v3123
        %v3125 = vpop.f32.mrb[0].mxu0
        %3126 = vmatprep.mubr.f32.mxu0 %v2144
        %3127 = vmatmul.mubr.f32.gmra.mrb[0].mxu0 %v2112
        %v3128 = vpop.f32.mrb[0].mxu0
        %v3129 = vadd.f32 %v2904, %v3128
        %v3130 = vpop.f32.mrb[0].mxu0
        %3131 = vmatprep.mubr.f32.mxu0 %v2145
        %3132 = vmatmul.mubr.f32.gmra.mrb[0].mxu0 %v2113
        %v3133 = vpop.f32.mrb[0].mxu0
        %v3134 = vadd.f32 %v2909, %v3133
        %v3135 = vpop.f32.mrb[0].mxu0
        %3136 = vmatprep.mubr.f32.mxu0 %v2146
        %3137 = vmatmul.mubr.f32.gmra.mrb[0].mxu0 %v2114
        %v3138 = vpop.f32.mrb[0].mxu0
        %v3139 = vadd.f32 %v2914, %v3138
        %v3140 = vpop.f32.mrb[0].mxu0
        %3141 = vmatprep.mubr.f32.mxu0 %v2147
        %3142 = vmatmul.mubr.f32.gmra.mrb[0].mxu0 %v2115
        %v3143 = vpop.f32.mrb[0].mxu0
        %v3144 = vadd.f32 %v2919, %v3143
        %v3145 = vpop.f32.mrb[0].mxu0
        %3146 = vmatprep.mubr.f32.mxu0 %v2148
        %3147 = vmatmul.mubr.f32.gmra.mrb[0].mxu0 %v2116
        %v3148 = vpop.f32.mrb[0].mxu0
        %v3149 = vadd.f32 %v2924, %v3148
        %v3150 = vpop.f32.mrb[0].mxu0
        %3151 = vmatprep.mubr.f32.mxu0 %v2149
        %3152 = vmatmul.mubr.f32.gmra.mrb[0].mxu0 %v2117
        %v3153 = vpop.f32.mrb[0].mxu0
        %v3154 = vadd.f32 %v2929, %v3153
        %v3155 = vpop.f32.mrb[0].mxu0
        %3156 = vmatprep.mubr.f32.mxu0 %v2150
        %3157 = vmatmul.mubr.f32.gmra.mrb[0].mxu0 %v2118
        %v3158 = vpop.f32.mrb[0].mxu0
        %v3159 = vadd.f32 %v2934, %v3158
        %v3160 = vpop.f32.mrb[0].mxu0
        %3161 = vmatprep.mubr.f32.mxu0 %v2151
        %3162 = vmatmul.mubr.f32.gmra.mrb[0].mxu0 %v2119
        %v3163 = vpop.f32.mrb[0].mxu0
        %v3164 = vadd.f32 %v2939, %v3163
        %v3165 = vpop.f32.mrb[0].mxu0
        %3166 = vmatprep.mubr.f32.mxu0 %v2152
        %3167 = vmatmul.mubr.f32.gmra.mrb[0].mxu0 %v2120
        %v3168 = vpop.f32.mrb[0].mxu0
        %v3169 = vadd.f32 %v2944, %v3168
        %v3170 = vpop.f32.mrb[0].mxu0
        %3171 = vmatprep.mubr.f32.mxu0 %v2153
        %3172 = vmatmul.mubr.f32.gmra.mrb[0].mxu0 %v2121
        %v3173 = vpop.f32.mrb[0].mxu0
        %v3174 = vadd.f32 %v2949, %v3173
        %v3175 = vpop.f32.mrb[0].mxu0
        %3176 = vmatprep.mubr.f32.mxu0 %v2154
        %3177 = vmatmul.mubr.f32.gmra.mrb[0].mxu0 %v2122
        %v3178 = vpop.f32.mrb[0].mxu0
        %v3179 = vadd.f32 %v2954, %v3178
        %v3180 = vpop.f32.mrb[0].mxu0
        %3181 = vmatprep.mubr.f32.mxu0 %v2155
        %3182 = vmatmul.mubr.f32.gmra.mrb[0].mxu0 %v2123
        %v3183 = vpop.f32.mrb[0].mxu0
        %v3184 = vadd.f32 %v2959, %v3183
        %v3185 = vpop.f32.mrb[0].mxu0
        %3186 = vmatprep.mubr.f32.mxu0 %v2156
        %3187 = vmatmul.mubr.f32.gmra.mrb[0].mxu0 %v2124
        %v3188 = vpop.f32.mrb[0].mxu0
        %v3189 = vadd.f32 %v2964, %v3188
        %v3190 = vpop.f32.mrb[0].mxu0
        %3191 = vmatprep.mubr.f32.mxu0 %v2157
        %3192 = vmatmul.mubr.f32.gmra.mrb[0].mxu0 %v2125
        %v3193 = vpop.f32.mrb[0].mxu0
        %v3194 = vadd.f32 %v2969, %v3193
        %v3195 = vpop.f32.mrb[0].mxu0
        %3196 = vmatprep.mubr.f32.mxu0 %v2158
        %3197 = vmatmul.mubr.f32.gmra.mrb[0].mxu0 %v2126
        %v3198 = vpop.f32.mrb[0].mxu0
        %v3199 = vadd.f32 %v2974, %v3198
        %v3200 = vpop.f32.mrb[0].mxu0
        %3201 = vmatprep.mubr.f32.mxu0 %v2159
        %3202 = vmatmul.mubr.f32.gmra.mrb[0].mxu0 %v2127
        %v3203 = vpop.f32.mrb[0].mxu0
        %v3204 = vadd.f32 %v2979, %v3203
        %v3205 = vpop.f32.mrb[0].mxu0
        %3206 = vmatprep.mubr.f32.mxu0 %v2160
        %3207 = vmatmul.mubr.f32.gmra.mrb[0].mxu0 %v2128
        %v3208 = vpop.f32.mrb[0].mxu0
        %v3209 = vadd.f32 %v2984, %v3208
        %v3210 = vpop.f32.mrb[0].mxu0
        %3211 = vmatprep.mubr.f32.mxu0 %v2161
        %3212 = vmatmul.mubr.f32.gmra.mrb[0].mxu0 %v2129
        %v3213 = vpop.f32.mrb[0].mxu0
        %v3214 = vadd.f32 %v2989, %v3213
        %v3215 = vpop.f32.mrb[0].mxu0
        %3216 = vmatprep.mubr.f32.mxu0 %v2162
        %3217 = vmatmul.mubr.f32.gmra.mrb[0].mxu0 %v2130
        %v3218 = vpop.f32.mrb[0].mxu0
        %v3219 = vadd.f32 %v2994, %v3218
        %v3220 = vpop.f32.mrb[0].mxu0
        %3221 = vmatprep.mubr.f32.mxu0 %v2163
        %3222 = vmatmul.mubr.f32.gmra.mrb[0].mxu0 %v2131
        %v3223 = vpop.f32.mrb[0].mxu0
        %v3224 = vadd.f32 %v2999, %v3223
        %v3225 = vpop.f32.mrb[0].mxu0
        %3226 = vmatprep.mubr.f32.mxu0 %v2164
        %3227 = vmatmul.mubr.f32.gmra.mrb[0].mxu0 %v2132
        %v3228 = vpop.f32.mrb[0].mxu0
        %v3229 = vadd.f32 %v3004, %v3228
        %v3230 = vpop.f32.mrb[0].mxu0
        %3231 = vmatprep.mubr.f32.mxu0 %v2165
        %3232 = vmatmul.mubr.f32.gmra.mrb[0].mxu0 %v2133
        %v3233 = vpop.f32.mrb[0].mxu0
        %v3234 = vadd.f32 %v3009, %v3233
        %v3235 = vpop.f32.mrb[0].mxu0
        %3236 = vmatprep.mubr.f32.mxu0 %v2166
        %3237 = vmatmul.mubr.f32.gmra.mrb[0].mxu0 %v2134
        %v3238 = vpop.f32.mrb[0].mxu0
        %v3239 = vadd.f32 %v3014, %v3238
        %v3240 = vpop.f32.mrb[0].mxu0
        %3241 = vmatprep.mubr.f32.mxu0 %v2167
        %3242 = vmatmul.mubr.f32.gmra.mrb[0].mxu0 %v2135
        %v3243 = vpop.f32.mrb[0].mxu0
        %v3244 = vadd.f32 %v3019, %v3243
        %v3245 = vpop.f32.mrb[0].mxu0
        %3246 = vmatprep.mubr.f32.mxu0 %v2168
        %3247 = vmatmul.mubr.f32.gmra.mrb[0].mxu0 %v2136
        %v3248 = vpop.f32.mrb[0].mxu0
        %v3249 = vadd.f32 %v3024, %v3248
        %v3250 = vpop.f32.mrb[0].mxu0
        %3251 = vdwg.mxu0
        %3252 = vmatprep.subr.mxu0 0.0
        %3253 = vmatpush1.msra.mxu0 %v2329
        %3254 = vmatprep.subr.mxu0 0.0
        %3255 = vmatpush1.msra.mxu0 %v2330
        %3256 = vmatprep.subr.mxu0 0.0
        %3257 = vmatpush1.msra.mxu0 %v2331
        %3258 = vmatprep.subr.mxu0 0.0
        %3259 = vmatpush1.msra.mxu0 %v2332
        %3260 = vmatprep.subr.mxu0 0.0
        %3261 = vmatpush1.msra.mxu0 %v2333
        %3262 = vmatprep.subr.mxu0 0.0
        %3263 = vmatpush1.msra.mxu0 %v2334
        %3264 = vmatprep.subr.mxu0 0.0
        %3265 = vmatpush1.msra.mxu0 %v2335
        %3266 = vmatprep.subr.mxu0 0.0
        %3267 = vmatpush1.msra.mxu0 %v2336
        %3268 = vmatprep.subr.mxu0 0.0
        %3269 = vmatpush1.msra.mxu0 %v2337
        %3270 = vmatprep.subr.mxu0 0.0
        %3271 = vmatpush1.msra.mxu0 %v2338
        %3272 = vmatprep.subr.mxu0 0.0
        %3273 = vmatpush1.msra.mxu0 %v2339
        %3274 = vmatprep.subr.mxu0 0.0
        %3275 = vmatpush1.msra.mxu0 %v2340
        %3276 = vmatprep.subr.mxu0 0.0
        %3277 = vmatpush1.msra.mxu0 %v2341
        %3278 = vmatprep.subr.mxu0 0.0
        %3279 = vmatpush1.msra.mxu0 %v2342
        %3280 = vmatprep.subr.mxu0 0.0
        %3281 = vmatpush1.msra.mxu0 %v2343
        %3282 = vmatprep.subr.mxu0 0.0
        %3283 = vmatpush1.msra.mxu0 %v2344
        %3284 = vmatprep.subr.mxu0 0.0
        %3285 = vmatpush1.msra.mxu0 0.0
        %3286 = vmatprep.subr.mxu0 0.0
        %3287 = vmatpush1.msra.mxu0 0.0
        %3288 = vmatprep.subr.mxu0 0.0
        %3289 = vmatpush1.msra.mxu0 0.0
        %3290 = vmatprep.subr.mxu0 0.0
        %3291 = vmatpush1.msra.mxu0 0.0
        %3292 = vmatprep.subr.mxu0 0.0
        %3293 = vmatpush1.msra.mxu0 0.0
        %3294 = vmatprep.subr.mxu0 0.0
        %3295 = vmatpush1.msra.mxu0 0.0
        %3296 = vmatprep.subr.mxu0 0.0
        %3297 = vmatpush1.msra.mxu0 0.0
        %3298 = vmatprep.subr.mxu0 0.0
        %3299 = vmatpush1.msra.mxu0 0.0
        %3300 = vmatprep.subr.mxu0 0.0
        %3301 = vmatpush1.msra.mxu0 0.0
        %3302 = vmatprep.subr.mxu0 0.0
        %3303 = vmatpush1.msra.mxu0 0.0
        %3304 = vmatprep.subr.mxu0 0.0
        %3305 = vmatpush1.msra.mxu0 0.0
        %3306 = vmatprep.subr.mxu0 0.0
        %3307 = vmatpush1.msra.mxu0 0.0
        %3308 = vmatprep.subr.mxu0 0.0
        %3309 = vmatpush1.msra.mxu0 0.0
        %3310 = vmatprep.subr.mxu0 0.0
        %3311 = vmatpush1.msra.mxu0 0.0
        %3312 = vmatprep.subr.mxu0 0.0
        %3313 = vmatpush1.msra.mxu0 0.0
        %3314 = vmatprep.subr.mxu0 0.0
        %3315 = vmatpush1.msra.mxu0 0.0
        %3316 = vmatprep.mubr.f32.mxu0 0.0
        %3317 = vmatmul.mubr.f32.gmra.mrb[0].mxu0 %v2169
        %v3318 = vpop.f32.mrb[0].mxu0
        %v3319 = vadd.f32 %v3094, %v3318
        %v3320 = vpop.f32.mrb[0].mxu0
        %3321 = vmatprep.mubr.f32.mxu0 0.0
        %3322 = vmatmul.mubr.f32.gmra.mrb[0].mxu0 %v2170
        %v3323 = vpop.f32.mrb[0].mxu0
        %v3324 = vadd.f32 %v3099, %v3323
        %v3325 = vpop.f32.mrb[0].mxu0
        %3326 = vmatprep.mubr.f32.mxu0 0.0
        %3327 = vmatmul.mubr.f32.gmra.mrb[0].mxu0 %v2171
        %v3328 = vpop.f32.mrb[0].mxu0
        %v3329 = vadd.f32 %v3104, %v3328
        %v3330 = vpop.f32.mrb[0].mxu0
        %3331 = vmatprep.mubr.f32.mxu0 0.0
        %3332 = vmatmul.mubr.f32.gmra.mrb[0].mxu0 %v2172
        %v3333 = vpop.f32.mrb[0].mxu0
        %v3334 = vadd.f32 %v3109, %v3333
        %v3335 = vpop.f32.mrb[0].mxu0
        %3336 = vmatprep.mubr.f32.mxu0 0.0
        %3337 = vmatmul.mubr.f32.gmra.mrb[0].mxu0 %v2173
        %v3338 = vpop.f32.mrb[0].mxu0
        %v3339 = vadd.f32 %v3114, %v3338
        %v3340 = vpop.f32.mrb[0].mxu0
        %3341 = vmatprep.mubr.f32.mxu0 0.0
        %3342 = vmatmul.mubr.f32.gmra.mrb[0].mxu0 %v2174
        %v3343 = vpop.f32.mrb[0].mxu0
        %v3344 = vadd.f32 %v3119, %v3343
        %v3345 = vpop.f32.mrb[0].mxu0
        %3346 = vmatprep.mubr.f32.mxu0 0.0
        %3347 = vmatmul.mubr.f32.gmra.mrb[0].mxu0 %v2175
        %v3348 = vpop.f32.mrb[0].mxu0
        %v3349 = vadd.f32 %v3124, %v3348
        %v3350 = vpop.f32.mrb[0].mxu0
        %3351 = vmatprep.mubr.f32.mxu0 0.0
        %3352 = vmatmul.mubr.f32.gmra.mrb[0].mxu0 %v2176
        %v3353 = vpop.f32.mrb[0].mxu0
        %v3354 = vadd.f32 %v3129, %v3353
        %v3355 = vpop.f32.mrb[0].mxu0
        %3356 = vmatprep.mubr.f32.mxu0 0.0
        %3357 = vmatmul.mubr.f32.gmra.mrb[0].mxu0 %v2177
        %v3358 = vpop.f32.mrb[0].mxu0
        %v3359 = vadd.f32 %v3134, %v3358
        %v3360 = vpop.f32.mrb[0].mxu0
        %3361 = vmatprep.mubr.f32.mxu0 0.0
        %3362 = vmatmul.mubr.f32.gmra.mrb[0].mxu0 %v2178
        %v3363 = vpop.f32.mrb[0].mxu0
        %v3364 = vadd.f32 %v3139, %v3363
        %v3365 = vpop.f32.mrb[0].mxu0
        %3366 = vmatprep.mubr.f32.mxu0 0.0
        %3367 = vmatmul.mubr.f32.gmra.mrb[0].mxu0 %v2179
        %v3368 = vpop.f32.mrb[0].mxu0
        %v3369 = vadd.f32 %v3144, %v3368
        %v3370 = vpop.f32.mrb[0].mxu0
        %3371 = vmatprep.mubr.f32.mxu0 0.0
        %3372 = vmatmul.mubr.f32.gmra.mrb[0].mxu0 %v2180
        %v3373 = vpop.f32.mrb[0].mxu0
        %v3374 = vadd.f32 %v3149, %v3373
        %v3375 = vpop.f32.mrb[0].mxu0
        %3376 = vmatprep.mubr.f32.mxu0 0.0
        %3377 = vmatmul.mubr.f32.gmra.mrb[0].mxu0 %v2181
        %v3378 = vpop.f32.mrb[0].mxu0
        %v3379 = vadd.f32 %v3154, %v3378
        %v3380 = vpop.f32.mrb[0].mxu0
        %3381 = vmatprep.mubr.f32.mxu0 0.0
        %3382 = vmatmul.mubr.f32.gmra.mrb[0].mxu0 %v2182
        %v3383 = vpop.f32.mrb[0].mxu0
        %v3384 = vadd.f32 %v3159, %v3383
        %v3385 = vpop.f32.mrb[0].mxu0
        %3386 = vmatprep.mubr.f32.mxu0 0.0
        %3387 = vmatmul.mubr.f32.gmra.mrb[0].mxu0 %v2183
        %v3388 = vpop.f32.mrb[0].mxu0
        %v3389 = vadd.f32 %v3164, %v3388
        %v3390 = vpop.f32.mrb[0].mxu0
        %3391 = vmatprep.mubr.f32.mxu0 0.0
        %3392 = vmatmul.mubr.f32.gmra.mrb[0].mxu0 %v2184
        %v3393 = vpop.f32.mrb[0].mxu0
        %v3394 = vadd.f32 %v3169, %v3393
        %v3395 = vpop.f32.mrb[0].mxu0
        %3396 = vmatprep.mubr.f32.mxu0 0.0
        %3397 = vmatmul.mubr.f32.gmra.mrb[0].mxu0 %v2185
        %v3398 = vpop.f32.mrb[0].mxu0
        %v3399 = vadd.f32 %v3174, %v3398
        %v3400 = vpop.f32.mrb[0].mxu0
        %3401 = vmatprep.mubr.f32.mxu0 0.0
        %3402 = vmatmul.mubr.f32.gmra.mrb[0].mxu0 %v2186
        %v3403 = vpop.f32.mrb[0].mxu0
        %v3404 = vadd.f32 %v3179, %v3403
        %v3405 = vpop.f32.mrb[0].mxu0
        %3406 = vmatprep.mubr.f32.mxu0 0.0
        %3407 = vmatmul.mubr.f32.gmra.mrb[0].mxu0 %v2187
        %v3408 = vpop.f32.mrb[0].mxu0
        %v3409 = vadd.f32 %v3184, %v3408
        %v3410 = vpop.f32.mrb[0].mxu0
        %3411 = vmatprep.mubr.f32.mxu0 0.0
        %3412 = vmatmul.mubr.f32.gmra.mrb[0].mxu0 %v2188
        %v3413 = vpop.f32.mrb[0].mxu0
        %v3414 = vadd.f32 %v3189, %v3413
        %v3415 = vpop.f32.mrb[0].mxu0
        %3416 = vmatprep.mubr.f32.mxu0 0.0
        %3417 = vmatmul.mubr.f32.gmra.mrb[0].mxu0 %v2189
        %v3418 = vpop.f32.mrb[0].mxu0
        %v3419 = vadd.f32 %v3194, %v3418
        %v3420 = vpop.f32.mrb[0].mxu0
        %3421 = vmatprep.mubr.f32.mxu0 0.0
        %3422 = vmatmul.mubr.f32.gmra.mrb[0].mxu0 %v2190
        %v3423 = vpop.f32.mrb[0].mxu0
        %v3424 = vadd.f32 %v3199, %v3423
        %v3425 = vpop.f32.mrb[0].mxu0
        %3426 = vmatprep.mubr.f32.mxu0 0.0
        %3427 = vmatmul.mubr.f32.gmra.mrb[0].mxu0 %v2191
        %v3428 = vpop.f32.mrb[0].mxu0
        %v3429 = vadd.f32 %v3204, %v3428
        %v3430 = vpop.f32.mrb[0].mxu0
        %3431 = vmatprep.mubr.f32.mxu0 0.0
        %3432 = vmatmul.mubr.f32.gmra.mrb[0].mxu0 %v2192
        %v3433 = vpop.f32.mrb[0].mxu0
        %v3434 = vadd.f32 %v3209, %v3433
        %v3435 = vpop.f32.mrb[0].mxu0
        %3436 = vmatprep.mubr.f32.mxu0 0.0
        %3437 = vmatmul.mubr.f32.gmra.mrb[0].mxu0 %v2193
        %v3438 = vpop.f32.mrb[0].mxu0
        %v3439 = vadd.f32 %v3214, %v3438
        %v3440 = vpop.f32.mrb[0].mxu0
        %3441 = vmatprep.mubr.f32.mxu0 0.0
        %3442 = vmatmul.mubr.f32.gmra.mrb[0].mxu0 %v2194
        %v3443 = vpop.f32.mrb[0].mxu0
        %v3444 = vadd.f32 %v3219, %v3443
        %v3445 = vpop.f32.mrb[0].mxu0
        %3446 = vmatprep.mubr.f32.mxu0 0.0
        %3447 = vmatmul.mubr.f32.gmra.mrb[0].mxu0 %v2195
        %v3448 = vpop.f32.mrb[0].mxu0
        %v3449 = vadd.f32 %v3224, %v3448
        %v3450 = vpop.f32.mrb[0].mxu0
        %3451 = vmatprep.mubr.f32.mxu0 0.0
        %3452 = vmatmul.mubr.f32.gmra.mrb[0].mxu0 %v2196
        %v3453 = vpop.f32.mrb[0].mxu0
        %v3454 = vadd.f32 %v3229, %v3453
        %v3455 = vpop.f32.mrb[0].mxu0
        %3456 = vmatprep.mubr.f32.mxu0 0.0
        %3457 = vmatmul.mubr.f32.gmra.mrb[0].mxu0 %v2197
        %v3458 = vpop.f32.mrb[0].mxu0
        %v3459 = vadd.f32 %v3234, %v3458
        %v3460 = vpop.f32.mrb[0].mxu0
        %3461 = vmatprep.mubr.f32.mxu0 0.0
        %3462 = vmatmul.mubr.f32.gmra.mrb[0].mxu0 %v2198
        %v3463 = vpop.f32.mrb[0].mxu0
        %v3464 = vadd.f32 %v3239, %v3463
        %v3465 = vpop.f32.mrb[0].mxu0
        %3466 = vmatprep.mubr.f32.mxu0 0.0
        %3467 = vmatmul.mubr.f32.gmra.mrb[0].mxu0 %v2199
        %v3468 = vpop.f32.mrb[0].mxu0
        %v3469 = vadd.f32 %v3244, %v3468
        %v3470 = vpop.f32.mrb[0].mxu0
        %3471 = vmatprep.mubr.f32.mxu0 0.0
        %3472 = vmatmul.mubr.f32.gmra.mrb[0].mxu0 %v2200
        %v3473 = vpop.f32.mrb[0].mxu0
        %v3474 = vadd.f32 %v3249, %v3473
        %v3475 = vpop.f32.mrb[0].mxu0
        %3476 = vdwg.mxu0
        %v3477 = vadd.f32 %v3319, %v367
        %v3478 = vadd.f32 %v3324, %v368
        %v3479 = vadd.f32 %v3329, %v369
        %v3480 = vadd.f32 %v3334, %v370
        %v3481 = vadd.f32 %v3339, %v371
        %v3482 = vadd.f32 %v3344, %v372
        %v3483 = vadd.f32 %v3349, %v373
        %v3484 = vadd.f32 %v3354, %v374
        %v3485 = vadd.f32 %v3359, %v375
        %v3486 = vadd.f32 %v3364, %v376
        %v3487 = vadd.f32 %v3369, %v377
        %v3488 = vadd.f32 %v3374, %v378
        %v3489 = vadd.f32 %v3379, %v379
        %v3490 = vadd.f32 %v3384, %v380
        %v3491 = vadd.f32 %v3389, %v381
        %v3492 = vadd.f32 %v3394, %v382
        %v3493 = vadd.f32 %v3399, %v383
        %v3494 = vadd.f32 %v3404, %v384
        %v3495 = vadd.f32 %v3409, %v385
        %v3496 = vadd.f32 %v3414, %v386
        %v3497 = vadd.f32 %v3419, %v387
        %v3498 = vadd.f32 %v3424, %v388
        %v3499 = vadd.f32 %v3429, %v389
        %v3500 = vadd.f32 %v3434, %v390
        %v3501 = vadd.f32 %v3439, %v391
        %v3502 = vadd.f32 %v3444, %v392
        %v3503 = vadd.f32 %v3449, %v393
        %v3504 = vadd.f32 %v3454, %v394
        %v3505 = vadd.f32 %v3459, %v395
        %v3506 = vadd.f32 %v3464, %v396
        %v3507 = vadd.f32 %v3469, %v397
        %v3508 = vadd.f32 %v3474, %v398
        %v3509 = vmax.f32 %v3477, 0.0
        %v3510 = vmax.f32 %v3478, 0.0
        %v3511 = vmax.f32 %v3479, 0.0
        %v3512 = vmax.f32 %v3480, 0.0
        %v3513 = vmax.f32 %v3481, 0.0
        %v3514 = vmax.f32 %v3482, 0.0
        %v3515 = vmax.f32 %v3483, 0.0
        %v3516 = vmax.f32 %v3484, 0.0
        %v3517 = vmax.f32 %v3485, 0.0
        %v3518 = vmax.f32 %v3486, 0.0
        %v3519 = vmax.f32 %v3487, 0.0
        %v3520 = vmax.f32 %v3488, 0.0
        %v3521 = vmax.f32 %v3489, 0.0
        %v3522 = vmax.f32 %v3490, 0.0
        %v3523 = vmax.f32 %v3491, 0.0
        %v3524 = vmax.f32 %v3492, 0.0
        %v3525 = vmax.f32 %v3493, 0.0
        %v3526 = vmax.f32 %v3494, 0.0
        %v3527 = vmax.f32 %v3495, 0.0
        %v3528 = vmax.f32 %v3496, 0.0
        %v3529 = vmax.f32 %v3497, 0.0
        %v3530 = vmax.f32 %v3498, 0.0
        %v3531 = vmax.f32 %v3499, 0.0
        %v3532 = vmax.f32 %v3500, 0.0
        %v3533 = vmax.f32 %v3501, 0.0
        %v3534 = vmax.f32 %v3502, 0.0
        %v3535 = vmax.f32 %v3503, 0.0
        %v3536 = vmax.f32 %v3504, 0.0
        %v3537 = vmax.f32 %v3505, 0.0
        %v3538 = vmax.f32 %v3506, 0.0
        %v3539 = vmax.f32 %v3507, 0.0
        %v3540 = vmax.f32 %v3508, 0.0
        %3541 = vst [vmem:[%s232] sm:$0xff] %v3509
        %3542 = vst [vmem:[%s232 + $0x8] sm:$0xff] %v3510
        %3543 = vst [vmem:[%s232 + $0x10] sm:$0xff] %v3511
        %3544 = vst [vmem:[%s232 + $0x18] sm:$0xff] %v3512
        %3545 = vst [vmem:[%s232 + $0x20] sm:$0xff] %v3513
        %3546 = vst [vmem:[%s232 + $0x28] sm:$0xff] %v3514
        %3547 = vst [vmem:[%s232 + $0x30] sm:$0xff] %v3515
        %3548 = vst [vmem:[%s232 + $0x38] sm:$0xff] %v3516
        %3549 = vst [vmem:[%s232 + $0x40] sm:$0xff] %v3517
        %3550 = vst [vmem:[%s232 + $0x48] sm:$0xff] %v3518
        %3551 = vst [vmem:[%s232 + $0x50] sm:$0xff] %v3519
        %3552 = vst [vmem:[%s232 + $0x58] sm:$0xff] %v3520
        %3553 = vst [vmem:[%s232 + $0x60] sm:$0xff] %v3521
        %3554 = vst [vmem:[%s232 + $0x68] sm:$0xff] %v3522
        %3555 = vst [vmem:[%s232 + $0x70] sm:$0xff] %v3523
        %3556 = vst [vmem:[%s232 + $0x78] sm:$0xff] %v3524
        %3557 = vst [vmem:[%s232 + $0x80] sm:$0xff] %v3525
        %3558 = vst [vmem:[%s232 + $0x88] sm:$0xff] %v3526
        %3559 = vst [vmem:[%s232 + $0x90] sm:$0xff] %v3527
        %3560 = vst [vmem:[%s232 + $0x98] sm:$0xff] %v3528
        %3561 = vst [vmem:[%s232 + $0xa0] sm:$0xff] %v3529
        %3562 = vst [vmem:[%s232 + $0xa8] sm:$0xff] %v3530
        %3563 = vst [vmem:[%s232 + $0xb0] sm:$0xff] %v3531
        %3564 = vst [vmem:[%s232 + $0xb8] sm:$0xff] %v3532
        %3565 = vst [vmem:[%s232 + $0xc0] sm:$0xff] %v3533
        %3566 = vst [vmem:[%s232 + $0xc8] sm:$0xff] %v3534
        %3567 = vst [vmem:[%s232 + $0xd0] sm:$0xff] %v3535
        %3568 = vst [vmem:[%s232 + $0xd8] sm:$0xff] %v3536
        %3569 = vst [vmem:[%s232 + $0xe0] sm:$0xff] %v3537
        %3570 = vst [vmem:[%s232 + $0xe8] sm:$0xff] %v3538
        %3571 = vst [vmem:[%s232 + $0xf0] sm:$0xff] %v3539
        %3572 = vst [vmem:[%s232 + $0xf8] sm:$0xff] %v3540
        %s3573 = sand.u32 %s138, 1
        %s3574 = scalar_lea.sflag [#allocation5], %s3573
        %s3575 = sand.u32 %s138, 1
        %s3576 = smul.addr %s3575, 256
        %s3577 = scalar_lea.vmem [#allocation6], %s3576
        // Predicated region
        $region45: #{tpu_custom_call.1} parent=39 // pred_check
          %p3578 = pneg %p148
        $region46: #{tpu_custom_call.1} parent=39 // pred_check_branch
          %3580 = sbr.rel (%p3578) target = $region48
        $region47: #{tpu_custom_call.1} parent=39 // pred_region
          %s3582 = ssub.s32 4096, 4096
          %3583 = vsyncadd %s3574, %s3582
          %s3584 = smul.addr %s20, 32
          %s3585 = smul.addr %s3584, 128
          %s3586 = scalar_lea.hbm %s5, %s3585
          %s3587 = sshll.u32 %s3577, 4
          %s3588 = int_to_ptr.vmem [resolvable:$true] %s3587
          %3593 = dma.vmem_to_hbm [thread:$0]  %s3588, 4096, %s3586, %s3574, 128, 128, 8
        $region48: #{tpu_custom_call.1} parent=39 // pred_fallthru
          _
      $region40: #{tpu_custom_call.1} parent=5 // pred_fallthru
        _
      %p3594 = scmp.le.s32.totalorder 2, %s15
      // Predicated region
      $region49: #{tpu_custom_call.1} parent=5 // pred_check
        %p3595 = pneg %p3594
      $region50: #{tpu_custom_call.1} parent=5 // pred_check_branch
        %3597 = sbr.rel (%p3595) target = $region52
      $region51: #{tpu_custom_call.1} parent=5 // pred_region
        %s3598 = ssub.s32 %s15, 2
        // Predicated region
        $region53: #{tpu_custom_call.1} parent=51 // pred_check
          %p3599 = pneg %p154
        $region54: #{tpu_custom_call.1} parent=51 // pred_check_branch
          %3601 = sbr.rel (%p3599) target = $region56
        $region55: #{tpu_custom_call.1} parent=51 // pred_region
          %s3602 = sand.u32 %s139, 1
          %s3603 = scalar_lea.sflag [#allocation5], %s3602
          %s3604 = sand.u32 %s139, 1
          %s3605 = smul.addr %s3604, 256
          %s3606 = scalar_lea.vmem [#allocation6], %s3605
          %3607 = dma.done %s3603, 4096
        $region56: #{tpu_custom_call.1} parent=51 // pred_fallthru
          _
      $region52: #{tpu_custom_call.1} parent=5 // pred_fallthru
        _
    $region6: #{tpu_custom_call.1} parent=1 // loop_footer
      %s19 = sadd.s32 1, %s15
    $region7: #{tpu_custom_call.1} parent=1 // loop_footer_branch
      %14 = sbr.rel target = $region3
    $region8: #{tpu_custom_call.1} parent=1 // loop_exit
      _
    %3608 = vsyncpa [#allocation4], 1
    %s3609 = scalar_lea.sflag [#allocation4], 1
    %3610 = vsyncpa %s3609, 1
    %3611 = vsyncpa [#allocation5], 1
    %s3612 = scalar_lea.sflag [#allocation5], 1
    %3613 = vsyncpa %s3612, 1

</llo_original>
